<compile_context>
chip_gen: v7x
topology: tpu7x:2x2x1
jax: 0.10.0
libtpu: 0.0.40
codegen_flags: <defaults>
</compile_context>

<pallas_src>
import math
from functools import partial

import jax
import jax.numpy as jnp
from jax import lax
from jax.experimental import pallas as pl
from jax.experimental.pallas import tpu as pltpu

# ----- small synthetic hyper-params (bert-base-chinese scaled down) ---------
HIDDEN = 32
NUM_LAYERS = 2
NUM_HEADS = 4
HEAD_DIM = HIDDEN // NUM_HEADS
INTERMEDIATE = 64
VOCAB = 128
MAX_POS = 64
TYPE_VOCAB = 2
LN_EPS = 1e-12
CLS_ID = 101   # config.cls
SEP_ID = 102   # config.sep (not used in forward)


# ----------------------------- in-kernel math --------------------------------
def _layernorm(x, g, b):
    mu = jnp.mean(x, axis=-1, keepdims=True)
    var = jnp.mean((x - mu) ** 2, axis=-1, keepdims=True)
    return (x - mu) * lax.rsqrt(var + LN_EPS) * g + b


def _erf(x):
    # Abramowitz & Stegun 7.1.26 (max abs err ~1.5e-7 with exact divide):
    # exact-GELU behaviour of BertModel without an erf primitive lowering.
    # The approx reciprocal (EUP) adds ~1e-3-level error, well inside tolerance.
    p = 0.3275911
    a1, a2, a3, a4, a5 = (0.254829592, -0.284496736, 1.421413741,
                          -1.453152027, 1.061405429)
    ax = jnp.abs(x)
    t = pl.reciprocal(1.0 + p * ax, approx=True)
    poly = ((((a5 * t + a4) * t + a3) * t + a2) * t + a1) * t
    y = 1.0 - poly * jnp.exp(-ax * ax)
    return jnp.where(x >= 0.0, y, -y)


def _gelu_exact(x):
    return 0.5 * x * (1.0 + _erf(x * (1.0 / math.sqrt(2.0))))


# ------------------------------- fused kernel --------------------------------
def _bert_encoder_kernel(emb_ref, eg_ref, eb_ref,
                         wqkv_ref, bqkv_ref, wo_ref, bo_ref,
                         ln1g_ref, ln1b_ref, w1_ref, b1_ref,
                         w2_ref, b2_ref, ln2g_ref, ln2b_ref,
                         out_ref, *, num_layers, num_heads, head_dim, hidden):
    """Whole encoder for one batch element.  All weights are VMEM-resident
    (full-array blocks, constant index_map); the layer loop is unrolled."""
    # Embedding LayerNorm.
    h = _layernorm(emb_ref[0].astype(jnp.float32), eg_ref[...], eb_ref[...])  # (S, H)

    inv_sqrt_dh = 1.0 / math.sqrt(head_dim)

    for l in range(num_layers):                       # L=2: unrolled at trace time
        # ---- fused QKV projection: one MXU pass with N = 3*H; result stays in vregs
        qkv = (jnp.dot(h, wqkv_ref[l], preferred_element_type=jnp.float32)
               + bqkv_ref[l])                         # (S, 3H)

        # ---- multi-head self-attention, all heads in this step ----
        ctx_parts = []
        for hd in range(num_heads):
            c = hd * head_dim
            qh = qkv[:, c:c + head_dim] * inv_sqrt_dh                  # (S, Dh)
            kh = qkv[:, hidden + c:hidden + c + head_dim]              # (S, Dh)
            vh = qkv[:, 2 * hidden + c:2 * hidden + c + head_dim]      # (S, Dh)
            # contract on last dims directly -> no explicit K transpose
            s = lax.dot_general(qh, kh, (((1,), (1,)), ((), ())),
                                preferred_element_type=jnp.float32)    # (S, S)
            s = s - jnp.max(s, axis=-1, keepdims=True)
            p = jnp.exp(s)
            inv = pl.reciprocal(jnp.sum(p, axis=-1, keepdims=True), approx=True)
            ctx_parts.append(
                jnp.dot(p, vh, preferred_element_type=jnp.float32) * inv)  # (S, Dh)

        # head-merge as a static lane concat, then ONE K=H output projection
        ctx = jnp.concatenate(ctx_parts, axis=-1)                      # (S, H)
        attn = (jnp.dot(ctx, wo_ref[l], preferred_element_type=jnp.float32)
                + bo_ref[l])

        h1 = _layernorm(attn + h, ln1g_ref[l], ln1b_ref[l])

        # ---- feed-forward (exact erf GELU, f32 elementwise) ----
        ff = jnp.dot(h1, w1_ref[l], preferred_element_type=jnp.float32) + b1_ref[l]
        ff = _gelu_exact(ff)
        ff = jnp.dot(ff, w2_ref[l], preferred_element_type=jnp.float32) + b2_ref[l]

        h = _layernorm(ff + h1, ln2g_ref[l], ln2b_ref[l])

    out_ref[0] = h.astype(out_ref.dtype)


def _bert_encoder(emb, params):
    """emb: (B, S, H) f32 -> (B, S, H) f32 last-layer hidden states."""
    B, S, H = emb.shape

    def resident_spec(arr):
        # Full-array block, constant index_map: fetched once, stays in VMEM
        # across all grid steps (no per-step weight DMAs).
        return pl.BlockSpec(arr.shape, lambda b: (0,) * arr.ndim)

    act_spec = pl.BlockSpec((1, S, H), lambda b: (b, 0, 0))

    layer_args = (params["wqkv"], params["bqkv"], params["wo"], params["bo"],
                  params["ln1_g"], params["ln1_b"], params["w1"], params["b1"],
                  params["w2"], params["b2"], params["ln2_g"], params["ln2_b"])

    kernel = partial(_bert_encoder_kernel, num_layers=NUM_LAYERS,
                     num_heads=NUM_HEADS, head_dim=HEAD_DIM, hidden=H)

    return pl.pallas_call(
        kernel,
        out_shape=jax.ShapeDtypeStruct((B, S, H), jnp.float32),
        grid=(B,),                          # batch only; layers unrolled in-body
        in_specs=([act_spec,
                   resident_spec(params["emb_ln_g"]),
                   resident_spec(params["emb_ln_b"])]
                  + [resident_spec(a) for a in layer_args]),
        out_specs=act_spec,
        compiler_params=pltpu.CompilerParams(
            dimension_semantics=("parallel",)),   # both TCs get work on v7x
    )(emb, params["emb_ln_g"], params["emb_ln_b"], *layer_args)


# ------------------------------- BERT forward --------------------------------
def bert_forward(params, token_ids):
    """:param token_ids: (batch, len) int32 -> (batch, len, HIDDEN) float32"""
    B, Lseq = token_ids.shape
    # input_Norm: prepend [CLS]
    ids = jnp.concatenate(
        [jnp.full((B, 1), CLS_ID, dtype=token_ids.dtype), token_ids], axis=1)
    S = Lseq + 1
    seg = jnp.zeros_like(ids)               # segments_tensors = zeros_like(x)

    # TODO(synk): embedding gather stays in plain XLA (no clean/efficient Pallas
    # gather at this scale); everything downstream runs in the fused kernel.
    emb = (params["word_emb"][ids]
           + params["pos_emb"][:S][None, :, :]
           + params["type_emb"][seg])

    h = _bert_encoder(emb.astype(jnp.float32), params)

    # h[-1][:, 1:, :] : last encoder layer output, drop the prepended [CLS] slot
    return h[:, 1:, :]


# ------------------------------ param init -----------------------------------
def init_params(key):
    def norm(k, shape):
        return jax.random.normal(k, shape, jnp.float32) * 0.02

    keys = jax.random.split(key, 7)
    return {
        "word_emb": norm(keys[0], (VOCAB, HIDDEN)),
        "pos_emb":  norm(keys[1], (MAX_POS, HIDDEN)),
        "type_emb": norm(keys[2], (TYPE_VOCAB, HIDDEN)),
        "emb_ln_g": jnp.ones((1, HIDDEN), jnp.float32),
        "emb_ln_b": jnp.zeros((1, HIDDEN), jnp.float32),
        # per-layer weights stacked along a leading layer axis; the fused kernel
        # keeps them fully VMEM-resident and indexes the layer axis in-body.
        "wqkv":  norm(keys[3], (NUM_LAYERS, HIDDEN, 3 * HIDDEN)),
        "bqkv":  jnp.zeros((NUM_LAYERS, 1, 3 * HIDDEN), jnp.float32),
        "wo":    norm(keys[4], (NUM_LAYERS, HIDDEN, HIDDEN)),
        "bo":    jnp.zeros((NUM_LAYERS, 1, HIDDEN), jnp.float32),
        "ln1_g": jnp.ones((NUM_LAYERS, 1, HIDDEN), jnp.float32),
        "ln1_b": jnp.zeros((NUM_LAYERS, 1, HIDDEN), jnp.float32),
        "w1":    norm(keys[5], (NUM_LAYERS, HIDDEN, INTERMEDIATE)),
        "b1":    jnp.zeros((NUM_LAYERS, 1, INTERMEDIATE), jnp.float32),
        "w2":    norm(keys[6], (NUM_LAYERS, INTERMEDIATE, HIDDEN)),
        "b2":    jnp.zeros((NUM_LAYERS, 1, HIDDEN), jnp.float32),
        "ln2_g": jnp.ones((NUM_LAYERS, 1, HIDDEN), jnp.float32),
        "ln2_b": jnp.zeros((NUM_LAYERS, 1, HIDDEN), jnp.float32),
    }


# --------------------------- pure-JAX reference ------------------------------
def bert_reference(params, token_ids):
    B, Lseq = token_ids.shape
    ids = jnp.concatenate(
        [jnp.full((B, 1), CLS_ID, dtype=token_ids.dtype), token_ids], axis=1)
    S = Lseq + 1
    seg = jnp.zeros_like(ids)
    emb = (params["word_emb"][ids]
           + params["pos_emb"][:S][None, :, :]
           + params["type_emb"][seg])

    def ln(x, g, b):
        mu = jnp.mean(x, axis=-1, keepdims=True)
        var = jnp.mean((x - mu) ** 2, axis=-1, keepdims=True)
        return (x - mu) / jnp.sqrt(var + LN_EPS) * g + b

    h = ln(emb, params["emb_ln_g"][0], params["emb_ln_b"][0])
    for l in range(NUM_LAYERS):
        qkv = h @ params["wqkv"][l] + params["bqkv"][l]
        q, k, v = jnp.split(qkv, 3, axis=-1)

        def heads(t):
            return t.reshape(B, S, NUM_HEADS, HEAD_DIM).transpose(0, 2, 1, 3)

        qh, kh, vh = heads(q), heads(k), heads(v)
        s = jnp.einsum("bhqd,bhkd->bhqk", qh, kh) / math.sqrt(HEAD_DIM)
        p = jax.nn.softmax(s, axis=-1)
        ctx = jnp.einsum("bhqk,bhkd->bhqd", p, vh)
        ctx = ctx.transpose(0, 2, 1, 3).reshape(B, S, HIDDEN)
        attn = ctx @ params["wo"][l] + params["bo"][l]
        h1 = ln(attn + h, params["ln1_g"][l], params["ln1_b"][l])
        ff = h1 @ params["w1"][l] + params["b1"][l]
        ff = jax.nn.gelu(ff, approximate=False)
        ff = ff @ params["w2"][l] + params["b2"][l]
        h = ln(ff + h1, params["ln2_g"][l], params["ln2_b"][l])
    return h[:, 1:, :]


if __name__ == "__main__":
    key = jax.random.PRNGKey(0)
    pkey, xkey = jax.random.split(key)
    params = init_params(pkey)

    batch, seq = 2, 8
    x = jax.random.randint(xkey, (batch, seq), 0, VOCAB, dtype=jnp.int32)

    out = jax.jit(bert_forward)(params, x)
    out = jax.block_until_ready(out)
    assert out.shape == (batch, seq, HIDDEN), out.shape
    assert bool(jnp.all(jnp.isfinite(out)))

    ref = bert_reference(params, x)
    err = float(jnp.max(jnp.abs(out - ref)))
    assert jnp.allclose(out, ref, atol=2e-2, rtol=2e-2), f"max err {err}"
    print("KERNEL_OK")
</pallas_src>

<mosaic_0001>
module attributes {stable_mosaic.version = 11 : i64} {
  func.func @_bert_encoder_kernel(%arg0: i32, %arg1: memref<1x9x32xf32, #tpu.memory_space<vmem>>, %arg2: memref<1x32xf32, #tpu.memory_space<vmem>>, %arg3: memref<1x32xf32, #tpu.memory_space<vmem>>, %arg4: memref<2x32x96xf32, #tpu.memory_space<vmem>>, %arg5: memref<2x1x96xf32, #tpu.memory_space<vmem>>, %arg6: memref<2x32x32xf32, #tpu.memory_space<vmem>>, %arg7: memref<2x1x32xf32, #tpu.memory_space<vmem>>, %arg8: memref<2x1x32xf32, #tpu.memory_space<vmem>>, %arg9: memref<2x1x32xf32, #tpu.memory_space<vmem>>, %arg10: memref<2x32x64xf32, #tpu.memory_space<vmem>>, %arg11: memref<2x1x64xf32, #tpu.memory_space<vmem>>, %arg12: memref<2x64x32xf32, #tpu.memory_space<vmem>>, %arg13: memref<2x1x32xf32, #tpu.memory_space<vmem>>, %arg14: memref<2x1x32xf32, #tpu.memory_space<vmem>>, %arg15: memref<2x1x32xf32, #tpu.memory_space<vmem>>, %arg16: memref<1x9x32xf32, #tpu.memory_space<vmem>>) attributes {dimension_semantics = [#tpu.dimension_semantics<parallel>], iteration_bounds = array<i64: 2>, scalar_prefetch = 0 : i64, scratch_operands = 0 : i64, tpu.core_type = #tpu.core_type<tc>, window_params = [{transform_indices = @transform_0, window_bounds = array<i64: 1, 9, 32>}, {pipeline_mode = #tpu.pipeline_mode<synchronous>, transform_indices = @transform_1, window_bounds = array<i64: 1, 32>}, {pipeline_mode = #tpu.pipeline_mode<synchronous>, transform_indices = @transform_2, window_bounds = array<i64: 1, 32>}, {pipeline_mode = #tpu.pipeline_mode<synchronous>, transform_indices = @transform_3, window_bounds = array<i64: 2, 32, 96>}, {pipeline_mode = #tpu.pipeline_mode<synchronous>, transform_indices = @transform_4, window_bounds = array<i64: 2, 1, 96>}, {pipeline_mode = #tpu.pipeline_mode<synchronous>, transform_indices = @transform_5, window_bounds = array<i64: 2, 32, 32>}, {pipeline_mode = #tpu.pipeline_mode<synchronous>, transform_indices = @transform_6, window_bounds = array<i64: 2, 1, 32>}, {pipeline_mode = #tpu.pipeline_mode<synchronous>, transform_indices = @transform_7, window_bounds = array<i64: 2, 1, 32>}, {pipeline_mode = #tpu.pipeline_mode<synchronous>, transform_indices = @transform_8, window_bounds = array<i64: 2, 1, 32>}, {pipeline_mode = #tpu.pipeline_mode<synchronous>, transform_indices = @transform_9, window_bounds = array<i64: 2, 32, 64>}, {pipeline_mode = #tpu.pipeline_mode<synchronous>, transform_indices = @transform_10, window_bounds = array<i64: 2, 1, 64>}, {pipeline_mode = #tpu.pipeline_mode<synchronous>, transform_indices = @transform_11, window_bounds = array<i64: 2, 64, 32>}, {pipeline_mode = #tpu.pipeline_mode<synchronous>, transform_indices = @transform_12, window_bounds = array<i64: 2, 1, 32>}, {pipeline_mode = #tpu.pipeline_mode<synchronous>, transform_indices = @transform_13, window_bounds = array<i64: 2, 1, 32>}, {pipeline_mode = #tpu.pipeline_mode<synchronous>, transform_indices = @transform_14, window_bounds = array<i64: 2, 1, 32>}, {transform_indices = @transform_15, window_bounds = array<i64: 1, 9, 32>}]} {
    %c0 = arith.constant 0 : index
    %c0_0 = arith.constant 0 : index
    %c0_1 = arith.constant 0 : index
    %0 = vector.load %arg1[%c0, %c0_0, %c0_1] : memref<1x9x32xf32, #tpu.memory_space<vmem>>, vector<1x9x32xf32>
    %1 = vector.shape_cast %0 : vector<1x9x32xf32> to vector<9x32xf32>
    %c0_2 = arith.constant 0 : index
    %c0_3 = arith.constant 0 : index
    %2 = vector.load %arg2[%c0_2, %c0_3] : memref<1x32xf32, #tpu.memory_space<vmem>>, vector<1x32xf32>
    %c0_4 = arith.constant 0 : index
    %c0_5 = arith.constant 0 : index
    %3 = vector.load %arg3[%c0_4, %c0_5] : memref<1x32xf32, #tpu.memory_space<vmem>>, vector<1x32xf32>
    %cst = arith.constant dense<0.000000e+00> : vector<9xf32>
    %4 = vector.multi_reduction <add>, %1, %cst [1] : vector<9x32xf32> to vector<9xf32>
    %5 = vector.shape_cast %4 : vector<9xf32> to vector<9x1xf32>
    %cst_6 = arith.constant 3.200000e+01 : f32
    %6 = vector.broadcast %cst_6 : f32 to vector<9x1xf32>
    %7 = arith.divf %5, %6 : vector<9x1xf32>
    %8 = vector.broadcast %7 : vector<9x1xf32> to vector<9x32xf32>
    %9 = arith.subf %1, %8 : vector<9x32xf32>
    %10 = arith.mulf %9, %9 : vector<9x32xf32>
    %cst_7 = arith.constant dense<0.000000e+00> : vector<9xf32>
    %11 = vector.multi_reduction <add>, %10, %cst_7 [1] : vector<9x32xf32> to vector<9xf32>
    %12 = vector.shape_cast %11 : vector<9xf32> to vector<9x1xf32>
    %cst_8 = arith.constant 3.200000e+01 : f32
    %13 = vector.broadcast %cst_8 : f32 to vector<9x1xf32>
    %14 = arith.divf %12, %13 : vector<9x1xf32>
    %15 = vector.broadcast %7 : vector<9x1xf32> to vector<9x32xf32>
    %16 = arith.subf %1, %15 : vector<9x32xf32>
    %cst_9 = arith.constant 9.99999996E-13 : f32
    %17 = vector.broadcast %cst_9 : f32 to vector<9x1xf32>
    %18 = arith.addf %14, %17 : vector<9x1xf32>
    %19 = math.rsqrt %18 : vector<9x1xf32>
    %20 = vector.broadcast %19 : vector<9x1xf32> to vector<9x32xf32>
    %21 = arith.mulf %16, %20 : vector<9x32xf32>
    %22 = vector.broadcast %2 : vector<1x32xf32> to vector<9x32xf32>
    %23 = arith.mulf %21, %22 : vector<9x32xf32>
    %24 = vector.broadcast %3 : vector<1x32xf32> to vector<9x32xf32>
    %25 = arith.addf %23, %24 : vector<9x32xf32>
    %c0_10 = arith.constant 0 : index
    %c0_11 = arith.constant 0 : index
    %c0_12 = arith.constant 0 : index
    %26 = vector.load %arg4[%c0_10, %c0_11, %c0_12] : memref<2x32x96xf32, #tpu.memory_space<vmem>>, vector<1x32x96xf32>
    %27 = vector.shape_cast %26 : vector<1x32x96xf32> to vector<32x96xf32>
    %cst_13 = arith.constant dense<0.000000e+00> : vector<9x96xf32>
    %28 = tpu.matmul %25, %27, %cst_13 {dimension_numbers = #tpu.dot_dimension_numbers<[1], [0], [0], [1], [0, 0, 1, 1], [], []>} : vector<9x32xf32>, vector<32x96xf32>, vector<9x96xf32> -> vector<9x96xf32>
    %c0_14 = arith.constant 0 : index
    %c0_15 = arith.constant 0 : index
    %c0_16 = arith.constant 0 : index
    %29 = vector.load %arg5[%c0_14, %c0_15, %c0_16] : memref<2x1x96xf32, #tpu.memory_space<vmem>>, vector<1x1x96xf32>
    %30 = vector.shape_cast %29 : vector<1x1x96xf32> to vector<1x96xf32>
    %31 = vector.broadcast %30 : vector<1x96xf32> to vector<9x96xf32>
    %32 = arith.addf %28, %31 : vector<9x96xf32>
    %33 = vector.extract_strided_slice %32 {offsets = [0, 0], sizes = [9, 8], strides = [1, 1]} : vector<9x96xf32> to vector<9x8xf32>
    %cst_17 = arith.constant 0.353553385 : f32
    %34 = vector.broadcast %cst_17 : f32 to vector<9x8xf32>
    %35 = arith.mulf %33, %34 : vector<9x8xf32>
    %36 = vector.extract_strided_slice %32 {offsets = [0, 32], sizes = [9, 8], strides = [1, 1]} : vector<9x96xf32> to vector<9x8xf32>
    %37 = vector.extract_strided_slice %32 {offsets = [0, 64], sizes = [9, 8], strides = [1, 1]} : vector<9x96xf32> to vector<9x8xf32>
    %cst_18 = arith.constant dense<0.000000e+00> : vector<9x9xf32>
    %38 = tpu.matmul %35, %36, %cst_18 {dimension_numbers = #tpu.dot_dimension_numbers<[1], [1], [0], [0], [0, 0, 1, 0], [], []>} : vector<9x8xf32>, vector<9x8xf32>, vector<9x9xf32> -> vector<9x9xf32>
    %cst_19 = arith.constant dense<0xFF800000> : vector<9xf32>
    %39 = vector.multi_reduction <maximumf>, %38, %cst_19 [1] : vector<9x9xf32> to vector<9xf32>
    %40 = vector.shape_cast %39 : vector<9xf32> to vector<9x1xf32>
    %41 = vector.broadcast %40 : vector<9x1xf32> to vector<9x9xf32>
    %42 = arith.subf %38, %41 : vector<9x9xf32>
    %43 = math.exp %42 : vector<9x9xf32>
    %cst_20 = arith.constant dense<0.000000e+00> : vector<9xf32>
    %44 = vector.multi_reduction <add>, %43, %cst_20 [1] : vector<9x9xf32> to vector<9xf32>
    %45 = vector.shape_cast %44 : vector<9xf32> to vector<9x1xf32>
    %46 = tpu.reciprocal %45 {approx = true} : vector<9x1xf32> -> vector<9x1xf32>
    %cst_21 = arith.constant dense<0.000000e+00> : vector<9x8xf32>
    %47 = tpu.matmul %43, %37, %cst_21 {dimension_numbers = #tpu.dot_dimension_numbers<[1], [0], [0], [1], [0, 0, 1, 1], [], []>} : vector<9x9xf32>, vector<9x8xf32>, vector<9x8xf32> -> vector<9x8xf32>
    %48 = vector.broadcast %46 : vector<9x1xf32> to vector<9x8xf32>
    %49 = arith.mulf %47, %48 : vector<9x8xf32>
    %50 = vector.extract_strided_slice %32 {offsets = [0, 8], sizes = [9, 8], strides = [1, 1]} : vector<9x96xf32> to vector<9x8xf32>
    %cst_22 = arith.constant 0.353553385 : f32
    %51 = vector.broadcast %cst_22 : f32 to vector<9x8xf32>
    %52 = arith.mulf %50, %51 : vector<9x8xf32>
    %53 = vector.extract_strided_slice %32 {offsets = [0, 40], sizes = [9, 8], strides = [1, 1]} : vector<9x96xf32> to vector<9x8xf32>
    %54 = vector.extract_strided_slice %32 {offsets = [0, 72], sizes = [9, 8], strides = [1, 1]} : vector<9x96xf32> to vector<9x8xf32>
    %cst_23 = arith.constant dense<0.000000e+00> : vector<9x9xf32>
    %55 = tpu.matmul %52, %53, %cst_23 {dimension_numbers = #tpu.dot_dimension_numbers<[1], [1], [0], [0], [0, 0, 1, 0], [], []>} : vector<9x8xf32>, vector<9x8xf32>, vector<9x9xf32> -> vector<9x9xf32>
    %cst_24 = arith.constant dense<0xFF800000> : vector<9xf32>
    %56 = vector.multi_reduction <maximumf>, %55, %cst_24 [1] : vector<9x9xf32> to vector<9xf32>
    %57 = vector.shape_cast %56 : vector<9xf32> to vector<9x1xf32>
    %58 = vector.broadcast %57 : vector<9x1xf32> to vector<9x9xf32>
    %59 = arith.subf %55, %58 : vector<9x9xf32>
    %60 = math.exp %59 : vector<9x9xf32>
    %cst_25 = arith.constant dense<0.000000e+00> : vector<9xf32>
    %61 = vector.multi_reduction <add>, %60, %cst_25 [1] : vector<9x9xf32> to vector<9xf32>
    %62 = vector.shape_cast %61 : vector<9xf32> to vector<9x1xf32>
    %63 = tpu.reciprocal %62 {approx = true} : vector<9x1xf32> -> vector<9x1xf32>
    %cst_26 = arith.constant dense<0.000000e+00> : vector<9x8xf32>
    %64 = tpu.matmul %60, %54, %cst_26 {dimension_numbers = #tpu.dot_dimension_numbers<[1], [0], [0], [1], [0, 0, 1, 1], [], []>} : vector<9x9xf32>, vector<9x8xf32>, vector<9x8xf32> -> vector<9x8xf32>
    %65 = vector.broadcast %63 : vector<9x1xf32> to vector<9x8xf32>
    %66 = arith.mulf %64, %65 : vector<9x8xf32>
    %67 = vector.extract_strided_slice %32 {offsets = [0, 16], sizes = [9, 8], strides = [1, 1]} : vector<9x96xf32> to vector<9x8xf32>
    %cst_27 = arith.constant 0.353553385 : f32
    %68 = vector.broadcast %cst_27 : f32 to vector<9x8xf32>
    %69 = arith.mulf %67, %68 : vector<9x8xf32>
    %70 = vector.extract_strided_slice %32 {offsets = [0, 48], sizes = [9, 8], strides = [1, 1]} : vector<9x96xf32> to vector<9x8xf32>
    %71 = vector.extract_strided_slice %32 {offsets = [0, 80], sizes = [9, 8], strides = [1, 1]} : vector<9x96xf32> to vector<9x8xf32>
    %cst_28 = arith.constant dense<0.000000e+00> : vector<9x9xf32>
    %72 = tpu.matmul %69, %70, %cst_28 {dimension_numbers = #tpu.dot_dimension_numbers<[1], [1], [0], [0], [0, 0, 1, 0], [], []>} : vector<9x8xf32>, vector<9x8xf32>, vector<9x9xf32> -> vector<9x9xf32>
    %cst_29 = arith.constant dense<0xFF800000> : vector<9xf32>
    %73 = vector.multi_reduction <maximumf>, %72, %cst_29 [1] : vector<9x9xf32> to vector<9xf32>
    %74 = vector.shape_cast %73 : vector<9xf32> to vector<9x1xf32>
    %75 = vector.broadcast %74 : vector<9x1xf32> to vector<9x9xf32>
    %76 = arith.subf %72, %75 : vector<9x9xf32>
    %77 = math.exp %76 : vector<9x9xf32>
    %cst_30 = arith.constant dense<0.000000e+00> : vector<9xf32>
    %78 = vector.multi_reduction <add>, %77, %cst_30 [1] : vector<9x9xf32> to vector<9xf32>
    %79 = vector.shape_cast %78 : vector<9xf32> to vector<9x1xf32>
    %80 = tpu.reciprocal %79 {approx = true} : vector<9x1xf32> -> vector<9x1xf32>
    %cst_31 = arith.constant dense<0.000000e+00> : vector<9x8xf32>
    %81 = tpu.matmul %77, %71, %cst_31 {dimension_numbers = #tpu.dot_dimension_numbers<[1], [0], [0], [1], [0, 0, 1, 1], [], []>} : vector<9x9xf32>, vector<9x8xf32>, vector<9x8xf32> -> vector<9x8xf32>
    %82 = vector.broadcast %80 : vector<9x1xf32> to vector<9x8xf32>
    %83 = arith.mulf %81, %82 : vector<9x8xf32>
    %84 = vector.extract_strided_slice %32 {offsets = [0, 24], sizes = [9, 8], strides = [1, 1]} : vector<9x96xf32> to vector<9x8xf32>
    %cst_32 = arith.constant 0.353553385 : f32
    %85 = vector.broadcast %cst_32 : f32 to vector<9x8xf32>
    %86 = arith.mulf %84, %85 : vector<9x8xf32>
    %87 = vector.extract_strided_slice %32 {offsets = [0, 56], sizes = [9, 8], strides = [1, 1]} : vector<9x96xf32> to vector<9x8xf32>
    %88 = vector.extract_strided_slice %32 {offsets = [0, 88], sizes = [9, 8], strides = [1, 1]} : vector<9x96xf32> to vector<9x8xf32>
    %cst_33 = arith.constant dense<0.000000e+00> : vector<9x9xf32>
    %89 = tpu.matmul %86, %87, %cst_33 {dimension_numbers = #tpu.dot_dimension_numbers<[1], [1], [0], [0], [0, 0, 1, 0], [], []>} : vector<9x8xf32>, vector<9x8xf32>, vector<9x9xf32> -> vector<9x9xf32>
    %cst_34 = arith.constant dense<0xFF800000> : vector<9xf32>
    %90 = vector.multi_reduction <maximumf>, %89, %cst_34 [1] : vector<9x9xf32> to vector<9xf32>
    %91 = vector.shape_cast %90 : vector<9xf32> to vector<9x1xf32>
    %92 = vector.broadcast %91 : vector<9x1xf32> to vector<9x9xf32>
    %93 = arith.subf %89, %92 : vector<9x9xf32>
    %94 = math.exp %93 : vector<9x9xf32>
    %cst_35 = arith.constant dense<0.000000e+00> : vector<9xf32>
    %95 = vector.multi_reduction <add>, %94, %cst_35 [1] : vector<9x9xf32> to vector<9xf32>
    %96 = vector.shape_cast %95 : vector<9xf32> to vector<9x1xf32>
    %97 = tpu.reciprocal %96 {approx = true} : vector<9x1xf32> -> vector<9x1xf32>
    %cst_36 = arith.constant dense<0.000000e+00> : vector<9x8xf32>
    %98 = tpu.matmul %94, %88, %cst_36 {dimension_numbers = #tpu.dot_dimension_numbers<[1], [0], [0], [1], [0, 0, 1, 1], [], []>} : vector<9x9xf32>, vector<9x8xf32>, vector<9x8xf32> -> vector<9x8xf32>
    %99 = vector.broadcast %97 : vector<9x1xf32> to vector<9x8xf32>
    %100 = arith.mulf %98, %99 : vector<9x8xf32>
    %101 = tpu.concatenate %49, %66, %83, %100 in 1 : vector<9x8xf32>, vector<9x8xf32>, vector<9x8xf32>, vector<9x8xf32> -> vector<9x32xf32>
    %c0_37 = arith.constant 0 : index
    %c0_38 = arith.constant 0 : index
    %c0_39 = arith.constant 0 : index
    %102 = vector.load %arg6[%c0_37, %c0_38, %c0_39] : memref<2x32x32xf32, #tpu.memory_space<vmem>>, vector<1x32x32xf32>
    %103 = vector.shape_cast %102 : vector<1x32x32xf32> to vector<32x32xf32>
    %cst_40 = arith.constant dense<0.000000e+00> : vector<9x32xf32>
    %104 = tpu.matmul %101, %103, %cst_40 {dimension_numbers = #tpu.dot_dimension_numbers<[1], [0], [0], [1], [0, 0, 1, 1], [], []>} : vector<9x32xf32>, vector<32x32xf32>, vector<9x32xf32> -> vector<9x32xf32>
    %c0_41 = arith.constant 0 : index
    %c0_42 = arith.constant 0 : index
    %c0_43 = arith.constant 0 : index
    %105 = vector.load %arg7[%c0_41, %c0_42, %c0_43] : memref<2x1x32xf32, #tpu.memory_space<vmem>>, vector<1x1x32xf32>
    %106 = vector.shape_cast %105 : vector<1x1x32xf32> to vector<1x32xf32>
    %107 = vector.broadcast %106 : vector<1x32xf32> to vector<9x32xf32>
    %108 = arith.addf %104, %107 : vector<9x32xf32>
    %109 = arith.addf %108, %25 : vector<9x32xf32>
    %c0_44 = arith.constant 0 : index
    %c0_45 = arith.constant 0 : index
    %c0_46 = arith.constant 0 : index
    %110 = vector.load %arg8[%c0_44, %c0_45, %c0_46] : memref<2x1x32xf32, #tpu.memory_space<vmem>>, vector<1x1x32xf32>
    %111 = vector.shape_cast %110 : vector<1x1x32xf32> to vector<1x32xf32>
    %c0_47 = arith.constant 0 : index
    %c0_48 = arith.constant 0 : index
    %c0_49 = arith.constant 0 : index
    %112 = vector.load %arg9[%c0_47, %c0_48, %c0_49] : memref<2x1x32xf32, #tpu.memory_space<vmem>>, vector<1x1x32xf32>
    %113 = vector.shape_cast %112 : vector<1x1x32xf32> to vector<1x32xf32>
    %cst_50 = arith.constant dense<0.000000e+00> : vector<9xf32>
    %114 = vector.multi_reduction <add>, %109, %cst_50 [1] : vector<9x32xf32> to vector<9xf32>
    %115 = vector.shape_cast %114 : vector<9xf32> to vector<9x1xf32>
    %cst_51 = arith.constant 3.200000e+01 : f32
    %116 = vector.broadcast %cst_51 : f32 to vector<9x1xf32>
    %117 = arith.divf %115, %116 : vector<9x1xf32>
    %118 = vector.broadcast %117 : vector<9x1xf32> to vector<9x32xf32>
    %119 = arith.subf %109, %118 : vector<9x32xf32>
    %120 = arith.mulf %119, %119 : vector<9x32xf32>
    %cst_52 = arith.constant dense<0.000000e+00> : vector<9xf32>
    %121 = vector.multi_reduction <add>, %120, %cst_52 [1] : vector<9x32xf32> to vector<9xf32>
    %122 = vector.shape_cast %121 : vector<9xf32> to vector<9x1xf32>
    %cst_53 = arith.constant 3.200000e+01 : f32
    %123 = vector.broadcast %cst_53 : f32 to vector<9x1xf32>
    %124 = arith.divf %122, %123 : vector<9x1xf32>
    %125 = vector.broadcast %117 : vector<9x1xf32> to vector<9x32xf32>
    %126 = arith.subf %109, %125 : vector<9x32xf32>
    %cst_54 = arith.constant 9.99999996E-13 : f32
    %127 = vector.broadcast %cst_54 : f32 to vector<9x1xf32>
    %128 = arith.addf %124, %127 : vector<9x1xf32>
    %129 = math.rsqrt %128 : vector<9x1xf32>
    %130 = vector.broadcast %129 : vector<9x1xf32> to vector<9x32xf32>
    %131 = arith.mulf %126, %130 : vector<9x32xf32>
    %132 = vector.broadcast %111 : vector<1x32xf32> to vector<9x32xf32>
    %133 = arith.mulf %131, %132 : vector<9x32xf32>
    %134 = vector.broadcast %113 : vector<1x32xf32> to vector<9x32xf32>
    %135 = arith.addf %133, %134 : vector<9x32xf32>
    %c0_55 = arith.constant 0 : index
    %c0_56 = arith.constant 0 : index
    %c0_57 = arith.constant 0 : index
    %136 = vector.load %arg10[%c0_55, %c0_56, %c0_57] : memref<2x32x64xf32, #tpu.memory_space<vmem>>, vector<1x32x64xf32>
    %137 = vector.shape_cast %136 : vector<1x32x64xf32> to vector<32x64xf32>
    %cst_58 = arith.constant dense<0.000000e+00> : vector<9x64xf32>
    %138 = tpu.matmul %135, %137, %cst_58 {dimension_numbers = #tpu.dot_dimension_numbers<[1], [0], [0], [1], [0, 0, 1, 1], [], []>} : vector<9x32xf32>, vector<32x64xf32>, vector<9x64xf32> -> vector<9x64xf32>
    %c0_59 = arith.constant 0 : index
    %c0_60 = arith.constant 0 : index
    %c0_61 = arith.constant 0 : index
    %139 = vector.load %arg11[%c0_59, %c0_60, %c0_61] : memref<2x1x64xf32, #tpu.memory_space<vmem>>, vector<1x1x64xf32>
    %140 = vector.shape_cast %139 : vector<1x1x64xf32> to vector<1x64xf32>
    %141 = vector.broadcast %140 : vector<1x64xf32> to vector<9x64xf32>
    %142 = arith.addf %138, %141 : vector<9x64xf32>
    %cst_62 = arith.constant 5.000000e-01 : f32
    %143 = vector.broadcast %cst_62 : f32 to vector<9x64xf32>
    %144 = arith.mulf %143, %142 : vector<9x64xf32>
    %cst_63 = arith.constant 0.707106769 : f32
    %145 = vector.broadcast %cst_63 : f32 to vector<9x64xf32>
    %146 = arith.mulf %142, %145 : vector<9x64xf32>
    %147 = math.absf %146 : vector<9x64xf32>
    %cst_64 = arith.constant 0.327591091 : f32
    %148 = vector.broadcast %cst_64 : f32 to vector<9x64xf32>
    %149 = arith.mulf %148, %147 : vector<9x64xf32>
    %cst_65 = arith.constant 1.000000e+00 : f32
    %150 = vector.broadcast %cst_65 : f32 to vector<9x64xf32>
    %151 = arith.addf %150, %149 : vector<9x64xf32>
    %152 = tpu.reciprocal %151 {approx = true} : vector<9x64xf32> -> vector<9x64xf32>
    %cst_66 = arith.constant 1.06140542 : f32
    %153 = vector.broadcast %cst_66 : f32 to vector<9x64xf32>
    %154 = arith.mulf %153, %152 : vector<9x64xf32>
    %cst_67 = arith.constant -1.45315206 : f32
    %155 = vector.broadcast %cst_67 : f32 to vector<9x64xf32>
    %156 = arith.addf %154, %155 : vector<9x64xf32>
    %157 = arith.mulf %156, %152 : vector<9x64xf32>
    %cst_68 = arith.constant 1.42141378 : f32
    %158 = vector.broadcast %cst_68 : f32 to vector<9x64xf32>
    %159 = arith.addf %157, %158 : vector<9x64xf32>
    %160 = arith.mulf %159, %152 : vector<9x64xf32>
    %cst_69 = arith.constant -0.284496725 : f32
    %161 = vector.broadcast %cst_69 : f32 to vector<9x64xf32>
    %162 = arith.addf %160, %161 : vector<9x64xf32>
    %163 = arith.mulf %162, %152 : vector<9x64xf32>
    %cst_70 = arith.constant 0.254829586 : f32
    %164 = vector.broadcast %cst_70 : f32 to vector<9x64xf32>
    %165 = arith.addf %163, %164 : vector<9x64xf32>
    %166 = arith.mulf %165, %152 : vector<9x64xf32>
    %cst_71 = arith.constant 0.000000e+00 : f32
    %167 = vector.broadcast %cst_71 : f32 to vector<9x64xf32>
    %168 = arith.subf %167, %147 : vector<9x64xf32>
    %169 = arith.mulf %168, %147 : vector<9x64xf32>
    %170 = math.exp %169 : vector<9x64xf32>
    %171 = arith.mulf %166, %170 : vector<9x64xf32>
    %cst_72 = arith.constant 1.000000e+00 : f32
    %172 = vector.broadcast %cst_72 : f32 to vector<9x64xf32>
    %173 = arith.subf %172, %171 : vector<9x64xf32>
    %cst_73 = arith.constant 0.000000e+00 : f32
    %174 = vector.broadcast %cst_73 : f32 to vector<9x64xf32>
    %175 = arith.cmpf oge, %146, %174 : vector<9x64xf32>
    %cst_74 = arith.constant 0.000000e+00 : f32
    %176 = vector.broadcast %cst_74 : f32 to vector<9x64xf32>
    %177 = arith.subf %176, %173 : vector<9x64xf32>
    %178 = arith.select %175, %173, %177 : vector<9x64xi1>, vector<9x64xf32>
    %cst_75 = arith.constant 1.000000e+00 : f32
    %179 = vector.broadcast %cst_75 : f32 to vector<9x64xf32>
    %180 = arith.addf %179, %178 : vector<9x64xf32>
    %181 = arith.mulf %144, %180 : vector<9x64xf32>
    %c0_76 = arith.constant 0 : index
    %c0_77 = arith.constant 0 : index
    %c0_78 = arith.constant 0 : index
    %182 = vector.load %arg12[%c0_76, %c0_77, %c0_78] : memref<2x64x32xf32, #tpu.memory_space<vmem>>, vector<1x64x32xf32>
    %183 = vector.shape_cast %182 : vector<1x64x32xf32> to vector<64x32xf32>
    %cst_79 = arith.constant dense<0.000000e+00> : vector<9x32xf32>
    %184 = tpu.matmul %181, %183, %cst_79 {dimension_numbers = #tpu.dot_dimension_numbers<[1], [0], [0], [1], [0, 0, 1, 1], [], []>} : vector<9x64xf32>, vector<64x32xf32>, vector<9x32xf32> -> vector<9x32xf32>
    %c0_80 = arith.constant 0 : index
    %c0_81 = arith.constant 0 : index
    %c0_82 = arith.constant 0 : index
    %185 = vector.load %arg13[%c0_80, %c0_81, %c0_82] : memref<2x1x32xf32, #tpu.memory_space<vmem>>, vector<1x1x32xf32>
    %186 = vector.shape_cast %185 : vector<1x1x32xf32> to vector<1x32xf32>
    %187 = vector.broadcast %186 : vector<1x32xf32> to vector<9x32xf32>
    %188 = arith.addf %184, %187 : vector<9x32xf32>
    %189 = arith.addf %188, %135 : vector<9x32xf32>
    %c0_83 = arith.constant 0 : index
    %c0_84 = arith.constant 0 : index
    %c0_85 = arith.constant 0 : index
    %190 = vector.load %arg14[%c0_83, %c0_84, %c0_85] : memref<2x1x32xf32, #tpu.memory_space<vmem>>, vector<1x1x32xf32>
    %191 = vector.shape_cast %190 : vector<1x1x32xf32> to vector<1x32xf32>
    %c0_86 = arith.constant 0 : index
    %c0_87 = arith.constant 0 : index
    %c0_88 = arith.constant 0 : index
    %192 = vector.load %arg15[%c0_86, %c0_87, %c0_88] : memref<2x1x32xf32, #tpu.memory_space<vmem>>, vector<1x1x32xf32>
    %193 = vector.shape_cast %192 : vector<1x1x32xf32> to vector<1x32xf32>
    %cst_89 = arith.constant dense<0.000000e+00> : vector<9xf32>
    %194 = vector.multi_reduction <add>, %189, %cst_89 [1] : vector<9x32xf32> to vector<9xf32>
    %195 = vector.shape_cast %194 : vector<9xf32> to vector<9x1xf32>
    %cst_90 = arith.constant 3.200000e+01 : f32
    %196 = vector.broadcast %cst_90 : f32 to vector<9x1xf32>
    %197 = arith.divf %195, %196 : vector<9x1xf32>
    %198 = vector.broadcast %197 : vector<9x1xf32> to vector<9x32xf32>
    %199 = arith.subf %189, %198 : vector<9x32xf32>
    %200 = arith.mulf %199, %199 : vector<9x32xf32>
    %cst_91 = arith.constant dense<0.000000e+00> : vector<9xf32>
    %201 = vector.multi_reduction <add>, %200, %cst_91 [1] : vector<9x32xf32> to vector<9xf32>
    %202 = vector.shape_cast %201 : vector<9xf32> to vector<9x1xf32>
    %cst_92 = arith.constant 3.200000e+01 : f32
    %203 = vector.broadcast %cst_92 : f32 to vector<9x1xf32>
    %204 = arith.divf %202, %203 : vector<9x1xf32>
    %205 = vector.broadcast %197 : vector<9x1xf32> to vector<9x32xf32>
    %206 = arith.subf %189, %205 : vector<9x32xf32>
    %cst_93 = arith.constant 9.99999996E-13 : f32
    %207 = vector.broadcast %cst_93 : f32 to vector<9x1xf32>
    %208 = arith.addf %204, %207 : vector<9x1xf32>
    %209 = math.rsqrt %208 : vector<9x1xf32>
    %210 = vector.broadcast %209 : vector<9x1xf32> to vector<9x32xf32>
    %211 = arith.mulf %206, %210 : vector<9x32xf32>
    %212 = vector.broadcast %191 : vector<1x32xf32> to vector<9x32xf32>
    %213 = arith.mulf %211, %212 : vector<9x32xf32>
    %214 = vector.broadcast %193 : vector<1x32xf32> to vector<9x32xf32>
    %215 = arith.addf %213, %214 : vector<9x32xf32>
    %c1 = arith.constant 1 : index
    %c0_94 = arith.constant 0 : index
    %c0_95 = arith.constant 0 : index
    %216 = vector.load %arg4[%c1, %c0_94, %c0_95] : memref<2x32x96xf32, #tpu.memory_space<vmem>>, vector<1x32x96xf32>
    %217 = vector.shape_cast %216 : vector<1x32x96xf32> to vector<32x96xf32>
    %cst_96 = arith.constant dense<0.000000e+00> : vector<9x96xf32>
    %218 = tpu.matmul %215, %217, %cst_96 {dimension_numbers = #tpu.dot_dimension_numbers<[1], [0], [0], [1], [0, 0, 1, 1], [], []>} : vector<9x32xf32>, vector<32x96xf32>, vector<9x96xf32> -> vector<9x96xf32>
    %c1_97 = arith.constant 1 : index
    %c0_98 = arith.constant 0 : index
    %c0_99 = arith.constant 0 : index
    %219 = vector.load %arg5[%c1_97, %c0_98, %c0_99] : memref<2x1x96xf32, #tpu.memory_space<vmem>>, vector<1x1x96xf32>
    %220 = vector.shape_cast %219 : vector<1x1x96xf32> to vector<1x96xf32>
    %221 = vector.broadcast %220 : vector<1x96xf32> to vector<9x96xf32>
    %222 = arith.addf %218, %221 : vector<9x96xf32>
    %223 = vector.extract_strided_slice %222 {offsets = [0, 0], sizes = [9, 8], strides = [1, 1]} : vector<9x96xf32> to vector<9x8xf32>
    %cst_100 = arith.constant 0.353553385 : f32
    %224 = vector.broadcast %cst_100 : f32 to vector<9x8xf32>
    %225 = arith.mulf %223, %224 : vector<9x8xf32>
    %226 = vector.extract_strided_slice %222 {offsets = [0, 32], sizes = [9, 8], strides = [1, 1]} : vector<9x96xf32> to vector<9x8xf32>
    %227 = vector.extract_strided_slice %222 {offsets = [0, 64], sizes = [9, 8], strides = [1, 1]} : vector<9x96xf32> to vector<9x8xf32>
    %cst_101 = arith.constant dense<0.000000e+00> : vector<9x9xf32>
    %228 = tpu.matmul %225, %226, %cst_101 {dimension_numbers = #tpu.dot_dimension_numbers<[1], [1], [0], [0], [0, 0, 1, 0], [], []>} : vector<9x8xf32>, vector<9x8xf32>, vector<9x9xf32> -> vector<9x9xf32>
    %cst_102 = arith.constant dense<0xFF800000> : vector<9xf32>
    %229 = vector.multi_reduction <maximumf>, %228, %cst_102 [1] : vector<9x9xf32> to vector<9xf32>
    %230 = vector.shape_cast %229 : vector<9xf32> to vector<9x1xf32>
    %231 = vector.broadcast %230 : vector<9x1xf32> to vector<9x9xf32>
    %232 = arith.subf %228, %231 : vector<9x9xf32>
    %233 = math.exp %232 : vector<9x9xf32>
    %cst_103 = arith.constant dense<0.000000e+00> : vector<9xf32>
    %234 = vector.multi_reduction <add>, %233, %cst_103 [1] : vector<9x9xf32> to vector<9xf32>
    %235 = vector.shape_cast %234 : vector<9xf32> to vector<9x1xf32>
    %236 = tpu.reciprocal %235 {approx = true} : vector<9x1xf32> -> vector<9x1xf32>
    %cst_104 = arith.constant dense<0.000000e+00> : vector<9x8xf32>
    %237 = tpu.matmul %233, %227, %cst_104 {dimension_numbers = #tpu.dot_dimension_numbers<[1], [0], [0], [1], [0, 0, 1, 1], [], []>} : vector<9x9xf32>, vector<9x8xf32>, vector<9x8xf32> -> vector<9x8xf32>
    %238 = vector.broadcast %236 : vector<9x1xf32> to vector<9x8xf32>
    %239 = arith.mulf %237, %238 : vector<9x8xf32>
    %240 = vector.extract_strided_slice %222 {offsets = [0, 8], sizes = [9, 8], strides = [1, 1]} : vector<9x96xf32> to vector<9x8xf32>
    %cst_105 = arith.constant 0.353553385 : f32
    %241 = vector.broadcast %cst_105 : f32 to vector<9x8xf32>
    %242 = arith.mulf %240, %241 : vector<9x8xf32>
    %243 = vector.extract_strided_slice %222 {offsets = [0, 40], sizes = [9, 8], strides = [1, 1]} : vector<9x96xf32> to vector<9x8xf32>
    %244 = vector.extract_strided_slice %222 {offsets = [0, 72], sizes = [9, 8], strides = [1, 1]} : vector<9x96xf32> to vector<9x8xf32>
    %cst_106 = arith.constant dense<0.000000e+00> : vector<9x9xf32>
    %245 = tpu.matmul %242, %243, %cst_106 {dimension_numbers = #tpu.dot_dimension_numbers<[1], [1], [0], [0], [0, 0, 1, 0], [], []>} : vector<9x8xf32>, vector<9x8xf32>, vector<9x9xf32> -> vector<9x9xf32>
    %cst_107 = arith.constant dense<0xFF800000> : vector<9xf32>
    %246 = vector.multi_reduction <maximumf>, %245, %cst_107 [1] : vector<9x9xf32> to vector<9xf32>
    %247 = vector.shape_cast %246 : vector<9xf32> to vector<9x1xf32>
    %248 = vector.broadcast %247 : vector<9x1xf32> to vector<9x9xf32>
    %249 = arith.subf %245, %248 : vector<9x9xf32>
    %250 = math.exp %249 : vector<9x9xf32>
    %cst_108 = arith.constant dense<0.000000e+00> : vector<9xf32>
    %251 = vector.multi_reduction <add>, %250, %cst_108 [1] : vector<9x9xf32> to vector<9xf32>
    %252 = vector.shape_cast %251 : vector<9xf32> to vector<9x1xf32>
    %253 = tpu.reciprocal %252 {approx = true} : vector<9x1xf32> -> vector<9x1xf32>
    %cst_109 = arith.constant dense<0.000000e+00> : vector<9x8xf32>
    %254 = tpu.matmul %250, %244, %cst_109 {dimension_numbers = #tpu.dot_dimension_numbers<[1], [0], [0], [1], [0, 0, 1, 1], [], []>} : vector<9x9xf32>, vector<9x8xf32>, vector<9x8xf32> -> vector<9x8xf32>
    %255 = vector.broadcast %253 : vector<9x1xf32> to vector<9x8xf32>
    %256 = arith.mulf %254, %255 : vector<9x8xf32>
    %257 = vector.extract_strided_slice %222 {offsets = [0, 16], sizes = [9, 8], strides = [1, 1]} : vector<9x96xf32> to vector<9x8xf32>
    %cst_110 = arith.constant 0.353553385 : f32
    %258 = vector.broadcast %cst_110 : f32 to vector<9x8xf32>
    %259 = arith.mulf %257, %258 : vector<9x8xf32>
    %260 = vector.extract_strided_slice %222 {offsets = [0, 48], sizes = [9, 8], strides = [1, 1]} : vector<9x96xf32> to vector<9x8xf32>
    %261 = vector.extract_strided_slice %222 {offsets = [0, 80], sizes = [9, 8], strides = [1, 1]} : vector<9x96xf32> to vector<9x8xf32>
    %cst_111 = arith.constant dense<0.000000e+00> : vector<9x9xf32>
    %262 = tpu.matmul %259, %260, %cst_111 {dimension_numbers = #tpu.dot_dimension_numbers<[1], [1], [0], [0], [0, 0, 1, 0], [], []>} : vector<9x8xf32>, vector<9x8xf32>, vector<9x9xf32> -> vector<9x9xf32>
    %cst_112 = arith.constant dense<0xFF800000> : vector<9xf32>
    %263 = vector.multi_reduction <maximumf>, %262, %cst_112 [1] : vector<9x9xf32> to vector<9xf32>
    %264 = vector.shape_cast %263 : vector<9xf32> to vector<9x1xf32>
    %265 = vector.broadcast %264 : vector<9x1xf32> to vector<9x9xf32>
    %266 = arith.subf %262, %265 : vector<9x9xf32>
    %267 = math.exp %266 : vector<9x9xf32>
    %cst_113 = arith.constant dense<0.000000e+00> : vector<9xf32>
    %268 = vector.multi_reduction <add>, %267, %cst_113 [1] : vector<9x9xf32> to vector<9xf32>
    %269 = vector.shape_cast %268 : vector<9xf32> to vector<9x1xf32>
    %270 = tpu.reciprocal %269 {approx = true} : vector<9x1xf32> -> vector<9x1xf32>
    %cst_114 = arith.constant dense<0.000000e+00> : vector<9x8xf32>
    %271 = tpu.matmul %267, %261, %cst_114 {dimension_numbers = #tpu.dot_dimension_numbers<[1], [0], [0], [1], [0, 0, 1, 1], [], []>} : vector<9x9xf32>, vector<9x8xf32>, vector<9x8xf32> -> vector<9x8xf32>
    %272 = vector.broadcast %270 : vector<9x1xf32> to vector<9x8xf32>
    %273 = arith.mulf %271, %272 : vector<9x8xf32>
    %274 = vector.extract_strided_slice %222 {offsets = [0, 24], sizes = [9, 8], strides = [1, 1]} : vector<9x96xf32> to vector<9x8xf32>
    %cst_115 = arith.constant 0.353553385 : f32
    %275 = vector.broadcast %cst_115 : f32 to vector<9x8xf32>
    %276 = arith.mulf %274, %275 : vector<9x8xf32>
    %277 = vector.extract_strided_slice %222 {offsets = [0, 56], sizes = [9, 8], strides = [1, 1]} : vector<9x96xf32> to vector<9x8xf32>
    %278 = vector.extract_strided_slice %222 {offsets = [0, 88], sizes = [9, 8], strides = [1, 1]} : vector<9x96xf32> to vector<9x8xf32>
    %cst_116 = arith.constant dense<0.000000e+00> : vector<9x9xf32>
    %279 = tpu.matmul %276, %277, %cst_116 {dimension_numbers = #tpu.dot_dimension_numbers<[1], [1], [0], [0], [0, 0, 1, 0], [], []>} : vector<9x8xf32>, vector<9x8xf32>, vector<9x9xf32> -> vector<9x9xf32>
    %cst_117 = arith.constant dense<0xFF800000> : vector<9xf32>
    %280 = vector.multi_reduction <maximumf>, %279, %cst_117 [1] : vector<9x9xf32> to vector<9xf32>
    %281 = vector.shape_cast %280 : vector<9xf32> to vector<9x1xf32>
    %282 = vector.broadcast %281 : vector<9x1xf32> to vector<9x9xf32>
    %283 = arith.subf %279, %282 : vector<9x9xf32>
    %284 = math.exp %283 : vector<9x9xf32>
    %cst_118 = arith.constant dense<0.000000e+00> : vector<9xf32>
    %285 = vector.multi_reduction <add>, %284, %cst_118 [1] : vector<9x9xf32> to vector<9xf32>
    %286 = vector.shape_cast %285 : vector<9xf32> to vector<9x1xf32>
    %287 = tpu.reciprocal %286 {approx = true} : vector<9x1xf32> -> vector<9x1xf32>
    %cst_119 = arith.constant dense<0.000000e+00> : vector<9x8xf32>
    %288 = tpu.matmul %284, %278, %cst_119 {dimension_numbers = #tpu.dot_dimension_numbers<[1], [0], [0], [1], [0, 0, 1, 1], [], []>} : vector<9x9xf32>, vector<9x8xf32>, vector<9x8xf32> -> vector<9x8xf32>
    %289 = vector.broadcast %287 : vector<9x1xf32> to vector<9x8xf32>
    %290 = arith.mulf %288, %289 : vector<9x8xf32>
    %291 = tpu.concatenate %239, %256, %273, %290 in 1 : vector<9x8xf32>, vector<9x8xf32>, vector<9x8xf32>, vector<9x8xf32> -> vector<9x32xf32>
    %c1_120 = arith.constant 1 : index
    %c0_121 = arith.constant 0 : index
    %c0_122 = arith.constant 0 : index
    %292 = vector.load %arg6[%c1_120, %c0_121, %c0_122] : memref<2x32x32xf32, #tpu.memory_space<vmem>>, vector<1x32x32xf32>
    %293 = vector.shape_cast %292 : vector<1x32x32xf32> to vector<32x32xf32>
    %cst_123 = arith.constant dense<0.000000e+00> : vector<9x32xf32>
    %294 = tpu.matmul %291, %293, %cst_123 {dimension_numbers = #tpu.dot_dimension_numbers<[1], [0], [0], [1], [0, 0, 1, 1], [], []>} : vector<9x32xf32>, vector<32x32xf32>, vector<9x32xf32> -> vector<9x32xf32>
    %c1_124 = arith.constant 1 : index
    %c0_125 = arith.constant 0 : index
    %c0_126 = arith.constant 0 : index
    %295 = vector.load %arg7[%c1_124, %c0_125, %c0_126] : memref<2x1x32xf32, #tpu.memory_space<vmem>>, vector<1x1x32xf32>
    %296 = vector.shape_cast %295 : vector<1x1x32xf32> to vector<1x32xf32>
    %297 = vector.broadcast %296 : vector<1x32xf32> to vector<9x32xf32>
    %298 = arith.addf %294, %297 : vector<9x32xf32>
    %299 = arith.addf %298, %215 : vector<9x32xf32>
    %c1_127 = arith.constant 1 : index
    %c0_128 = arith.constant 0 : index
    %c0_129 = arith.constant 0 : index
    %300 = vector.load %arg8[%c1_127, %c0_128, %c0_129] : memref<2x1x32xf32, #tpu.memory_space<vmem>>, vector<1x1x32xf32>
    %301 = vector.shape_cast %300 : vector<1x1x32xf32> to vector<1x32xf32>
    %c1_130 = arith.constant 1 : index
    %c0_131 = arith.constant 0 : index
    %c0_132 = arith.constant 0 : index
    %302 = vector.load %arg9[%c1_130, %c0_131, %c0_132] : memref<2x1x32xf32, #tpu.memory_space<vmem>>, vector<1x1x32xf32>
    %303 = vector.shape_cast %302 : vector<1x1x32xf32> to vector<1x32xf32>
    %cst_133 = arith.constant dense<0.000000e+00> : vector<9xf32>
    %304 = vector.multi_reduction <add>, %299, %cst_133 [1] : vector<9x32xf32> to vector<9xf32>
    %305 = vector.shape_cast %304 : vector<9xf32> to vector<9x1xf32>
    %cst_134 = arith.constant 3.200000e+01 : f32
    %306 = vector.broadcast %cst_134 : f32 to vector<9x1xf32>
    %307 = arith.divf %305, %306 : vector<9x1xf32>
    %308 = vector.broadcast %307 : vector<9x1xf32> to vector<9x32xf32>
    %309 = arith.subf %299, %308 : vector<9x32xf32>
    %310 = arith.mulf %309, %309 : vector<9x32xf32>
    %cst_135 = arith.constant dense<0.000000e+00> : vector<9xf32>
    %311 = vector.multi_reduction <add>, %310, %cst_135 [1] : vector<9x32xf32> to vector<9xf32>
    %312 = vector.shape_cast %311 : vector<9xf32> to vector<9x1xf32>
    %cst_136 = arith.constant 3.200000e+01 : f32
    %313 = vector.broadcast %cst_136 : f32 to vector<9x1xf32>
    %314 = arith.divf %312, %313 : vector<9x1xf32>
    %315 = vector.broadcast %307 : vector<9x1xf32> to vector<9x32xf32>
    %316 = arith.subf %299, %315 : vector<9x32xf32>
    %cst_137 = arith.constant 9.99999996E-13 : f32
    %317 = vector.broadcast %cst_137 : f32 to vector<9x1xf32>
    %318 = arith.addf %314, %317 : vector<9x1xf32>
    %319 = math.rsqrt %318 : vector<9x1xf32>
    %320 = vector.broadcast %319 : vector<9x1xf32> to vector<9x32xf32>
    %321 = arith.mulf %316, %320 : vector<9x32xf32>
    %322 = vector.broadcast %301 : vector<1x32xf32> to vector<9x32xf32>
    %323 = arith.mulf %321, %322 : vector<9x32xf32>
    %324 = vector.broadcast %303 : vector<1x32xf32> to vector<9x32xf32>
    %325 = arith.addf %323, %324 : vector<9x32xf32>
    %c1_138 = arith.constant 1 : index
    %c0_139 = arith.constant 0 : index
    %c0_140 = arith.constant 0 : index
    %326 = vector.load %arg10[%c1_138, %c0_139, %c0_140] : memref<2x32x64xf32, #tpu.memory_space<vmem>>, vector<1x32x64xf32>
    %327 = vector.shape_cast %326 : vector<1x32x64xf32> to vector<32x64xf32>
    %cst_141 = arith.constant dense<0.000000e+00> : vector<9x64xf32>
    %328 = tpu.matmul %325, %327, %cst_141 {dimension_numbers = #tpu.dot_dimension_numbers<[1], [0], [0], [1], [0, 0, 1, 1], [], []>} : vector<9x32xf32>, vector<32x64xf32>, vector<9x64xf32> -> vector<9x64xf32>
    %c1_142 = arith.constant 1 : index
    %c0_143 = arith.constant 0 : index
    %c0_144 = arith.constant 0 : index
    %329 = vector.load %arg11[%c1_142, %c0_143, %c0_144] : memref<2x1x64xf32, #tpu.memory_space<vmem>>, vector<1x1x64xf32>
    %330 = vector.shape_cast %329 : vector<1x1x64xf32> to vector<1x64xf32>
    %331 = vector.broadcast %330 : vector<1x64xf32> to vector<9x64xf32>
    %332 = arith.addf %328, %331 : vector<9x64xf32>
    %cst_145 = arith.constant 5.000000e-01 : f32
    %333 = vector.broadcast %cst_145 : f32 to vector<9x64xf32>
    %334 = arith.mulf %333, %332 : vector<9x64xf32>
    %cst_146 = arith.constant 0.707106769 : f32
    %335 = vector.broadcast %cst_146 : f32 to vector<9x64xf32>
    %336 = arith.mulf %332, %335 : vector<9x64xf32>
    %337 = math.absf %336 : vector<9x64xf32>
    %cst_147 = arith.constant 0.327591091 : f32
    %338 = vector.broadcast %cst_147 : f32 to vector<9x64xf32>
    %339 = arith.mulf %338, %337 : vector<9x64xf32>
    %cst_148 = arith.constant 1.000000e+00 : f32
    %340 = vector.broadcast %cst_148 : f32 to vector<9x64xf32>
    %341 = arith.addf %340, %339 : vector<9x64xf32>
    %342 = tpu.reciprocal %341 {approx = true} : vector<9x64xf32> -> vector<9x64xf32>
    %cst_149 = arith.constant 1.06140542 : f32
    %343 = vector.broadcast %cst_149 : f32 to vector<9x64xf32>
    %344 = arith.mulf %343, %342 : vector<9x64xf32>
    %cst_150 = arith.constant -1.45315206 : f32
    %345 = vector.broadcast %cst_150 : f32 to vector<9x64xf32>
    %346 = arith.addf %344, %345 : vector<9x64xf32>
    %347 = arith.mulf %346, %342 : vector<9x64xf32>
    %cst_151 = arith.constant 1.42141378 : f32
    %348 = vector.broadcast %cst_151 : f32 to vector<9x64xf32>
    %349 = arith.addf %347, %348 : vector<9x64xf32>
    %350 = arith.mulf %349, %342 : vector<9x64xf32>
    %cst_152 = arith.constant -0.284496725 : f32
    %351 = vector.broadcast %cst_152 : f32 to vector<9x64xf32>
    %352 = arith.addf %350, %351 : vector<9x64xf32>
    %353 = arith.mulf %352, %342 : vector<9x64xf32>
    %cst_153 = arith.constant 0.254829586 : f32
    %354 = vector.broadcast %cst_153 : f32 to vector<9x64xf32>
    %355 = arith.addf %353, %354 : vector<9x64xf32>
    %356 = arith.mulf %355, %342 : vector<9x64xf32>
    %cst_154 = arith.constant 0.000000e+00 : f32
    %357 = vector.broadcast %cst_154 : f32 to vector<9x64xf32>
    %358 = arith.subf %357, %337 : vector<9x64xf32>
    %359 = arith.mulf %358, %337 : vector<9x64xf32>
    %360 = math.exp %359 : vector<9x64xf32>
    %361 = arith.mulf %356, %360 : vector<9x64xf32>
    %cst_155 = arith.constant 1.000000e+00 : f32
    %362 = vector.broadcast %cst_155 : f32 to vector<9x64xf32>
    %363 = arith.subf %362, %361 : vector<9x64xf32>
    %cst_156 = arith.constant 0.000000e+00 : f32
    %364 = vector.broadcast %cst_156 : f32 to vector<9x64xf32>
    %365 = arith.cmpf oge, %336, %364 : vector<9x64xf32>
    %cst_157 = arith.constant 0.000000e+00 : f32
    %366 = vector.broadcast %cst_157 : f32 to vector<9x64xf32>
    %367 = arith.subf %366, %363 : vector<9x64xf32>
    %368 = arith.select %365, %363, %367 : vector<9x64xi1>, vector<9x64xf32>
    %cst_158 = arith.constant 1.000000e+00 : f32
    %369 = vector.broadcast %cst_158 : f32 to vector<9x64xf32>
    %370 = arith.addf %369, %368 : vector<9x64xf32>
    %371 = arith.mulf %334, %370 : vector<9x64xf32>
    %c1_159 = arith.constant 1 : index
    %c0_160 = arith.constant 0 : index
    %c0_161 = arith.constant 0 : index
    %372 = vector.load %arg12[%c1_159, %c0_160, %c0_161] : memref<2x64x32xf32, #tpu.memory_space<vmem>>, vector<1x64x32xf32>
    %373 = vector.shape_cast %372 : vector<1x64x32xf32> to vector<64x32xf32>
    %cst_162 = arith.constant dense<0.000000e+00> : vector<9x32xf32>
    %374 = tpu.matmul %371, %373, %cst_162 {dimension_numbers = #tpu.dot_dimension_numbers<[1], [0], [0], [1], [0, 0, 1, 1], [], []>} : vector<9x64xf32>, vector<64x32xf32>, vector<9x32xf32> -> vector<9x32xf32>
    %c1_163 = arith.constant 1 : index
    %c0_164 = arith.constant 0 : index
    %c0_165 = arith.constant 0 : index
    %375 = vector.load %arg13[%c1_163, %c0_164, %c0_165] : memref<2x1x32xf32, #tpu.memory_space<vmem>>, vector<1x1x32xf32>
    %376 = vector.shape_cast %375 : vector<1x1x32xf32> to vector<1x32xf32>
    %377 = vector.broadcast %376 : vector<1x32xf32> to vector<9x32xf32>
    %378 = arith.addf %374, %377 : vector<9x32xf32>
    %379 = arith.addf %378, %325 : vector<9x32xf32>
    %c1_166 = arith.constant 1 : index
    %c0_167 = arith.constant 0 : index
    %c0_168 = arith.constant 0 : index
    %380 = vector.load %arg14[%c1_166, %c0_167, %c0_168] : memref<2x1x32xf32, #tpu.memory_space<vmem>>, vector<1x1x32xf32>
    %381 = vector.shape_cast %380 : vector<1x1x32xf32> to vector<1x32xf32>
    %c1_169 = arith.constant 1 : index
    %c0_170 = arith.constant 0 : index
    %c0_171 = arith.constant 0 : index
    %382 = vector.load %arg15[%c1_169, %c0_170, %c0_171] : memref<2x1x32xf32, #tpu.memory_space<vmem>>, vector<1x1x32xf32>
    %383 = vector.shape_cast %382 : vector<1x1x32xf32> to vector<1x32xf32>
    %cst_172 = arith.constant dense<0.000000e+00> : vector<9xf32>
    %384 = vector.multi_reduction <add>, %379, %cst_172 [1] : vector<9x32xf32> to vector<9xf32>
    %385 = vector.shape_cast %384 : vector<9xf32> to vector<9x1xf32>
    %cst_173 = arith.constant 3.200000e+01 : f32
    %386 = vector.broadcast %cst_173 : f32 to vector<9x1xf32>
    %387 = arith.divf %385, %386 : vector<9x1xf32>
    %388 = vector.broadcast %387 : vector<9x1xf32> to vector<9x32xf32>
    %389 = arith.subf %379, %388 : vector<9x32xf32>
    %390 = arith.mulf %389, %389 : vector<9x32xf32>
    %cst_174 = arith.constant dense<0.000000e+00> : vector<9xf32>
    %391 = vector.multi_reduction <add>, %390, %cst_174 [1] : vector<9x32xf32> to vector<9xf32>
    %392 = vector.shape_cast %391 : vector<9xf32> to vector<9x1xf32>
    %cst_175 = arith.constant 3.200000e+01 : f32
    %393 = vector.broadcast %cst_175 : f32 to vector<9x1xf32>
    %394 = arith.divf %392, %393 : vector<9x1xf32>
    %395 = vector.broadcast %387 : vector<9x1xf32> to vector<9x32xf32>
    %396 = arith.subf %379, %395 : vector<9x32xf32>
    %cst_176 = arith.constant 9.99999996E-13 : f32
    %397 = vector.broadcast %cst_176 : f32 to vector<9x1xf32>
    %398 = arith.addf %394, %397 : vector<9x1xf32>
    %399 = math.rsqrt %398 : vector<9x1xf32>
    %400 = vector.broadcast %399 : vector<9x1xf32> to vector<9x32xf32>
    %401 = arith.mulf %396, %400 : vector<9x32xf32>
    %402 = vector.broadcast %381 : vector<1x32xf32> to vector<9x32xf32>
    %403 = arith.mulf %401, %402 : vector<9x32xf32>
    %404 = vector.broadcast %383 : vector<1x32xf32> to vector<9x32xf32>
    %405 = arith.addf %403, %404 : vector<9x32xf32>
    %c0_177 = arith.constant 0 : index
    %c0_178 = arith.constant 0 : index
    %c0_179 = arith.constant 0 : index
    %406 = vector.load %arg16[%c0_177, %c0_178, %c0_179] : memref<1x9x32xf32, #tpu.memory_space<vmem>>, vector<1x9x32xf32>
    %407 = vector.shape_cast %406 : vector<1x9x32xf32> to vector<9x32xf32>
    %408 = vector.shape_cast %405 : vector<9x32xf32> to vector<1x9x32xf32>
    tpu.vector_store %arg16[%c0_177, %c0_178, %c0_179], %408 {strides = array<i32>} : memref<1x9x32xf32, #tpu.memory_space<vmem>>, vector<1x9x32xf32>,
    return
  }
  func.func @transform_0(%arg0: i32) -> (i32, i32, i32) {
    %c0_i32 = arith.constant 0 : i32
    %c0_i32_0 = arith.constant 0 : i32
    %c0_i32_1 = arith.constant 0 : i32
    return %arg0, %c0_i32, %c0_i32_0 : i32, i32, i32
  }
  func.func @transform_1(%arg0: i32) -> (i32, i32) {
    %c0_i32 = arith.constant 0 : i32
    %c0_i32_0 = arith.constant 0 : i32
    %c0_i32_1 = arith.constant 0 : i32
    return %c0_i32, %c0_i32_0 : i32, i32
  }
  func.func @transform_2(%arg0: i32) -> (i32, i32) {
    %c0_i32 = arith.constant 0 : i32
    %c0_i32_0 = arith.constant 0 : i32
    %c0_i32_1 = arith.constant 0 : i32
    return %c0_i32, %c0_i32_0 : i32, i32
  }
  func.func @transform_3(%arg0: i32) -> (i32, i32, i32) {
    %c0_i32 = arith.constant 0 : i32
    %c0_i32_0 = arith.constant 0 : i32
    %c0_i32_1 = arith.constant 0 : i32
    %c0_i32_2 = arith.constant 0 : i32
    return %c0_i32, %c0_i32_0, %c0_i32_1 : i32, i32, i32
  }
  func.func @transform_4(%arg0: i32) -> (i32, i32, i32) {
    %c0_i32 = arith.constant 0 : i32
    %c0_i32_0 = arith.constant 0 : i32
    %c0_i32_1 = arith.constant 0 : i32
    %c0_i32_2 = arith.constant 0 : i32
    return %c0_i32, %c0_i32_0, %c0_i32_1 : i32, i32, i32
  }
  func.func @transform_5(%arg0: i32) -> (i32, i32, i32) {
    %c0_i32 = arith.constant 0 : i32
    %c0_i32_0 = arith.constant 0 : i32
    %c0_i32_1 = arith.constant 0 : i32
    %c0_i32_2 = arith.constant 0 : i32
    return %c0_i32, %c0_i32_0, %c0_i32_1 : i32, i32, i32
  }
  func.func @transform_6(%arg0: i32) -> (i32, i32, i32) {
    %c0_i32 = arith.constant 0 : i32
    %c0_i32_0 = arith.constant 0 : i32
    %c0_i32_1 = arith.constant 0 : i32
    %c0_i32_2 = arith.constant 0 : i32
    return %c0_i32, %c0_i32_0, %c0_i32_1 : i32, i32, i32
  }
  func.func @transform_7(%arg0: i32) -> (i32, i32, i32) {
    %c0_i32 = arith.constant 0 : i32
    %c0_i32_0 = arith.constant 0 : i32
    %c0_i32_1 = arith.constant 0 : i32
    %c0_i32_2 = arith.constant 0 : i32
    return %c0_i32, %c0_i32_0, %c0_i32_1 : i32, i32, i32
  }
  func.func @transform_8(%arg0: i32) -> (i32, i32, i32) {
    %c0_i32 = arith.constant 0 : i32
    %c0_i32_0 = arith.constant 0 : i32
    %c0_i32_1 = arith.constant 0 : i32
    %c0_i32_2 = arith.constant 0 : i32
    return %c0_i32, %c0_i32_0, %c0_i32_1 : i32, i32, i32
  }
  func.func @transform_9(%arg0: i32) -> (i32, i32, i32) {
    %c0_i32 = arith.constant 0 : i32
    %c0_i32_0 = arith.constant 0 : i32
    %c0_i32_1 = arith.constant 0 : i32
    %c0_i32_2 = arith.constant 0 : i32
    return %c0_i32, %c0_i32_0, %c0_i32_1 : i32, i32, i32
  }
  func.func @transform_10(%arg0: i32) -> (i32, i32, i32) {
    %c0_i32 = arith.constant 0 : i32
    %c0_i32_0 = arith.constant 0 : i32
    %c0_i32_1 = arith.constant 0 : i32
    %c0_i32_2 = arith.constant 0 : i32
    return %c0_i32, %c0_i32_0, %c0_i32_1 : i32, i32, i32
  }
  func.func @transform_11(%arg0: i32) -> (i32, i32, i32) {
    %c0_i32 = arith.constant 0 : i32
    %c0_i32_0 = arith.constant 0 : i32
    %c0_i32_1 = arith.constant 0 : i32
    %c0_i32_2 = arith.constant 0 : i32
    return %c0_i32, %c0_i32_0, %c0_i32_1 : i32, i32, i32
  }
  func.func @transform_12(%arg0: i32) -> (i32, i32, i32) {
    %c0_i32 = arith.constant 0 : i32
    %c0_i32_0 = arith.constant 0 : i32
    %c0_i32_1 = arith.constant 0 : i32
    %c0_i32_2 = arith.constant 0 : i32
    return %c0_i32, %c0_i32_0, %c0_i32_1 : i32, i32, i32
  }
  func.func @transform_13(%arg0: i32) -> (i32, i32, i32) {
    %c0_i32 = arith.constant 0 : i32
    %c0_i32_0 = arith.constant 0 : i32
    %c0_i32_1 = arith.constant 0 : i32
    %c0_i32_2 = arith.constant 0 : i32
    return %c0_i32, %c0_i32_0, %c0_i32_1 : i32, i32, i32
  }
  func.func @transform_14(%arg0: i32) -> (i32, i32, i32) {
    %c0_i32 = arith.constant 0 : i32
    %c0_i32_0 = arith.constant 0 : i32
    %c0_i32_1 = arith.constant 0 : i32
    %c0_i32_2 = arith.constant 0 : i32
    return %c0_i32, %c0_i32_0, %c0_i32_1 : i32, i32, i32
  }
  func.func @transform_15(%arg0: i32) -> (i32, i32, i32) {
    %c0_i32 = arith.constant 0 : i32
    %c0_i32_0 = arith.constant 0 : i32
    %c0_i32_1 = arith.constant 0 : i32
    return %arg0, %c0_i32, %c0_i32_0 : i32, i32, i32
  }
}

</mosaic_0001>

<llo_original>
// kernel: bert_forward.1
$region0: #{bert_forward.1}
  #allocation0 [shape = 'u32[]', space=smem, size = 0x4, offset = 0x4, fixed_abs, tag = 'smem constant byte address 0x4 - core index']
  #allocation1 [shape = 'u32[144,128]{1,0:T(1,128)}', space=vmem, size = 0x12000, scoped, tag = 'internal scratch']
  %s0 = inlined_call_operand.vmem [shape: f32[2,9,32], index: 0, kind: input, shape index: {}]
  %s1 = inlined_call_operand.vmem [shape: f32[1,32], index: 1, kind: input, shape index: {}]
  %s2 = inlined_call_operand.vmem [shape: f32[1,32], index: 2, kind: input, shape index: {}]
  %s3 = inlined_call_operand.vmem [shape: f32[2,32,96], index: 3, kind: input, shape index: {}]
  %s4 = inlined_call_operand.vmem [shape: f32[2,1,96], index: 4, kind: input, shape index: {}]
  %s5 = inlined_call_operand.vmem [shape: f32[2,32,32], index: 5, kind: input, shape index: {}]
  %s6 = inlined_call_operand.vmem [shape: f32[2,1,32], index: 6, kind: input, shape index: {}]
  %s7 = inlined_call_operand.vmem [shape: f32[2,1,32], index: 7, kind: input, shape index: {}]
  %s8 = inlined_call_operand.vmem [shape: f32[2,1,32], index: 8, kind: input, shape index: {}]
  %s9 = inlined_call_operand.vmem [shape: f32[2,32,64], index: 9, kind: input, shape index: {}]
  %s10 = inlined_call_operand.vmem [shape: f32[2,1,64], index: 10, kind: input, shape index: {}]
  %s11 = inlined_call_operand.vmem [shape: f32[2,64,32], index: 11, kind: input, shape index: {}]
  %s12 = inlined_call_operand.vmem [shape: f32[2,1,32], index: 12, kind: input, shape index: {}]
  %s13 = inlined_call_operand.vmem [shape: f32[2,1,32], index: 13, kind: input, shape index: {}]
  %s14 = inlined_call_operand.vmem [shape: f32[2,1,32], index: 14, kind: input, shape index: {}]
  %s15 = inlined_call_operand.vmem [shape: f32[2,9,32], index: 15, kind: output, shape index: {}]
  %s16 = sld [smem:[#allocation0]]
  $region93: #{bert_forward.1} parent=0
    _
  %s18 = ssub.s32 1, %s16
  %s19 = scalar_select 0, %s18, %s16
  loop: start=0, step=1, limit=4
  $region2: #{bert_forward.1} parent=0 // loop_pre_header
    _
  $region3: #{bert_forward.1} parent=0 // loop_header
    %s21 = sphi 0, %s25
    %p22 = scmp.ge.s32.totalorder %s21, 4
    %s31 = sphi 0, %s33
    %s34 = sphi 0, %s31
    %s35 = sphi 0, %s34
    %s51 = sphi 0, %s35
    %s55 = sphi 0, %s55
    %s57 = sphi 0, %s55
    %s58 = sphi 0, %s57
    %s72 = sphi 0, %s58
    %s76 = sphi 0, %s76
    %s78 = sphi 0, %s76
    %s79 = sphi 0, %s78
    %s93 = sphi 0, %s79
    %s97 = sphi 0, %s97
    %s99 = sphi 0, %s97
    %s100 = sphi 0, %s99
    %s114 = sphi 0, %s100
    %s118 = sphi 0, %s118
    %s120 = sphi 0, %s118
    %s121 = sphi 0, %s120
    %s135 = sphi 0, %s121
    %s139 = sphi 0, %s139
    %s141 = sphi 0, %s139
    %s142 = sphi 0, %s141
    %s156 = sphi 0, %s142
    %s160 = sphi 0, %s160
    %s162 = sphi 0, %s160
    %s163 = sphi 0, %s162
    %s177 = sphi 0, %s163
    %s181 = sphi 0, %s181
    %s183 = sphi 0, %s181
    %s184 = sphi 0, %s183
    %s198 = sphi 0, %s184
    %s202 = sphi 0, %s202
    %s204 = sphi 0, %s202
    %s205 = sphi 0, %s204
    %s219 = sphi 0, %s205
    %s223 = sphi 0, %s223
    %s225 = sphi 0, %s223
    %s226 = sphi 0, %s225
    %s240 = sphi 0, %s226
    %s244 = sphi 0, %s244
    %s246 = sphi 0, %s244
    %s247 = sphi 0, %s246
    %s261 = sphi 0, %s247
    %s265 = sphi 0, %s265
    %s267 = sphi 0, %s265
    %s268 = sphi 0, %s267
    %s282 = sphi 0, %s268
    %s286 = sphi 0, %s286
    %s288 = sphi 0, %s286
    %s289 = sphi 0, %s288
    %s303 = sphi 0, %s289
    %s307 = sphi 0, %s307
    %s309 = sphi 0, %s307
    %s310 = sphi 0, %s309
    %s324 = sphi 0, %s310
    %s328 = sphi 0, %s328
    %s330 = sphi 0, %s328
    %s331 = sphi 0, %s330
    %s345 = sphi 0, %s331
    %s351 = sphi 0, %s353
    %s354 = sphi 0, %s351
    %s355 = sphi 0, %s354
    %s371 = sphi 0, %s355
  $region4: #{bert_forward.1} parent=0 // loop_header_branch
    %24 = sbr.rel (%p22) target = $region8
  $region5: #{bert_forward.1} parent=0 // loop_body
    %s26 = ssub.s32 %s21, 1
    %s27 = ssub.s32 %s21, 2
    %s28 = sadd.s32 %s21, 1
    %s29 = ssub.s32 %s21, %s28
    %p30 = scmp.eq.s32.totalorder %s29, 0
    %s32 = sadd.s32 %s31, 1
    %s33 = scalar_select %p30, %s31, %s32
    %p36 = pneg %p30
    %p37 = scmp.eq.s32.totalorder %s21, 1
    %p38 = por %p36, %p37
    %p39 = scmp.ne.s32.totalorder %s31, %s34
    %p40 = scmp.eq.s32.totalorder %s21, 0
    %p41 = por %p39, %p40
    %p42 = scmp.ne.s32.totalorder %s31, %s34
    %p43 = scmp.eq.s32.totalorder %s26, 1
    %p44 = por %p42, %p43
    %p45 = scmp.ne.s32.totalorder %s34, %s35
    %p46 = scmp.eq.s32.totalorder %s26, 0
    %p47 = por %p45, %p46
    %p48 = scmp.ne.s32.totalorder %s34, %s35
    %p49 = scmp.eq.s32.totalorder %s27, 1
    %p50 = por %p48, %p49
    %p52 = scmp.ne.s32.totalorder %s35, %s51
    %p53 = scmp.eq.s32.totalorder %s27, 0
    %p54 = por %p52, %p53
    %s56 = sadd.s32 %s55, 1
    %p59 = scmp.eq.s32.totalorder %s21, 1
    %p60 = scmp.ne.s32.totalorder %s55, %s57
    %p61 = scmp.eq.s32.totalorder %s21, 0
    %p62 = por %p60, %p61
    %p63 = scmp.ne.s32.totalorder %s55, %s57
    %p64 = scmp.eq.s32.totalorder %s26, 1
    %p65 = por %p63, %p64
    %p66 = scmp.ne.s32.totalorder %s57, %s58
    %p67 = scmp.eq.s32.totalorder %s26, 0
    %p68 = por %p66, %p67
    %p69 = scmp.ne.s32.totalorder %s57, %s58
    %p70 = scmp.eq.s32.totalorder %s27, 1
    %p71 = por %p69, %p70
    %p73 = scmp.ne.s32.totalorder %s58, %s72
    %p74 = scmp.eq.s32.totalorder %s27, 0
    %p75 = por %p73, %p74
    %s77 = sadd.s32 %s76, 1
    %p80 = scmp.eq.s32.totalorder %s21, 1
    %p81 = scmp.ne.s32.totalorder %s76, %s78
    %p82 = scmp.eq.s32.totalorder %s21, 0
    %p83 = por %p81, %p82
    %p84 = scmp.ne.s32.totalorder %s76, %s78
    %p85 = scmp.eq.s32.totalorder %s26, 1
    %p86 = por %p84, %p85
    %p87 = scmp.ne.s32.totalorder %s78, %s79
    %p88 = scmp.eq.s32.totalorder %s26, 0
    %p89 = por %p87, %p88
    %p90 = scmp.ne.s32.totalorder %s78, %s79
    %p91 = scmp.eq.s32.totalorder %s27, 1
    %p92 = por %p90, %p91
    %p94 = scmp.ne.s32.totalorder %s79, %s93
    %p95 = scmp.eq.s32.totalorder %s27, 0
    %p96 = por %p94, %p95
    %s98 = sadd.s32 %s97, 1
    %p101 = scmp.eq.s32.totalorder %s21, 1
    %p102 = scmp.ne.s32.totalorder %s97, %s99
    %p103 = scmp.eq.s32.totalorder %s21, 0
    %p104 = por %p102, %p103
    %p105 = scmp.ne.s32.totalorder %s97, %s99
    %p106 = scmp.eq.s32.totalorder %s26, 1
    %p107 = por %p105, %p106
    %p108 = scmp.ne.s32.totalorder %s99, %s100
    %p109 = scmp.eq.s32.totalorder %s26, 0
    %p110 = por %p108, %p109
    %p111 = scmp.ne.s32.totalorder %s99, %s100
    %p112 = scmp.eq.s32.totalorder %s27, 1
    %p113 = por %p111, %p112
    %p115 = scmp.ne.s32.totalorder %s100, %s114
    %p116 = scmp.eq.s32.totalorder %s27, 0
    %p117 = por %p115, %p116
    %s119 = sadd.s32 %s118, 1
    %p122 = scmp.eq.s32.totalorder %s21, 1
    %p123 = scmp.ne.s32.totalorder %s118, %s120
    %p124 = scmp.eq.s32.totalorder %s21, 0
    %p125 = por %p123, %p124
    %p126 = scmp.ne.s32.totalorder %s118, %s120
    %p127 = scmp.eq.s32.totalorder %s26, 1
    %p128 = por %p126, %p127
    %p129 = scmp.ne.s32.totalorder %s120, %s121
    %p130 = scmp.eq.s32.totalorder %s26, 0
    %p131 = por %p129, %p130
    %p132 = scmp.ne.s32.totalorder %s120, %s121
    %p133 = scmp.eq.s32.totalorder %s27, 1
    %p134 = por %p132, %p133
    %p136 = scmp.ne.s32.totalorder %s121, %s135
    %p137 = scmp.eq.s32.totalorder %s27, 0
    %p138 = por %p136, %p137
    %s140 = sadd.s32 %s139, 1
    %p143 = scmp.eq.s32.totalorder %s21, 1
    %p144 = scmp.ne.s32.totalorder %s139, %s141
    %p145 = scmp.eq.s32.totalorder %s21, 0
    %p146 = por %p144, %p145
    %p147 = scmp.ne.s32.totalorder %s139, %s141
    %p148 = scmp.eq.s32.totalorder %s26, 1
    %p149 = por %p147, %p148
    %p150 = scmp.ne.s32.totalorder %s141, %s142
    %p151 = scmp.eq.s32.totalorder %s26, 0
    %p152 = por %p150, %p151
    %p153 = scmp.ne.s32.totalorder %s141, %s142
    %p154 = scmp.eq.s32.totalorder %s27, 1
    %p155 = por %p153, %p154
    %p157 = scmp.ne.s32.totalorder %s142, %s156
    %p158 = scmp.eq.s32.totalorder %s27, 0
    %p159 = por %p157, %p158
    %s161 = sadd.s32 %s160, 1
    %p164 = scmp.eq.s32.totalorder %s21, 1
    %p165 = scmp.ne.s32.totalorder %s160, %s162
    %p166 = scmp.eq.s32.totalorder %s21, 0
    %p167 = por %p165, %p166
    %p168 = scmp.ne.s32.totalorder %s160, %s162
    %p169 = scmp.eq.s32.totalorder %s26, 1
    %p170 = por %p168, %p169
    %p171 = scmp.ne.s32.totalorder %s162, %s163
    %p172 = scmp.eq.s32.totalorder %s26, 0
    %p173 = por %p171, %p172
    %p174 = scmp.ne.s32.totalorder %s162, %s163
    %p175 = scmp.eq.s32.totalorder %s27, 1
    %p176 = por %p174, %p175
    %p178 = scmp.ne.s32.totalorder %s163, %s177
    %p179 = scmp.eq.s32.totalorder %s27, 0
    %p180 = por %p178, %p179
    %s182 = sadd.s32 %s181, 1
    %p185 = scmp.eq.s32.totalorder %s21, 1
    %p186 = scmp.ne.s32.totalorder %s181, %s183
    %p187 = scmp.eq.s32.totalorder %s21, 0
    %p188 = por %p186, %p187
    %p189 = scmp.ne.s32.totalorder %s181, %s183
    %p190 = scmp.eq.s32.totalorder %s26, 1
    %p191 = por %p189, %p190
    %p192 = scmp.ne.s32.totalorder %s183, %s184
    %p193 = scmp.eq.s32.totalorder %s26, 0
    %p194 = por %p192, %p193
    %p195 = scmp.ne.s32.totalorder %s183, %s184
    %p196 = scmp.eq.s32.totalorder %s27, 1
    %p197 = por %p195, %p196
    %p199 = scmp.ne.s32.totalorder %s184, %s198
    %p200 = scmp.eq.s32.totalorder %s27, 0
    %p201 = por %p199, %p200
    %s203 = sadd.s32 %s202, 1
    %p206 = scmp.eq.s32.totalorder %s21, 1
    %p207 = scmp.ne.s32.totalorder %s202, %s204
    %p208 = scmp.eq.s32.totalorder %s21, 0
    %p209 = por %p207, %p208
    %p210 = scmp.ne.s32.totalorder %s202, %s204
    %p211 = scmp.eq.s32.totalorder %s26, 1
    %p212 = por %p210, %p211
    %p213 = scmp.ne.s32.totalorder %s204, %s205
    %p214 = scmp.eq.s32.totalorder %s26, 0
    %p215 = por %p213, %p214
    %p216 = scmp.ne.s32.totalorder %s204, %s205
    %p217 = scmp.eq.s32.totalorder %s27, 1
    %p218 = por %p216, %p217
    %p220 = scmp.ne.s32.totalorder %s205, %s219
    %p221 = scmp.eq.s32.totalorder %s27, 0
    %p222 = por %p220, %p221
    %s224 = sadd.s32 %s223, 1
    %p227 = scmp.eq.s32.totalorder %s21, 1
    %p228 = scmp.ne.s32.totalorder %s223, %s225
    %p229 = scmp.eq.s32.totalorder %s21, 0
    %p230 = por %p228, %p229
    %p231 = scmp.ne.s32.totalorder %s223, %s225
    %p232 = scmp.eq.s32.totalorder %s26, 1
    %p233 = por %p231, %p232
    %p234 = scmp.ne.s32.totalorder %s225, %s226
    %p235 = scmp.eq.s32.totalorder %s26, 0
    %p236 = por %p234, %p235
    %p237 = scmp.ne.s32.totalorder %s225, %s226
    %p238 = scmp.eq.s32.totalorder %s27, 1
    %p239 = por %p237, %p238
    %p241 = scmp.ne.s32.totalorder %s226, %s240
    %p242 = scmp.eq.s32.totalorder %s27, 0
    %p243 = por %p241, %p242
    %s245 = sadd.s32 %s244, 1
    %p248 = scmp.eq.s32.totalorder %s21, 1
    %p249 = scmp.ne.s32.totalorder %s244, %s246
    %p250 = scmp.eq.s32.totalorder %s21, 0
    %p251 = por %p249, %p250
    %p252 = scmp.ne.s32.totalorder %s244, %s246
    %p253 = scmp.eq.s32.totalorder %s26, 1
    %p254 = por %p252, %p253
    %p255 = scmp.ne.s32.totalorder %s246, %s247
    %p256 = scmp.eq.s32.totalorder %s26, 0
    %p257 = por %p255, %p256
    %p258 = scmp.ne.s32.totalorder %s246, %s247
    %p259 = scmp.eq.s32.totalorder %s27, 1
    %p260 = por %p258, %p259
    %p262 = scmp.ne.s32.totalorder %s247, %s261
    %p263 = scmp.eq.s32.totalorder %s27, 0
    %p264 = por %p262, %p263
    %s266 = sadd.s32 %s265, 1
    %p269 = scmp.eq.s32.totalorder %s21, 1
    %p270 = scmp.ne.s32.totalorder %s265, %s267
    %p271 = scmp.eq.s32.totalorder %s21, 0
    %p272 = por %p270, %p271
    %p273 = scmp.ne.s32.totalorder %s265, %s267
    %p274 = scmp.eq.s32.totalorder %s26, 1
    %p275 = por %p273, %p274
    %p276 = scmp.ne.s32.totalorder %s267, %s268
    %p277 = scmp.eq.s32.totalorder %s26, 0
    %p278 = por %p276, %p277
    %p279 = scmp.ne.s32.totalorder %s267, %s268
    %p280 = scmp.eq.s32.totalorder %s27, 1
    %p281 = por %p279, %p280
    %p283 = scmp.ne.s32.totalorder %s268, %s282
    %p284 = scmp.eq.s32.totalorder %s27, 0
    %p285 = por %p283, %p284
    %s287 = sadd.s32 %s286, 1
    %p290 = scmp.eq.s32.totalorder %s21, 1
    %p291 = scmp.ne.s32.totalorder %s286, %s288
    %p292 = scmp.eq.s32.totalorder %s21, 0
    %p293 = por %p291, %p292
    %p294 = scmp.ne.s32.totalorder %s286, %s288
    %p295 = scmp.eq.s32.totalorder %s26, 1
    %p296 = por %p294, %p295
    %p297 = scmp.ne.s32.totalorder %s288, %s289
    %p298 = scmp.eq.s32.totalorder %s26, 0
    %p299 = por %p297, %p298
    %p300 = scmp.ne.s32.totalorder %s288, %s289
    %p301 = scmp.eq.s32.totalorder %s27, 1
    %p302 = por %p300, %p301
    %p304 = scmp.ne.s32.totalorder %s289, %s303
    %p305 = scmp.eq.s32.totalorder %s27, 0
    %p306 = por %p304, %p305
    %s308 = sadd.s32 %s307, 1
    %p311 = scmp.eq.s32.totalorder %s21, 1
    %p312 = scmp.ne.s32.totalorder %s307, %s309
    %p313 = scmp.eq.s32.totalorder %s21, 0
    %p314 = por %p312, %p313
    %p315 = scmp.ne.s32.totalorder %s307, %s309
    %p316 = scmp.eq.s32.totalorder %s26, 1
    %p317 = por %p315, %p316
    %p318 = scmp.ne.s32.totalorder %s309, %s310
    %p319 = scmp.eq.s32.totalorder %s26, 0
    %p320 = por %p318, %p319
    %p321 = scmp.ne.s32.totalorder %s309, %s310
    %p322 = scmp.eq.s32.totalorder %s27, 1
    %p323 = por %p321, %p322
    %p325 = scmp.ne.s32.totalorder %s310, %s324
    %p326 = scmp.eq.s32.totalorder %s27, 0
    %p327 = por %p325, %p326
    %s329 = sadd.s32 %s328, 1
    %p332 = scmp.eq.s32.totalorder %s21, 1
    %p333 = scmp.ne.s32.totalorder %s328, %s330
    %p334 = scmp.eq.s32.totalorder %s21, 0
    %p335 = por %p333, %p334
    %p336 = scmp.ne.s32.totalorder %s328, %s330
    %p337 = scmp.eq.s32.totalorder %s26, 1
    %p338 = por %p336, %p337
    %p339 = scmp.ne.s32.totalorder %s330, %s331
    %p340 = scmp.eq.s32.totalorder %s26, 0
    %p341 = por %p339, %p340
    %p342 = scmp.ne.s32.totalorder %s330, %s331
    %p343 = scmp.eq.s32.totalorder %s27, 1
    %p344 = por %p342, %p343
    %p346 = scmp.ne.s32.totalorder %s331, %s345
    %p347 = scmp.eq.s32.totalorder %s27, 0
    %p348 = por %p346, %p347
    %s349 = ssub.s32 %s21, %s28
    %p350 = scmp.eq.s32.totalorder %s349, 0
    %s352 = sadd.s32 %s351, 1
    %s353 = scalar_select %p350, %s351, %s352
    %p356 = pneg %p350
    %p357 = scmp.eq.s32.totalorder %s21, 1
    %p358 = por %p356, %p357
    %p359 = scmp.ne.s32.totalorder %s351, %s354
    %p360 = scmp.eq.s32.totalorder %s21, 0
    %p361 = por %p359, %p360
    %p362 = scmp.ne.s32.totalorder %s351, %s354
    %p363 = scmp.eq.s32.totalorder %s26, 1
    %p364 = por %p362, %p363
    %p365 = scmp.ne.s32.totalorder %s354, %s355
    %p366 = scmp.eq.s32.totalorder %s26, 0
    %p367 = por %p365, %p366
    %p368 = scmp.ne.s32.totalorder %s354, %s355
    %p369 = scmp.eq.s32.totalorder %s27, 1
    %p370 = por %p368, %p369
    %p372 = scmp.ne.s32.totalorder %s355, %s371
    %p373 = scmp.eq.s32.totalorder %s27, 0
    %p374 = por %p372, %p373
    %p375 = scmp.le.s32.totalorder 1, %s21
    %p376 = scmp.lt.s32.totalorder %s21, 3
    %p377 = pnand %p375, %p376
    %p378 = pneg %p377
    // Predicated region
    $region9: #{bert_forward.1} parent=5 // pred_check
      _
    $region10: #{bert_forward.1} parent=5 // pred_check_branch
      %380 = sbr.rel (%p377) target = $region12
    $region11: #{bert_forward.1} parent=5 // pred_region
      %s381 = ssub.s32 %s21, 1
      // Predicated region
      $region13: #{bert_forward.1} parent=11 // pred_check
        %p382 = pneg %p68
      $region14: #{bert_forward.1} parent=11 // pred_check_branch
        %384 = sbr.rel (%p382) target = $region16
      $region15: #{bert_forward.1} parent=11 // pred_region
        _
      $region16: #{bert_forward.1} parent=11 // pred_fallthru
        _
      // Predicated region
      $region17: #{bert_forward.1} parent=11 // pred_check
        %p385 = pneg %p89
      $region18: #{bert_forward.1} parent=11 // pred_check_branch
        %387 = sbr.rel (%p385) target = $region20
      $region19: #{bert_forward.1} parent=11 // pred_region
        _
      $region20: #{bert_forward.1} parent=11 // pred_fallthru
        _
      // Predicated region
      $region21: #{bert_forward.1} parent=11 // pred_check
        %p388 = pneg %p110
      $region22: #{bert_forward.1} parent=11 // pred_check_branch
        %390 = sbr.rel (%p388) target = $region24
      $region23: #{bert_forward.1} parent=11 // pred_region
        _
      $region24: #{bert_forward.1} parent=11 // pred_fallthru
        _
      // Predicated region
      $region25: #{bert_forward.1} parent=11 // pred_check
        %p391 = pneg %p131
      $region26: #{bert_forward.1} parent=11 // pred_check_branch
        %393 = sbr.rel (%p391) target = $region28
      $region27: #{bert_forward.1} parent=11 // pred_region
        _
      $region28: #{bert_forward.1} parent=11 // pred_fallthru
        _
      // Predicated region
      $region29: #{bert_forward.1} parent=11 // pred_check
        %p394 = pneg %p152
      $region30: #{bert_forward.1} parent=11 // pred_check_branch
        %396 = sbr.rel (%p394) target = $region32
      $region31: #{bert_forward.1} parent=11 // pred_region
        _
      $region32: #{bert_forward.1} parent=11 // pred_fallthru
        _
      // Predicated region
      $region33: #{bert_forward.1} parent=11 // pred_check
        %p397 = pneg %p173
      $region34: #{bert_forward.1} parent=11 // pred_check_branch
        %399 = sbr.rel (%p397) target = $region36
      $region35: #{bert_forward.1} parent=11 // pred_region
        _
      $region36: #{bert_forward.1} parent=11 // pred_fallthru
        _
      // Predicated region
      $region37: #{bert_forward.1} parent=11 // pred_check
        %p400 = pneg %p194
      $region38: #{bert_forward.1} parent=11 // pred_check_branch
        %402 = sbr.rel (%p400) target = $region40
      $region39: #{bert_forward.1} parent=11 // pred_region
        _
      $region40: #{bert_forward.1} parent=11 // pred_fallthru
        _
      // Predicated region
      $region41: #{bert_forward.1} parent=11 // pred_check
        %p403 = pneg %p215
      $region42: #{bert_forward.1} parent=11 // pred_check_branch
        %405 = sbr.rel (%p403) target = $region44
      $region43: #{bert_forward.1} parent=11 // pred_region
        _
      $region44: #{bert_forward.1} parent=11 // pred_fallthru
        _
      // Predicated region
      $region45: #{bert_forward.1} parent=11 // pred_check
        %p406 = pneg %p236
      $region46: #{bert_forward.1} parent=11 // pred_check_branch
        %408 = sbr.rel (%p406) target = $region48
      $region47: #{bert_forward.1} parent=11 // pred_region
        _
      $region48: #{bert_forward.1} parent=11 // pred_fallthru
        _
      // Predicated region
      $region49: #{bert_forward.1} parent=11 // pred_check
        %p409 = pneg %p257
      $region50: #{bert_forward.1} parent=11 // pred_check_branch
        %411 = sbr.rel (%p409) target = $region52
      $region51: #{bert_forward.1} parent=11 // pred_region
        _
      $region52: #{bert_forward.1} parent=11 // pred_fallthru
        _
      // Predicated region
      $region53: #{bert_forward.1} parent=11 // pred_check
        %p412 = pneg %p278
      $region54: #{bert_forward.1} parent=11 // pred_check_branch
        %414 = sbr.rel (%p412) target = $region56
      $region55: #{bert_forward.1} parent=11 // pred_region
        _
      $region56: #{bert_forward.1} parent=11 // pred_fallthru
        _
      // Predicated region
      $region57: #{bert_forward.1} parent=11 // pred_check
        %p415 = pneg %p299
      $region58: #{bert_forward.1} parent=11 // pred_check_branch
        %417 = sbr.rel (%p415) target = $region60
      $region59: #{bert_forward.1} parent=11 // pred_region
        _
      $region60: #{bert_forward.1} parent=11 // pred_fallthru
        _
      // Predicated region
      $region61: #{bert_forward.1} parent=11 // pred_check
        %p418 = pneg %p320
      $region62: #{bert_forward.1} parent=11 // pred_check_branch
        %420 = sbr.rel (%p418) target = $region64
      $region63: #{bert_forward.1} parent=11 // pred_region
        _
      $region64: #{bert_forward.1} parent=11 // pred_fallthru
        _
      // Predicated region
      $region65: #{bert_forward.1} parent=11 // pred_check
        %p421 = pneg %p341
      $region66: #{bert_forward.1} parent=11 // pred_check_branch
        %423 = sbr.rel (%p421) target = $region68
      $region67: #{bert_forward.1} parent=11 // pred_region
        _
      $region68: #{bert_forward.1} parent=11 // pred_fallthru
        _
    $region12: #{bert_forward.1} parent=5 // pred_fallthru
      _
    %p424 = scmp.lt.s32.totalorder %s21, 2
    // Predicated region
    $region69: #{bert_forward.1} parent=5 // pred_check
      %p425 = pneg %p424
    $region70: #{bert_forward.1} parent=5 // pred_check_branch
      %427 = sbr.rel (%p425) target = $region72
    $region71: #{bert_forward.1} parent=5 // pred_region
      // Predicated region
      $region73: #{bert_forward.1} parent=71 // pred_check
        %p428 = pneg %p41
      $region74: #{bert_forward.1} parent=71 // pred_check_branch
        %430 = sbr.rel (%p428) target = $region76
      $region75: #{bert_forward.1} parent=71 // pred_region
        %p431 = scmp.lt.s32.totalorder %s21, 1
        %s432 = scalar_select %p431, %s21, 1
        %s433 = smul.addr %s432, 2
        %s434 = smul.addr %s433, 8
        %s435 = scalar_lea.vmem %s0, %s434
      $region76: #{bert_forward.1} parent=71 // pred_fallthru
        _
    $region72: #{bert_forward.1} parent=5 // pred_fallthru
      _
    %p436 = scmp.le.s32.totalorder 1, %s21
    %p437 = scmp.lt.s32.totalorder %s21, 3
    %p438 = pnand %p436, %p437
    %p439 = pneg %p438
    // Predicated region
    $region77: #{bert_forward.1} parent=5 // pred_check
      _
    $region78: #{bert_forward.1} parent=5 // pred_check_branch
      %441 = sbr.rel (%p438) target = $region80
    $region79: #{bert_forward.1} parent=5 // pred_region
      %s442 = ssub.s32 %s21, 1
      %p443 = scmp.lt.s32.totalorder %s26, 1
      %s444 = scalar_select %p443, %s26, 1
      %s445 = smul.addr %s444, 2
      %s446 = smul.addr %s445, 8
      %s447 = scalar_lea.vmem %s0, %s446
      %p448 = pneg %p47
      %p449 = pneg %p44
      %p450 = pneg %p68
      %p451 = pneg %p65
      %p452 = pneg %p89
      %p453 = pneg %p86
      %p454 = pneg %p110
      %p455 = pneg %p107
      %p456 = pneg %p131
      %p457 = pneg %p128
      %p458 = pneg %p152
      %p459 = pneg %p149
      %p460 = pneg %p173
      %p461 = pneg %p170
      %p462 = pneg %p194
      %p463 = pneg %p191
      %p464 = pneg %p215
      %p465 = pneg %p212
      %p466 = pneg %p236
      %p467 = pneg %p233
      %p468 = pneg %p257
      %p469 = pneg %p254
      %p470 = pneg %p278
      %p471 = pneg %p275
      %p472 = pneg %p299
      %p473 = pneg %p296
      %p474 = pneg %p320
      %p475 = pneg %p317
      %p476 = pneg %p341
      %p477 = pneg %p338
      %p478 = pneg %p367
      %p479 = pneg %p364
      %p480 = scmp.lt.s32.totalorder %s26, 1
      %s481 = scalar_select %p480, %s26, 1
      %s482 = smul.addr %s481, 2
      %s483 = smul.addr %s482, 8
      %s484 = scalar_lea.vmem %s15, %s483
      %p485 = scmp.lt.s32.totalorder %s26, 1
      %s486 = scalar_select %p485, %s26, 1
      %s487 = smul.addr %s486, 2
      %s488 = smul.addr %s487, 8
      %s489 = scalar_lea.vmem %s0, %s488
      %p490 = scmp.lt.s32.totalorder %s26, 1
      %s491 = scalar_select %p490, %s26, 1
      %s492 = smul.addr %s491, 2
      %s493 = smul.addr %s492, 8
      %s494 = scalar_lea.vmem %s15, %s493
      %v495 = vld [vmem:[%s489] sm:$0xff]
      %v496 = vld [vmem:[%s489 + $0x8] sm:$0x1]
      %v497 = vld [vmem:[%s1] sm:$0x1]
      %v498 = vld [vmem:[%s2] sm:$0x1]
      %vm499 = vcmask 261120
      %v500 = vsel %vm499, %v495, 0.0
      %501 = vadd.xlane.f32.xlu0 %v500
      %v502 = vpop.xlane.xlu0 %501
      %vm503 = vcmask 253952
      %v504 = vsel %vm503, %v496, 0.0
      %505 = vadd.xlane.f32.xlu0 %v504
      %v506 = vpop.xlane.xlu0 %505
      %v507 = vrcp.pop 32.0
      %v508 = vmul.f32 %v502, %v507
      %v509 = vmul.f32 %v506, %v507
      %v510 = vsub.f32 %v495, %v508
      %v511 = vsub.f32 %v496, %v509
      %v512 = vmul.f32 %v510, %v510
      %v513 = vmul.f32 %v511, %v511
      %v514 = vsel %vm499, %v512, 0.0
      %515 = vadd.xlane.f32.xlu0 %v514
      %v516 = vpop.xlane.xlu0 %515
      %v517 = vsel %vm503, %v513, 0.0
      %518 = vadd.xlane.f32.xlu0 %v517
      %v519 = vpop.xlane.xlu0 %518
      %v520 = vmul.f32 %v516, %v507
      %v521 = vmul.f32 %v519, %v507
      %v522 = vadd.f32 %v520, 1e-12
      %v523 = vadd.f32 %v521, 1e-12
      %v524 = vrsqrt.pop %v522
      %v525 = vrsqrt.pop %v523
      %v526 = vmul.f32 %v510, %v524
      %v527 = vmul.f32 %v511, %v525
      %v529 = vlaneseq
      %v530 = vshrl.u32 %v529, 7
      %v531 = vsub.s32 0, %v530
      %v532 = vrot.slane %v497, %v531
      %v534 = vmul.f32 %v526, %v532
      %v535 = vmul.f32 %v527, %v532
      %v537 = vlaneseq
      %v538 = vshrl.u32 %v537, 7
      %v539 = vsub.s32 0, %v538
      %v540 = vrot.slane %v498, %v539
      %v542 = vadd.f32 %v534, %v540
      %v543 = vadd.f32 %v535, %v540
      %v544 = vld [vmem:[%s3] sm:$0xff]
      %v545 = vld [vmem:[%s3 + $0x8] sm:$0xff]
      %v546 = vld [vmem:[%s3 + $0x10] sm:$0xff]
      %v547 = vld [vmem:[%s3 + $0x18] sm:$0xff]
      %v548 = vld [vmem:[%s4] sm:$0x1]
      %v550 = vlaneseq
      %v551 = vshrl.u32 %v550, 7
      %v552 = vsub.s32 0, %v551
      %v553 = vrot.slane %v548, %v552
      %v556 = vsel %vm499, %v542, 0
      %v559 = vsel %vm499, %v543, 0
      %561 = vmatprep.subr.mxu0 0.0
      %562 = vmatpush1.msra.mxu0 %v544
      %563 = vmatprep.subr.mxu0 0.0
      %564 = vmatpush1.msra.mxu0 %v545
      %565 = vmatprep.subr.mxu0 0.0
      %566 = vmatpush1.msra.mxu0 %v546
      %567 = vmatprep.subr.mxu0 0.0
      %568 = vmatpush1.msra.mxu0 %v547
      %569 = vmatprep.subr.mxu0 0.0
      %570 = vmatpush1.msra.mxu0 0.0
      %571 = vmatprep.subr.mxu0 0.0
      %572 = vmatpush1.msra.mxu0 0.0
      %573 = vmatprep.subr.mxu0 0.0
      %574 = vmatpush1.msra.mxu0 0.0
      %575 = vmatprep.subr.mxu0 0.0
      %576 = vmatpush1.msra.mxu0 0.0
      %577 = vmatprep.subr.mxu0 0.0
      %578 = vmatpush1.msra.mxu0 0.0
      %579 = vmatprep.subr.mxu0 0.0
      %580 = vmatpush1.msra.mxu0 0.0
      %581 = vmatprep.subr.mxu0 0.0
      %582 = vmatpush1.msra.mxu0 0.0
      %583 = vmatprep.subr.mxu0 0.0
      %584 = vmatpush1.msra.mxu0 0.0
      %585 = vmatprep.subr.mxu0 0.0
      %586 = vmatpush1.msra.mxu0 0.0
      %587 = vmatprep.subr.mxu0 0.0
      %588 = vmatpush1.msra.mxu0 0.0
      %589 = vmatprep.subr.mxu0 0.0
      %590 = vmatpush1.msra.mxu0 0.0
      %591 = vmatprep.subr.mxu0 0.0
      %592 = vmatpush1.msra.mxu0 0.0
      %593 = vmatprep.subr.mxu0 0.0
      %594 = vmatpush1.msra.mxu0 0.0
      %595 = vmatprep.subr.mxu0 0.0
      %596 = vmatpush1.msra.mxu0 0.0
      %597 = vmatprep.subr.mxu0 0.0
      %598 = vmatpush1.msra.mxu0 0.0
      %599 = vmatprep.subr.mxu0 0.0
      %600 = vmatpush1.msra.mxu0 0.0
      %601 = vmatprep.subr.mxu0 0.0
      %602 = vmatpush1.msra.mxu0 0.0
      %603 = vmatprep.subr.mxu0 0.0
      %604 = vmatpush1.msra.mxu0 0.0
      %605 = vmatprep.subr.mxu0 0.0
      %606 = vmatpush1.msra.mxu0 0.0
      %607 = vmatprep.subr.mxu0 0.0
      %608 = vmatpush1.msra.mxu0 0.0
      %609 = vmatprep.subr.mxu0 0.0
      %610 = vmatpush1.msra.mxu0 0.0
      %611 = vmatprep.subr.mxu0 0.0
      %612 = vmatpush1.msra.mxu0 0.0
      %613 = vmatprep.subr.mxu0 0.0
      %614 = vmatpush1.msra.mxu0 0.0
      %615 = vmatprep.subr.mxu0 0.0
      %616 = vmatpush1.msra.mxu0 0.0
      %617 = vmatprep.subr.mxu0 0.0
      %618 = vmatpush1.msra.mxu0 0.0
      %619 = vmatprep.subr.mxu0 0.0
      %620 = vmatpush1.msra.mxu0 0.0
      %621 = vmatprep.subr.mxu0 0.0
      %622 = vmatpush1.msra.mxu0 0.0
      %623 = vmatprep.subr.mxu0 0.0
      %624 = vmatpush1.msra.mxu0 0.0
      %625 = vmatprep.mubr.f32.mxu0 0.0
      %626 = vmatmul.mubr.f32.gmra.mrb[0].mxu0 %v556
      %v627 = vpop.f32.mrb[0].mxu0
      %v628 = vadd.f32 %v553, %v627
      %v629 = vpop.f32.mrb[0].mxu0
      %630 = vmatprep.mubr.f32.mxu0 0.0
      %631 = vmatmul.mubr.f32.gmra.mrb[0].mxu0 %v559
      %v632 = vpop.f32.mrb[0].mxu0
      %v633 = vadd.f32 %v553, %v632
      %v634 = vpop.f32.mrb[0].mxu0
      %635 = vdwg.mxu0
      %v636 = vmul.f32 %v628, 0.35355338
      %v637 = vmul.f32 %v633, 0.35355338
      %640 = vrot.lane.b32.xlu0 %v628, 96
      %v641 = vpop.permute.xlu0 %640
      %642 = vrot.lane.b32.xlu0 %v633, 96
      %v643 = vpop.permute.xlu0 %642
      %vm644 = vcmask 64512
      %v646 = vsel %vm644, %v636, 0
      %v649 = vsel %vm644, %v637, 0
      %v651 = vsel %vm644, %v641, 0
      %v653 = vsel %vm644, %v643, 0
      %655 = vmatprep.subr.mxu0 0.0
      %656 = vmatpush1.xpose.msra.mxu0 %v651
      %657 = vmatprep.subr.mxu0 0.0
      %658 = vmatpush1.xpose.msra.mxu0 %v653
      %659 = vmatprep.subr.mxu0 0.0
      %660 = vmatpush1.xpose.msra.mxu0 0.0
      %661 = vmatprep.subr.mxu0 0.0
      %662 = vmatpush1.xpose.msra.mxu0 0.0
      %663 = vmatprep.subr.mxu0 0.0
      %664 = vmatpush1.xpose.msra.mxu0 0.0
      %665 = vmatprep.subr.mxu0 0.0
      %666 = vmatpush1.xpose.msra.mxu0 0.0
      %667 = vmatprep.subr.mxu0 0.0
      %668 = vmatpush1.xpose.msra.mxu0 0.0
      %669 = vmatprep.subr.mxu0 0.0
      %670 = vmatpush1.xpose.msra.mxu0 0.0
      %671 = vmatprep.subr.mxu0 0.0
      %672 = vmatpush1.xpose.msra.mxu0 0.0
      %673 = vmatprep.subr.mxu0 0.0
      %674 = vmatpush1.xpose.msra.mxu0 0.0
      %675 = vmatprep.subr.mxu0 0.0
      %676 = vmatpush1.xpose.msra.mxu0 0.0
      %677 = vmatprep.subr.mxu0 0.0
      %678 = vmatpush1.xpose.msra.mxu0 0.0
      %679 = vmatprep.subr.mxu0 0.0
      %680 = vmatpush1.xpose.msra.mxu0 0.0
      %681 = vmatprep.subr.mxu0 0.0
      %682 = vmatpush1.xpose.msra.mxu0 0.0
      %683 = vmatprep.subr.mxu0 0.0
      %684 = vmatpush1.xpose.msra.mxu0 0.0
      %685 = vmatprep.subr.mxu0 0.0
      %686 = vmatpush1.xpose.msra.mxu0 0.0
      %687 = vmatprep.subr.mxu0 0.0
      %688 = vmatpush1.xpose.msra.mxu0 0.0
      %689 = vmatprep.subr.mxu0 0.0
      %690 = vmatpush1.xpose.msra.mxu0 0.0
      %691 = vmatprep.subr.mxu0 0.0
      %692 = vmatpush1.xpose.msra.mxu0 0.0
      %693 = vmatprep.subr.mxu0 0.0
      %694 = vmatpush1.xpose.msra.mxu0 0.0
      %695 = vmatprep.subr.mxu0 0.0
      %696 = vmatpush1.xpose.msra.mxu0 0.0
      %697 = vmatprep.subr.mxu0 0.0
      %698 = vmatpush1.xpose.msra.mxu0 0.0
      %699 = vmatprep.subr.mxu0 0.0
      %700 = vmatpush1.xpose.msra.mxu0 0.0
      %701 = vmatprep.subr.mxu0 0.0
      %702 = vmatpush1.xpose.msra.mxu0 0.0
      %703 = vmatprep.subr.mxu0 0.0
      %704 = vmatpush1.xpose.msra.mxu0 0.0
      %705 = vmatprep.subr.mxu0 0.0
      %706 = vmatpush1.xpose.msra.mxu0 0.0
      %707 = vmatprep.subr.mxu0 0.0
      %708 = vmatpush1.xpose.msra.mxu0 0.0
      %709 = vmatprep.subr.mxu0 0.0
      %710 = vmatpush1.xpose.msra.mxu0 0.0
      %711 = vmatprep.subr.mxu0 0.0
      %712 = vmatpush1.xpose.msra.mxu0 0.0
      %713 = vmatprep.subr.mxu0 0.0
      %714 = vmatpush1.xpose.msra.mxu0 0.0
      %715 = vmatprep.subr.mxu0 0.0
      %716 = vmatpush1.xpose.msra.mxu0 0.0
      %717 = vmatprep.subr.mxu0 0.0
      %718 = vmatpush1.xpose.msra.mxu0 0.0
      %719 = vmatprep.mubr.f32.mxu0 0.0
      %720 = vmatmul.mubr.f32.gmra.mrb[0].mxu0 %v646
      %v721 = vpop.f32.mrb[0].mxu0
      %v722 = vadd.f32 0.0, %v721
      %v723 = vpop.f32.mrb[0].mxu0
      %724 = vmatprep.mubr.f32.mxu0 0.0
      %725 = vmatmul.mubr.f32.gmra.mrb[0].mxu0 %v649
      %v726 = vpop.f32.mrb[0].mxu0
      %v727 = vadd.f32 0.0, %v726
      %v728 = vpop.f32.mrb[0].mxu0
      %729 = vdwg.mxu0
      %vm730 = vcmask 72704
      %v731 = vsel %vm730, %v722, -inf
      %732 = vmax.xlane.f32.xlu0 %v731
      %v733 = vpop.xlane.xlu0 %732
      %vm734 = vcmask 65536
      %v735 = vsel %vm734, %v727, -inf
      %736 = vmax.xlane.f32.xlu0 %v735
      %v737 = vpop.xlane.xlu0 %736
      %v738 = vsub.f32 %v722, %v733
      %v739 = vsub.f32 %v727, %v737
      %v740 = vmul.f32 %v738, 1.442695
      %v741 = vpow.pop %v740
      %v742 = vmul.f32 %v739, 1.442695
      %v743 = vpow.pop %v742
      %v744 = vsel %vm730, %v741, 0.0
      %745 = vadd.xlane.f32.xlu0 %v744
      %v746 = vpop.xlane.xlu0 %745
      %v747 = vsel %vm734, %v743, 0.0
      %748 = vadd.xlane.f32.xlu0 %v747
      %v749 = vpop.xlane.xlu0 %748
      %v750 = vrcp.pop %v746
      %v751 = vrcp.pop %v749
      %752 = vrot.lane.b32.xlu0 %v628, 64
      %v753 = vpop.permute.xlu0 %752
      %754 = vrot.lane.b32.xlu0 %v633, 64
      %v755 = vpop.permute.xlu0 %754
      %v758 = vsel %vm730, %v741, 0
      %v761 = vsel %vm730, %v743, 0
      %vm763 = vcmask 1040384
      %v764 = vsel %vm763, %v755, 0
      %766 = vmatprep.subr.mxu0 0.0
      %767 = vmatpush1.msra.mxu0 %v753
      %768 = vmatprep.subr.mxu0 0.0
      %769 = vmatpush1.msra.mxu0 %v764
      %770 = vmatprep.subr.mxu0 0.0
      %771 = vmatpush1.msra.mxu0 0.0
      %772 = vmatprep.subr.mxu0 0.0
      %773 = vmatpush1.msra.mxu0 0.0
      %774 = vmatprep.subr.mxu0 0.0
      %775 = vmatpush1.msra.mxu0 0.0
      %776 = vmatprep.subr.mxu0 0.0
      %777 = vmatpush1.msra.mxu0 0.0
      %778 = vmatprep.subr.mxu0 0.0
      %779 = vmatpush1.msra.mxu0 0.0
      %780 = vmatprep.subr.mxu0 0.0
      %781 = vmatpush1.msra.mxu0 0.0
      %782 = vmatprep.subr.mxu0 0.0
      %783 = vmatpush1.msra.mxu0 0.0
      %784 = vmatprep.subr.mxu0 0.0
      %785 = vmatpush1.msra.mxu0 0.0
      %786 = vmatprep.subr.mxu0 0.0
      %787 = vmatpush1.msra.mxu0 0.0
      %788 = vmatprep.subr.mxu0 0.0
      %789 = vmatpush1.msra.mxu0 0.0
      %790 = vmatprep.subr.mxu0 0.0
      %791 = vmatpush1.msra.mxu0 0.0
      %792 = vmatprep.subr.mxu0 0.0
      %793 = vmatpush1.msra.mxu0 0.0
      %794 = vmatprep.subr.mxu0 0.0
      %795 = vmatpush1.msra.mxu0 0.0
      %796 = vmatprep.subr.mxu0 0.0
      %797 = vmatpush1.msra.mxu0 0.0
      %798 = vmatprep.subr.mxu0 0.0
      %799 = vmatpush1.msra.mxu0 0.0
      %800 = vmatprep.subr.mxu0 0.0
      %801 = vmatpush1.msra.mxu0 0.0
      %802 = vmatprep.subr.mxu0 0.0
      %803 = vmatpush1.msra.mxu0 0.0
      %804 = vmatprep.subr.mxu0 0.0
      %805 = vmatpush1.msra.mxu0 0.0
      %806 = vmatprep.subr.mxu0 0.0
      %807 = vmatpush1.msra.mxu0 0.0
      %808 = vmatprep.subr.mxu0 0.0
      %809 = vmatpush1.msra.mxu0 0.0
      %810 = vmatprep.subr.mxu0 0.0
      %811 = vmatpush1.msra.mxu0 0.0
      %812 = vmatprep.subr.mxu0 0.0
      %813 = vmatpush1.msra.mxu0 0.0
      %814 = vmatprep.subr.mxu0 0.0
      %815 = vmatpush1.msra.mxu0 0.0
      %816 = vmatprep.subr.mxu0 0.0
      %817 = vmatpush1.msra.mxu0 0.0
      %818 = vmatprep.subr.mxu0 0.0
      %819 = vmatpush1.msra.mxu0 0.0
      %820 = vmatprep.subr.mxu0 0.0
      %821 = vmatpush1.msra.mxu0 0.0
      %822 = vmatprep.subr.mxu0 0.0
      %823 = vmatpush1.msra.mxu0 0.0
      %824 = vmatprep.subr.mxu0 0.0
      %825 = vmatpush1.msra.mxu0 0.0
      %826 = vmatprep.subr.mxu0 0.0
      %827 = vmatpush1.msra.mxu0 0.0
      %828 = vmatprep.subr.mxu0 0.0
      %829 = vmatpush1.msra.mxu0 0.0
      %830 = vmatprep.mubr.f32.mxu0 0.0
      %831 = vmatmul.mubr.f32.gmra.mrb[0].mxu0 %v758
      %v832 = vpop.f32.mrb[0].mxu0
      %v833 = vadd.f32 0.0, %v832
      %v834 = vpop.f32.mrb[0].mxu0
      %835 = vmatprep.mubr.f32.mxu0 0.0
      %836 = vmatmul.mubr.f32.gmra.mrb[0].mxu0 %v761
      %v837 = vpop.f32.mrb[0].mxu0
      %v838 = vadd.f32 0.0, %v837
      %v839 = vpop.f32.mrb[0].mxu0
      %840 = vdwg.mxu0
      %v841 = vmul.f32 %v833, %v750
      %v842 = vmul.f32 %v838, %v751
      %843 = vrot.lane.b32.xlu0 %v636, 120
      %v844 = vpop.permute.xlu0 %843
      %845 = vrot.lane.b32.xlu0 %v637, 120
      %v846 = vpop.permute.xlu0 %845
      %847 = vrot.lane.b32.xlu0 %v628, 88
      %v848 = vpop.permute.xlu0 %847
      %849 = vrot.lane.b32.xlu0 %v633, 88
      %v850 = vpop.permute.xlu0 %849
      %v851 = vsel %vm644, %v844, 0
      %v853 = vsel %vm644, %v846, 0
      %v855 = vsel %vm644, %v848, 0
      %v857 = vsel %vm644, %v850, 0
      %859 = vmatprep.subr.mxu0 0.0
      %860 = vmatpush1.xpose.msra.mxu0 %v855
      %861 = vmatprep.subr.mxu0 0.0
      %862 = vmatpush1.xpose.msra.mxu0 %v857
      %863 = vmatprep.subr.mxu0 0.0
      %864 = vmatpush1.xpose.msra.mxu0 0.0
      %865 = vmatprep.subr.mxu0 0.0
      %866 = vmatpush1.xpose.msra.mxu0 0.0
      %867 = vmatprep.subr.mxu0 0.0
      %868 = vmatpush1.xpose.msra.mxu0 0.0
      %869 = vmatprep.subr.mxu0 0.0
      %870 = vmatpush1.xpose.msra.mxu0 0.0
      %871 = vmatprep.subr.mxu0 0.0
      %872 = vmatpush1.xpose.msra.mxu0 0.0
      %873 = vmatprep.subr.mxu0 0.0
      %874 = vmatpush1.xpose.msra.mxu0 0.0
      %875 = vmatprep.subr.mxu0 0.0
      %876 = vmatpush1.xpose.msra.mxu0 0.0
      %877 = vmatprep.subr.mxu0 0.0
      %878 = vmatpush1.xpose.msra.mxu0 0.0
      %879 = vmatprep.subr.mxu0 0.0
      %880 = vmatpush1.xpose.msra.mxu0 0.0
      %881 = vmatprep.subr.mxu0 0.0
      %882 = vmatpush1.xpose.msra.mxu0 0.0
      %883 = vmatprep.subr.mxu0 0.0
      %884 = vmatpush1.xpose.msra.mxu0 0.0
      %885 = vmatprep.subr.mxu0 0.0
      %886 = vmatpush1.xpose.msra.mxu0 0.0
      %887 = vmatprep.subr.mxu0 0.0
      %888 = vmatpush1.xpose.msra.mxu0 0.0
      %889 = vmatprep.subr.mxu0 0.0
      %890 = vmatpush1.xpose.msra.mxu0 0.0
      %891 = vmatprep.subr.mxu0 0.0
      %892 = vmatpush1.xpose.msra.mxu0 0.0
      %893 = vmatprep.subr.mxu0 0.0
      %894 = vmatpush1.xpose.msra.mxu0 0.0
      %895 = vmatprep.subr.mxu0 0.0
      %896 = vmatpush1.xpose.msra.mxu0 0.0
      %897 = vmatprep.subr.mxu0 0.0
      %898 = vmatpush1.xpose.msra.mxu0 0.0
      %899 = vmatprep.subr.mxu0 0.0
      %900 = vmatpush1.xpose.msra.mxu0 0.0
      %901 = vmatprep.subr.mxu0 0.0
      %902 = vmatpush1.xpose.msra.mxu0 0.0
      %903 = vmatprep.subr.mxu0 0.0
      %904 = vmatpush1.xpose.msra.mxu0 0.0
      %905 = vmatprep.subr.mxu0 0.0
      %906 = vmatpush1.xpose.msra.mxu0 0.0
      %907 = vmatprep.subr.mxu0 0.0
      %908 = vmatpush1.xpose.msra.mxu0 0.0
      %909 = vmatprep.subr.mxu0 0.0
      %910 = vmatpush1.xpose.msra.mxu0 0.0
      %911 = vmatprep.subr.mxu0 0.0
      %912 = vmatpush1.xpose.msra.mxu0 0.0
      %913 = vmatprep.subr.mxu0 0.0
      %914 = vmatpush1.xpose.msra.mxu0 0.0
      %915 = vmatprep.subr.mxu0 0.0
      %916 = vmatpush1.xpose.msra.mxu0 0.0
      %917 = vmatprep.subr.mxu0 0.0
      %918 = vmatpush1.xpose.msra.mxu0 0.0
      %919 = vmatprep.subr.mxu0 0.0
      %920 = vmatpush1.xpose.msra.mxu0 0.0
      %921 = vmatprep.subr.mxu0 0.0
      %922 = vmatpush1.xpose.msra.mxu0 0.0
      %923 = vmatprep.mubr.f32.mxu0 0.0
      %924 = vmatmul.mubr.f32.gmra.mrb[0].mxu0 %v851
      %v925 = vpop.f32.mrb[0].mxu0
      %v926 = vadd.f32 0.0, %v925
      %v927 = vpop.f32.mrb[0].mxu0
      %928 = vmatprep.mubr.f32.mxu0 0.0
      %929 = vmatmul.mubr.f32.gmra.mrb[0].mxu0 %v853
      %v930 = vpop.f32.mrb[0].mxu0
      %v931 = vadd.f32 0.0, %v930
      %v932 = vpop.f32.mrb[0].mxu0
      %933 = vdwg.mxu0
      %v934 = vsel %vm730, %v926, -inf
      %935 = vmax.xlane.f32.xlu0 %v934
      %v936 = vpop.xlane.xlu0 %935
      %v937 = vsel %vm734, %v931, -inf
      %938 = vmax.xlane.f32.xlu0 %v937
      %v939 = vpop.xlane.xlu0 %938
      %v940 = vsub.f32 %v926, %v936
      %v941 = vsub.f32 %v931, %v939
      %v942 = vmul.f32 %v940, 1.442695
      %v943 = vpow.pop %v942
      %v944 = vmul.f32 %v941, 1.442695
      %v945 = vpow.pop %v944
      %v946 = vsel %vm730, %v943, 0.0
      %947 = vadd.xlane.f32.xlu0 %v946
      %v948 = vpop.xlane.xlu0 %947
      %v949 = vsel %vm734, %v945, 0.0
      %950 = vadd.xlane.f32.xlu0 %v949
      %v951 = vpop.xlane.xlu0 %950
      %v952 = vrcp.pop %v948
      %v953 = vrcp.pop %v951
      %954 = vrot.lane.b32.xlu0 %v628, 56
      %v955 = vpop.permute.xlu0 %954
      %956 = vrot.lane.b32.xlu0 %v633, 56
      %v957 = vpop.permute.xlu0 %956
      %v960 = vsel %vm730, %v943, 0
      %v963 = vsel %vm730, %v945, 0
      %v965 = vsel %vm763, %v957, 0
      %967 = vmatprep.subr.mxu0 0.0
      %968 = vmatpush1.msra.mxu0 %v955
      %969 = vmatprep.subr.mxu0 0.0
      %970 = vmatpush1.msra.mxu0 %v965
      %971 = vmatprep.subr.mxu0 0.0
      %972 = vmatpush1.msra.mxu0 0.0
      %973 = vmatprep.subr.mxu0 0.0
      %974 = vmatpush1.msra.mxu0 0.0
      %975 = vmatprep.subr.mxu0 0.0
      %976 = vmatpush1.msra.mxu0 0.0
      %977 = vmatprep.subr.mxu0 0.0
      %978 = vmatpush1.msra.mxu0 0.0
      %979 = vmatprep.subr.mxu0 0.0
      %980 = vmatpush1.msra.mxu0 0.0
      %981 = vmatprep.subr.mxu0 0.0
      %982 = vmatpush1.msra.mxu0 0.0
      %983 = vmatprep.subr.mxu0 0.0
      %984 = vmatpush1.msra.mxu0 0.0
      %985 = vmatprep.subr.mxu0 0.0
      %986 = vmatpush1.msra.mxu0 0.0
      %987 = vmatprep.subr.mxu0 0.0
      %988 = vmatpush1.msra.mxu0 0.0
      %989 = vmatprep.subr.mxu0 0.0
      %990 = vmatpush1.msra.mxu0 0.0
      %991 = vmatprep.subr.mxu0 0.0
      %992 = vmatpush1.msra.mxu0 0.0
      %993 = vmatprep.subr.mxu0 0.0
      %994 = vmatpush1.msra.mxu0 0.0
      %995 = vmatprep.subr.mxu0 0.0
      %996 = vmatpush1.msra.mxu0 0.0
      %997 = vmatprep.subr.mxu0 0.0
      %998 = vmatpush1.msra.mxu0 0.0
      %999 = vmatprep.subr.mxu0 0.0
      %1000 = vmatpush1.msra.mxu0 0.0
      %1001 = vmatprep.subr.mxu0 0.0
      %1002 = vmatpush1.msra.mxu0 0.0
      %1003 = vmatprep.subr.mxu0 0.0
      %1004 = vmatpush1.msra.mxu0 0.0
      %1005 = vmatprep.subr.mxu0 0.0
      %1006 = vmatpush1.msra.mxu0 0.0
      %1007 = vmatprep.subr.mxu0 0.0
      %1008 = vmatpush1.msra.mxu0 0.0
      %1009 = vmatprep.subr.mxu0 0.0
      %1010 = vmatpush1.msra.mxu0 0.0
      %1011 = vmatprep.subr.mxu0 0.0
      %1012 = vmatpush1.msra.mxu0 0.0
      %1013 = vmatprep.subr.mxu0 0.0
      %1014 = vmatpush1.msra.mxu0 0.0
      %1015 = vmatprep.subr.mxu0 0.0
      %1016 = vmatpush1.msra.mxu0 0.0
      %1017 = vmatprep.subr.mxu0 0.0
      %1018 = vmatpush1.msra.mxu0 0.0
      %1019 = vmatprep.subr.mxu0 0.0
      %1020 = vmatpush1.msra.mxu0 0.0
      %1021 = vmatprep.subr.mxu0 0.0
      %1022 = vmatpush1.msra.mxu0 0.0
      %1023 = vmatprep.subr.mxu0 0.0
      %1024 = vmatpush1.msra.mxu0 0.0
      %1025 = vmatprep.subr.mxu0 0.0
      %1026 = vmatpush1.msra.mxu0 0.0
      %1027 = vmatprep.subr.mxu0 0.0
      %1028 = vmatpush1.msra.mxu0 0.0
      %1029 = vmatprep.subr.mxu0 0.0
      %1030 = vmatpush1.msra.mxu0 0.0
      %1031 = vmatprep.mubr.f32.mxu0 0.0
      %1032 = vmatmul.mubr.f32.gmra.mrb[0].mxu0 %v960
      %v1033 = vpop.f32.mrb[0].mxu0
      %v1034 = vadd.f32 0.0, %v1033
      %v1035 = vpop.f32.mrb[0].mxu0
      %1036 = vmatprep.mubr.f32.mxu0 0.0
      %1037 = vmatmul.mubr.f32.gmra.mrb[0].mxu0 %v963
      %v1038 = vpop.f32.mrb[0].mxu0
      %v1039 = vadd.f32 0.0, %v1038
      %v1040 = vpop.f32.mrb[0].mxu0
      %1041 = vdwg.mxu0
      %v1042 = vmul.f32 %v1034, %v952
      %v1043 = vmul.f32 %v1039, %v953
      %1044 = vrot.lane.b32.xlu0 %v636, 112
      %v1045 = vpop.permute.xlu0 %1044
      %1046 = vrot.lane.b32.xlu0 %v637, 112
      %v1047 = vpop.permute.xlu0 %1046
      %1048 = vrot.lane.b32.xlu0 %v628, 80
      %v1049 = vpop.permute.xlu0 %1048
      %1050 = vrot.lane.b32.xlu0 %v633, 80
      %v1051 = vpop.permute.xlu0 %1050
      %v1052 = vsel %vm644, %v1045, 0
      %v1054 = vsel %vm644, %v1047, 0
      %v1056 = vsel %vm644, %v1049, 0
      %v1058 = vsel %vm644, %v1051, 0
      %1060 = vmatprep.subr.mxu0 0.0
      %1061 = vmatpush1.xpose.msra.mxu0 %v1056
      %1062 = vmatprep.subr.mxu0 0.0
      %1063 = vmatpush1.xpose.msra.mxu0 %v1058
      %1064 = vmatprep.subr.mxu0 0.0
      %1065 = vmatpush1.xpose.msra.mxu0 0.0
      %1066 = vmatprep.subr.mxu0 0.0
      %1067 = vmatpush1.xpose.msra.mxu0 0.0
      %1068 = vmatprep.subr.mxu0 0.0
      %1069 = vmatpush1.xpose.msra.mxu0 0.0
      %1070 = vmatprep.subr.mxu0 0.0
      %1071 = vmatpush1.xpose.msra.mxu0 0.0
      %1072 = vmatprep.subr.mxu0 0.0
      %1073 = vmatpush1.xpose.msra.mxu0 0.0
      %1074 = vmatprep.subr.mxu0 0.0
      %1075 = vmatpush1.xpose.msra.mxu0 0.0
      %1076 = vmatprep.subr.mxu0 0.0
      %1077 = vmatpush1.xpose.msra.mxu0 0.0
      %1078 = vmatprep.subr.mxu0 0.0
      %1079 = vmatpush1.xpose.msra.mxu0 0.0
      %1080 = vmatprep.subr.mxu0 0.0
      %1081 = vmatpush1.xpose.msra.mxu0 0.0
      %1082 = vmatprep.subr.mxu0 0.0
      %1083 = vmatpush1.xpose.msra.mxu0 0.0
      %1084 = vmatprep.subr.mxu0 0.0
      %1085 = vmatpush1.xpose.msra.mxu0 0.0
      %1086 = vmatprep.subr.mxu0 0.0
      %1087 = vmatpush1.xpose.msra.mxu0 0.0
      %1088 = vmatprep.subr.mxu0 0.0
      %1089 = vmatpush1.xpose.msra.mxu0 0.0
      %1090 = vmatprep.subr.mxu0 0.0
      %1091 = vmatpush1.xpose.msra.mxu0 0.0
      %1092 = vmatprep.subr.mxu0 0.0
      %1093 = vmatpush1.xpose.msra.mxu0 0.0
      %1094 = vmatprep.subr.mxu0 0.0
      %1095 = vmatpush1.xpose.msra.mxu0 0.0
      %1096 = vmatprep.subr.mxu0 0.0
      %1097 = vmatpush1.xpose.msra.mxu0 0.0
      %1098 = vmatprep.subr.mxu0 0.0
      %1099 = vmatpush1.xpose.msra.mxu0 0.0
      %1100 = vmatprep.subr.mxu0 0.0
      %1101 = vmatpush1.xpose.msra.mxu0 0.0
      %1102 = vmatprep.subr.mxu0 0.0
      %1103 = vmatpush1.xpose.msra.mxu0 0.0
      %1104 = vmatprep.subr.mxu0 0.0
      %1105 = vmatpush1.xpose.msra.mxu0 0.0
      %1106 = vmatprep.subr.mxu0 0.0
      %1107 = vmatpush1.xpose.msra.mxu0 0.0
      %1108 = vmatprep.subr.mxu0 0.0
      %1109 = vmatpush1.xpose.msra.mxu0 0.0
      %1110 = vmatprep.subr.mxu0 0.0
      %1111 = vmatpush1.xpose.msra.mxu0 0.0
      %1112 = vmatprep.subr.mxu0 0.0
      %1113 = vmatpush1.xpose.msra.mxu0 0.0
      %1114 = vmatprep.subr.mxu0 0.0
      %1115 = vmatpush1.xpose.msra.mxu0 0.0
      %1116 = vmatprep.subr.mxu0 0.0
      %1117 = vmatpush1.xpose.msra.mxu0 0.0
      %1118 = vmatprep.subr.mxu0 0.0
      %1119 = vmatpush1.xpose.msra.mxu0 0.0
      %1120 = vmatprep.subr.mxu0 0.0
      %1121 = vmatpush1.xpose.msra.mxu0 0.0
      %1122 = vmatprep.subr.mxu0 0.0
      %1123 = vmatpush1.xpose.msra.mxu0 0.0
      %1124 = vmatprep.mubr.f32.mxu0 0.0
      %1125 = vmatmul.mubr.f32.gmra.mrb[0].mxu0 %v1052
      %v1126 = vpop.f32.mrb[0].mxu0
      %v1127 = vadd.f32 0.0, %v1126
      %v1128 = vpop.f32.mrb[0].mxu0
      %1129 = vmatprep.mubr.f32.mxu0 0.0
      %1130 = vmatmul.mubr.f32.gmra.mrb[0].mxu0 %v1054
      %v1131 = vpop.f32.mrb[0].mxu0
      %v1132 = vadd.f32 0.0, %v1131
      %v1133 = vpop.f32.mrb[0].mxu0
      %1134 = vdwg.mxu0
      %v1135 = vsel %vm730, %v1127, -inf
      %1136 = vmax.xlane.f32.xlu0 %v1135
      %v1137 = vpop.xlane.xlu0 %1136
      %v1138 = vsel %vm734, %v1132, -inf
      %1139 = vmax.xlane.f32.xlu0 %v1138
      %v1140 = vpop.xlane.xlu0 %1139
      %v1141 = vsub.f32 %v1127, %v1137
      %v1142 = vsub.f32 %v1132, %v1140
      %v1143 = vmul.f32 %v1141, 1.442695
      %v1144 = vpow.pop %v1143
      %v1145 = vmul.f32 %v1142, 1.442695
      %v1146 = vpow.pop %v1145
      %v1147 = vsel %vm730, %v1144, 0.0
      %1148 = vadd.xlane.f32.xlu0 %v1147
      %v1149 = vpop.xlane.xlu0 %1148
      %v1150 = vsel %vm734, %v1146, 0.0
      %1151 = vadd.xlane.f32.xlu0 %v1150
      %v1152 = vpop.xlane.xlu0 %1151
      %v1153 = vrcp.pop %v1149
      %v1154 = vrcp.pop %v1152
      %1155 = vrot.lane.b32.xlu0 %v628, 48
      %v1156 = vpop.permute.xlu0 %1155
      %1157 = vrot.lane.b32.xlu0 %v633, 48
      %v1158 = vpop.permute.xlu0 %1157
      %v1161 = vsel %vm730, %v1144, 0
      %v1164 = vsel %vm730, %v1146, 0
      %v1166 = vsel %vm763, %v1158, 0
      %1168 = vmatprep.subr.mxu0 0.0
      %1169 = vmatpush1.msra.mxu0 %v1156
      %1170 = vmatprep.subr.mxu0 0.0
      %1171 = vmatpush1.msra.mxu0 %v1166
      %1172 = vmatprep.subr.mxu0 0.0
      %1173 = vmatpush1.msra.mxu0 0.0
      %1174 = vmatprep.subr.mxu0 0.0
      %1175 = vmatpush1.msra.mxu0 0.0
      %1176 = vmatprep.subr.mxu0 0.0
      %1177 = vmatpush1.msra.mxu0 0.0
      %1178 = vmatprep.subr.mxu0 0.0
      %1179 = vmatpush1.msra.mxu0 0.0
      %1180 = vmatprep.subr.mxu0 0.0
      %1181 = vmatpush1.msra.mxu0 0.0
      %1182 = vmatprep.subr.mxu0 0.0
      %1183 = vmatpush1.msra.mxu0 0.0
      %1184 = vmatprep.subr.mxu0 0.0
      %1185 = vmatpush1.msra.mxu0 0.0
      %1186 = vmatprep.subr.mxu0 0.0
      %1187 = vmatpush1.msra.mxu0 0.0
      %1188 = vmatprep.subr.mxu0 0.0
      %1189 = vmatpush1.msra.mxu0 0.0
      %1190 = vmatprep.subr.mxu0 0.0
      %1191 = vmatpush1.msra.mxu0 0.0
      %1192 = vmatprep.subr.mxu0 0.0
      %1193 = vmatpush1.msra.mxu0 0.0
      %1194 = vmatprep.subr.mxu0 0.0
      %1195 = vmatpush1.msra.mxu0 0.0
      %1196 = vmatprep.subr.mxu0 0.0
      %1197 = vmatpush1.msra.mxu0 0.0
      %1198 = vmatprep.subr.mxu0 0.0
      %1199 = vmatpush1.msra.mxu0 0.0
      %1200 = vmatprep.subr.mxu0 0.0
      %1201 = vmatpush1.msra.mxu0 0.0
      %1202 = vmatprep.subr.mxu0 0.0
      %1203 = vmatpush1.msra.mxu0 0.0
      %1204 = vmatprep.subr.mxu0 0.0
      %1205 = vmatpush1.msra.mxu0 0.0
      %1206 = vmatprep.subr.mxu0 0.0
      %1207 = vmatpush1.msra.mxu0 0.0
      %1208 = vmatprep.subr.mxu0 0.0
      %1209 = vmatpush1.msra.mxu0 0.0
      %1210 = vmatprep.subr.mxu0 0.0
      %1211 = vmatpush1.msra.mxu0 0.0
      %1212 = vmatprep.subr.mxu0 0.0
      %1213 = vmatpush1.msra.mxu0 0.0
      %1214 = vmatprep.subr.mxu0 0.0
      %1215 = vmatpush1.msra.mxu0 0.0
      %1216 = vmatprep.subr.mxu0 0.0
      %1217 = vmatpush1.msra.mxu0 0.0
      %1218 = vmatprep.subr.mxu0 0.0
      %1219 = vmatpush1.msra.mxu0 0.0
      %1220 = vmatprep.subr.mxu0 0.0
      %1221 = vmatpush1.msra.mxu0 0.0
      %1222 = vmatprep.subr.mxu0 0.0
      %1223 = vmatpush1.msra.mxu0 0.0
      %1224 = vmatprep.subr.mxu0 0.0
      %1225 = vmatpush1.msra.mxu0 0.0
      %1226 = vmatprep.subr.mxu0 0.0
      %1227 = vmatpush1.msra.mxu0 0.0
      %1228 = vmatprep.subr.mxu0 0.0
      %1229 = vmatpush1.msra.mxu0 0.0
      %1230 = vmatprep.subr.mxu0 0.0
      %1231 = vmatpush1.msra.mxu0 0.0
      %1232 = vmatprep.mubr.f32.mxu0 0.0
      %1233 = vmatmul.mubr.f32.gmra.mrb[0].mxu0 %v1161
      %v1234 = vpop.f32.mrb[0].mxu0
      %v1235 = vadd.f32 0.0, %v1234
      %v1236 = vpop.f32.mrb[0].mxu0
      %1237 = vmatprep.mubr.f32.mxu0 0.0
      %1238 = vmatmul.mubr.f32.gmra.mrb[0].mxu0 %v1164
      %v1239 = vpop.f32.mrb[0].mxu0
      %v1240 = vadd.f32 0.0, %v1239
      %v1241 = vpop.f32.mrb[0].mxu0
      %1242 = vdwg.mxu0
      %v1243 = vmul.f32 %v1235, %v1153
      %v1244 = vmul.f32 %v1240, %v1154
      %1245 = vrot.lane.b32.xlu0 %v636, 104
      %v1246 = vpop.permute.xlu0 %1245
      %1247 = vrot.lane.b32.xlu0 %v637, 104
      %v1248 = vpop.permute.xlu0 %1247
      %1249 = vrot.lane.b32.xlu0 %v628, 72
      %v1250 = vpop.permute.xlu0 %1249
      %1251 = vrot.lane.b32.xlu0 %v633, 72
      %v1252 = vpop.permute.xlu0 %1251
      %v1253 = vsel %vm644, %v1246, 0
      %v1255 = vsel %vm644, %v1248, 0
      %v1257 = vsel %vm644, %v1250, 0
      %v1259 = vsel %vm644, %v1252, 0
      %1261 = vmatprep.subr.mxu0 0.0
      %1262 = vmatpush1.xpose.msra.mxu0 %v1257
      %1263 = vmatprep.subr.mxu0 0.0
      %1264 = vmatpush1.xpose.msra.mxu0 %v1259
      %1265 = vmatprep.subr.mxu0 0.0
      %1266 = vmatpush1.xpose.msra.mxu0 0.0
      %1267 = vmatprep.subr.mxu0 0.0
      %1268 = vmatpush1.xpose.msra.mxu0 0.0
      %1269 = vmatprep.subr.mxu0 0.0
      %1270 = vmatpush1.xpose.msra.mxu0 0.0
      %1271 = vmatprep.subr.mxu0 0.0
      %1272 = vmatpush1.xpose.msra.mxu0 0.0
      %1273 = vmatprep.subr.mxu0 0.0
      %1274 = vmatpush1.xpose.msra.mxu0 0.0
      %1275 = vmatprep.subr.mxu0 0.0
      %1276 = vmatpush1.xpose.msra.mxu0 0.0
      %1277 = vmatprep.subr.mxu0 0.0
      %1278 = vmatpush1.xpose.msra.mxu0 0.0
      %1279 = vmatprep.subr.mxu0 0.0
      %1280 = vmatpush1.xpose.msra.mxu0 0.0
      %1281 = vmatprep.subr.mxu0 0.0
      %1282 = vmatpush1.xpose.msra.mxu0 0.0
      %1283 = vmatprep.subr.mxu0 0.0
      %1284 = vmatpush1.xpose.msra.mxu0 0.0
      %1285 = vmatprep.subr.mxu0 0.0
      %1286 = vmatpush1.xpose.msra.mxu0 0.0
      %1287 = vmatprep.subr.mxu0 0.0
      %1288 = vmatpush1.xpose.msra.mxu0 0.0
      %1289 = vmatprep.subr.mxu0 0.0
      %1290 = vmatpush1.xpose.msra.mxu0 0.0
      %1291 = vmatprep.subr.mxu0 0.0
      %1292 = vmatpush1.xpose.msra.mxu0 0.0
      %1293 = vmatprep.subr.mxu0 0.0
      %1294 = vmatpush1.xpose.msra.mxu0 0.0
      %1295 = vmatprep.subr.mxu0 0.0
      %1296 = vmatpush1.xpose.msra.mxu0 0.0
      %1297 = vmatprep.subr.mxu0 0.0
      %1298 = vmatpush1.xpose.msra.mxu0 0.0
      %1299 = vmatprep.subr.mxu0 0.0
      %1300 = vmatpush1.xpose.msra.mxu0 0.0
      %1301 = vmatprep.subr.mxu0 0.0
      %1302 = vmatpush1.xpose.msra.mxu0 0.0
      %1303 = vmatprep.subr.mxu0 0.0
      %1304 = vmatpush1.xpose.msra.mxu0 0.0
      %1305 = vmatprep.subr.mxu0 0.0
      %1306 = vmatpush1.xpose.msra.mxu0 0.0
      %1307 = vmatprep.subr.mxu0 0.0
      %1308 = vmatpush1.xpose.msra.mxu0 0.0
      %1309 = vmatprep.subr.mxu0 0.0
      %1310 = vmatpush1.xpose.msra.mxu0 0.0
      %1311 = vmatprep.subr.mxu0 0.0
      %1312 = vmatpush1.xpose.msra.mxu0 0.0
      %1313 = vmatprep.subr.mxu0 0.0
      %1314 = vmatpush1.xpose.msra.mxu0 0.0
      %1315 = vmatprep.subr.mxu0 0.0
      %1316 = vmatpush1.xpose.msra.mxu0 0.0
      %1317 = vmatprep.subr.mxu0 0.0
      %1318 = vmatpush1.xpose.msra.mxu0 0.0
      %1319 = vmatprep.subr.mxu0 0.0
      %1320 = vmatpush1.xpose.msra.mxu0 0.0
      %1321 = vmatprep.subr.mxu0 0.0
      %1322 = vmatpush1.xpose.msra.mxu0 0.0
      %1323 = vmatprep.subr.mxu0 0.0
      %1324 = vmatpush1.xpose.msra.mxu0 0.0
      %1325 = vmatprep.mubr.f32.mxu0 0.0
      %1326 = vmatmul.mubr.f32.gmra.mrb[0].mxu0 %v1253
      %v1327 = vpop.f32.mrb[0].mxu0
      %v1328 = vadd.f32 0.0, %v1327
      %v1329 = vpop.f32.mrb[0].mxu0
      %1330 = vmatprep.mubr.f32.mxu0 0.0
      %1331 = vmatmul.mubr.f32.gmra.mrb[0].mxu0 %v1255
      %v1332 = vpop.f32.mrb[0].mxu0
      %v1333 = vadd.f32 0.0, %v1332
      %v1334 = vpop.f32.mrb[0].mxu0
      %1335 = vdwg.mxu0
      %v1336 = vsel %vm730, %v1328, -inf
      %1337 = vmax.xlane.f32.xlu0 %v1336
      %v1338 = vpop.xlane.xlu0 %1337
      %v1339 = vsel %vm734, %v1333, -inf
      %1340 = vmax.xlane.f32.xlu0 %v1339
      %v1341 = vpop.xlane.xlu0 %1340
      %v1342 = vsub.f32 %v1328, %v1338
      %v1343 = vsub.f32 %v1333, %v1341
      %v1344 = vmul.f32 %v1342, 1.442695
      %v1345 = vpow.pop %v1344
      %v1346 = vmul.f32 %v1343, 1.442695
      %v1347 = vpow.pop %v1346
      %v1348 = vsel %vm730, %v1345, 0.0
      %1349 = vadd.xlane.f32.xlu0 %v1348
      %v1350 = vpop.xlane.xlu0 %1349
      %v1351 = vsel %vm734, %v1347, 0.0
      %1352 = vadd.xlane.f32.xlu0 %v1351
      %v1353 = vpop.xlane.xlu0 %1352
      %v1354 = vrcp.pop %v1350
      %v1355 = vrcp.pop %v1353
      %1356 = vrot.lane.b32.xlu0 %v628, 40
      %v1357 = vpop.permute.xlu0 %1356
      %1358 = vrot.lane.b32.xlu0 %v633, 40
      %v1359 = vpop.permute.xlu0 %1358
      %v1362 = vsel %vm730, %v1345, 0
      %v1365 = vsel %vm730, %v1347, 0
      %v1367 = vsel %vm763, %v1359, 0
      %1369 = vmatprep.subr.mxu0 0.0
      %1370 = vmatpush1.msra.mxu0 %v1357
      %1371 = vmatprep.subr.mxu0 0.0
      %1372 = vmatpush1.msra.mxu0 %v1367
      %1373 = vmatprep.subr.mxu0 0.0
      %1374 = vmatpush1.msra.mxu0 0.0
      %1375 = vmatprep.subr.mxu0 0.0
      %1376 = vmatpush1.msra.mxu0 0.0
      %1377 = vmatprep.subr.mxu0 0.0
      %1378 = vmatpush1.msra.mxu0 0.0
      %1379 = vmatprep.subr.mxu0 0.0
      %1380 = vmatpush1.msra.mxu0 0.0
      %1381 = vmatprep.subr.mxu0 0.0
      %1382 = vmatpush1.msra.mxu0 0.0
      %1383 = vmatprep.subr.mxu0 0.0
      %1384 = vmatpush1.msra.mxu0 0.0
      %1385 = vmatprep.subr.mxu0 0.0
      %1386 = vmatpush1.msra.mxu0 0.0
      %1387 = vmatprep.subr.mxu0 0.0
      %1388 = vmatpush1.msra.mxu0 0.0
      %1389 = vmatprep.subr.mxu0 0.0
      %1390 = vmatpush1.msra.mxu0 0.0
      %1391 = vmatprep.subr.mxu0 0.0
      %1392 = vmatpush1.msra.mxu0 0.0
      %1393 = vmatprep.subr.mxu0 0.0
      %1394 = vmatpush1.msra.mxu0 0.0
      %1395 = vmatprep.subr.mxu0 0.0
      %1396 = vmatpush1.msra.mxu0 0.0
      %1397 = vmatprep.subr.mxu0 0.0
      %1398 = vmatpush1.msra.mxu0 0.0
      %1399 = vmatprep.subr.mxu0 0.0
      %1400 = vmatpush1.msra.mxu0 0.0
      %1401 = vmatprep.subr.mxu0 0.0
      %1402 = vmatpush1.msra.mxu0 0.0
      %1403 = vmatprep.subr.mxu0 0.0
      %1404 = vmatpush1.msra.mxu0 0.0
      %1405 = vmatprep.subr.mxu0 0.0
      %1406 = vmatpush1.msra.mxu0 0.0
      %1407 = vmatprep.subr.mxu0 0.0
      %1408 = vmatpush1.msra.mxu0 0.0
      %1409 = vmatprep.subr.mxu0 0.0
      %1410 = vmatpush1.msra.mxu0 0.0
      %1411 = vmatprep.subr.mxu0 0.0
      %1412 = vmatpush1.msra.mxu0 0.0
      %1413 = vmatprep.subr.mxu0 0.0
      %1414 = vmatpush1.msra.mxu0 0.0
      %1415 = vmatprep.subr.mxu0 0.0
      %1416 = vmatpush1.msra.mxu0 0.0
      %1417 = vmatprep.subr.mxu0 0.0
      %1418 = vmatpush1.msra.mxu0 0.0
      %1419 = vmatprep.subr.mxu0 0.0
      %1420 = vmatpush1.msra.mxu0 0.0
      %1421 = vmatprep.subr.mxu0 0.0
      %1422 = vmatpush1.msra.mxu0 0.0
      %1423 = vmatprep.subr.mxu0 0.0
      %1424 = vmatpush1.msra.mxu0 0.0
      %1425 = vmatprep.subr.mxu0 0.0
      %1426 = vmatpush1.msra.mxu0 0.0
      %1427 = vmatprep.subr.mxu0 0.0
      %1428 = vmatpush1.msra.mxu0 0.0
      %1429 = vmatprep.subr.mxu0 0.0
      %1430 = vmatpush1.msra.mxu0 0.0
      %1431 = vmatprep.subr.mxu0 0.0
      %1432 = vmatpush1.msra.mxu0 0.0
      %1433 = vmatprep.mubr.f32.mxu0 0.0
      %1434 = vmatmul.mubr.f32.gmra.mrb[0].mxu0 %v1362
      %v1435 = vpop.f32.mrb[0].mxu0
      %v1436 = vadd.f32 0.0, %v1435
      %v1437 = vpop.f32.mrb[0].mxu0
      %1438 = vmatprep.mubr.f32.mxu0 0.0
      %1439 = vmatmul.mubr.f32.gmra.mrb[0].mxu0 %v1365
      %v1440 = vpop.f32.mrb[0].mxu0
      %v1441 = vadd.f32 0.0, %v1440
      %v1442 = vpop.f32.mrb[0].mxu0
      %1443 = vdwg.mxu0
      %v1444 = vmul.f32 %v1436, %v1354
      %v1445 = vmul.f32 %v1441, %v1355
      %1448 = vrot.lane.b32.xlu0 %v1042, 8
      %v1449 = vpop.permute.xlu0 %1448
      %1450 = vrot.lane.b32.xlu0 %v1043, 8
      %v1451 = vpop.permute.xlu0 %1450
      %1456 = vrot.lane.b32.xlu0 %v1243, 16
      %v1457 = vpop.permute.xlu0 %1456
      %1458 = vrot.lane.b32.xlu0 %v1244, 16
      %v1459 = vpop.permute.xlu0 %1458
      %1464 = vrot.lane.b32.xlu0 %v1444, 24
      %v1465 = vpop.permute.xlu0 %1464
      %1466 = vrot.lane.b32.xlu0 %v1445, 24
      %v1467 = vpop.permute.xlu0 %1466
      %v1470 = vsel %vm644, %v841, %v1449
      %v1471 = vsel %vm644, %v842, %v1451
      %vm1472 = vcmask 130048
      %v1473 = vsel %vm1472, %v1470, %v1457
      %v1474 = vsel %vm1472, %v1471, %v1459
      %vm1475 = vcmask 195584
      %v1476 = vsel %vm1475, %v1473, %v1465
      %v1477 = vsel %vm1475, %v1474, %v1467
      %v1478 = vld [vmem:[%s5] sm:$0xff]
      %v1479 = vld [vmem:[%s5 + $0x8] sm:$0xff]
      %v1480 = vld [vmem:[%s5 + $0x10] sm:$0xff]
      %v1481 = vld [vmem:[%s5 + $0x18] sm:$0xff]
      %v1482 = vld [vmem:[%s6] sm:$0x1]
      %v1484 = vlaneseq
      %v1485 = vshrl.u32 %v1484, 7
      %v1486 = vsub.s32 0, %v1485
      %v1487 = vrot.slane %v1482, %v1486
      %v1490 = vsel %vm499, %v1476, 0
      %v1493 = vsel %vm499, %v1477, 0
      %1495 = vmatprep.subr.mxu0 0.0
      %1496 = vmatpush1.msra.mxu0 %v1478
      %1497 = vmatprep.subr.mxu0 0.0
      %1498 = vmatpush1.msra.mxu0 %v1479
      %1499 = vmatprep.subr.mxu0 0.0
      %1500 = vmatpush1.msra.mxu0 %v1480
      %1501 = vmatprep.subr.mxu0 0.0
      %1502 = vmatpush1.msra.mxu0 %v1481
      %1503 = vmatprep.subr.mxu0 0.0
      %1504 = vmatpush1.msra.mxu0 0.0
      %1505 = vmatprep.subr.mxu0 0.0
      %1506 = vmatpush1.msra.mxu0 0.0
      %1507 = vmatprep.subr.mxu0 0.0
      %1508 = vmatpush1.msra.mxu0 0.0
      %1509 = vmatprep.subr.mxu0 0.0
      %1510 = vmatpush1.msra.mxu0 0.0
      %1511 = vmatprep.subr.mxu0 0.0
      %1512 = vmatpush1.msra.mxu0 0.0
      %1513 = vmatprep.subr.mxu0 0.0
      %1514 = vmatpush1.msra.mxu0 0.0
      %1515 = vmatprep.subr.mxu0 0.0
      %1516 = vmatpush1.msra.mxu0 0.0
      %1517 = vmatprep.subr.mxu0 0.0
      %1518 = vmatpush1.msra.mxu0 0.0
      %1519 = vmatprep.subr.mxu0 0.0
      %1520 = vmatpush1.msra.mxu0 0.0
      %1521 = vmatprep.subr.mxu0 0.0
      %1522 = vmatpush1.msra.mxu0 0.0
      %1523 = vmatprep.subr.mxu0 0.0
      %1524 = vmatpush1.msra.mxu0 0.0
      %1525 = vmatprep.subr.mxu0 0.0
      %1526 = vmatpush1.msra.mxu0 0.0
      %1527 = vmatprep.subr.mxu0 0.0
      %1528 = vmatpush1.msra.mxu0 0.0
      %1529 = vmatprep.subr.mxu0 0.0
      %1530 = vmatpush1.msra.mxu0 0.0
      %1531 = vmatprep.subr.mxu0 0.0
      %1532 = vmatpush1.msra.mxu0 0.0
      %1533 = vmatprep.subr.mxu0 0.0
      %1534 = vmatpush1.msra.mxu0 0.0
      %1535 = vmatprep.subr.mxu0 0.0
      %1536 = vmatpush1.msra.mxu0 0.0
      %1537 = vmatprep.subr.mxu0 0.0
      %1538 = vmatpush1.msra.mxu0 0.0
      %1539 = vmatprep.subr.mxu0 0.0
      %1540 = vmatpush1.msra.mxu0 0.0
      %1541 = vmatprep.subr.mxu0 0.0
      %1542 = vmatpush1.msra.mxu0 0.0
      %1543 = vmatprep.subr.mxu0 0.0
      %1544 = vmatpush1.msra.mxu0 0.0
      %1545 = vmatprep.subr.mxu0 0.0
      %1546 = vmatpush1.msra.mxu0 0.0
      %1547 = vmatprep.subr.mxu0 0.0
      %1548 = vmatpush1.msra.mxu0 0.0
      %1549 = vmatprep.subr.mxu0 0.0
      %1550 = vmatpush1.msra.mxu0 0.0
      %1551 = vmatprep.subr.mxu0 0.0
      %1552 = vmatpush1.msra.mxu0 0.0
      %1553 = vmatprep.subr.mxu0 0.0
      %1554 = vmatpush1.msra.mxu0 0.0
      %1555 = vmatprep.subr.mxu0 0.0
      %1556 = vmatpush1.msra.mxu0 0.0
      %1557 = vmatprep.subr.mxu0 0.0
      %1558 = vmatpush1.msra.mxu0 0.0
      %1559 = vmatprep.mubr.f32.mxu0 0.0
      %1560 = vmatmul.mubr.f32.gmra.mrb[0].mxu0 %v1490
      %v1561 = vpop.f32.mrb[0].mxu0
      %v1562 = vadd.f32 %v1487, %v1561
      %v1563 = vpop.f32.mrb[0].mxu0
      %1564 = vmatprep.mubr.f32.mxu0 0.0
      %1565 = vmatmul.mubr.f32.gmra.mrb[0].mxu0 %v1493
      %v1566 = vpop.f32.mrb[0].mxu0
      %v1567 = vadd.f32 %v1487, %v1566
      %v1568 = vpop.f32.mrb[0].mxu0
      %1569 = vdwg.mxu0
      %v1570 = vadd.f32 %v1562, %v542
      %v1571 = vadd.f32 %v1567, %v543
      %v1572 = vld [vmem:[%s7] sm:$0x1]
      %v1573 = vld [vmem:[%s8] sm:$0x1]
      %v1574 = vsel %vm499, %v1570, 0.0
      %1575 = vadd.xlane.f32.xlu0 %v1574
      %v1576 = vpop.xlane.xlu0 %1575
      %v1577 = vsel %vm503, %v1571, 0.0
      %1578 = vadd.xlane.f32.xlu0 %v1577
      %v1579 = vpop.xlane.xlu0 %1578
      %v1580 = vmul.f32 %v1576, %v507
      %v1581 = vmul.f32 %v1579, %v507
      %v1582 = vsub.f32 %v1570, %v1580
      %v1583 = vsub.f32 %v1571, %v1581
      %v1584 = vmul.f32 %v1582, %v1582
      %v1585 = vmul.f32 %v1583, %v1583
      %v1586 = vsel %vm499, %v1584, 0.0
      %1587 = vadd.xlane.f32.xlu0 %v1586
      %v1588 = vpop.xlane.xlu0 %1587
      %v1589 = vsel %vm503, %v1585, 0.0
      %1590 = vadd.xlane.f32.xlu0 %v1589
      %v1591 = vpop.xlane.xlu0 %1590
      %v1592 = vmul.f32 %v1588, %v507
      %v1593 = vmul.f32 %v1591, %v507
      %v1594 = vadd.f32 %v1592, 1e-12
      %v1595 = vadd.f32 %v1593, 1e-12
      %v1596 = vrsqrt.pop %v1594
      %v1597 = vrsqrt.pop %v1595
      %v1598 = vmul.f32 %v1582, %v1596
      %v1599 = vmul.f32 %v1583, %v1597
      %v1601 = vlaneseq
      %v1602 = vshrl.u32 %v1601, 7
      %v1603 = vsub.s32 0, %v1602
      %v1604 = vrot.slane %v1572, %v1603
      %v1606 = vmul.f32 %v1598, %v1604
      %v1607 = vmul.f32 %v1599, %v1604
      %v1609 = vlaneseq
      %v1610 = vshrl.u32 %v1609, 7
      %v1611 = vsub.s32 0, %v1610
      %v1612 = vrot.slane %v1573, %v1611
      %v1614 = vadd.f32 %v1606, %v1612
      %v1615 = vadd.f32 %v1607, %v1612
      %v1616 = vld [vmem:[%s9] sm:$0xff]
      %v1617 = vld [vmem:[%s9 + $0x8] sm:$0xff]
      %v1618 = vld [vmem:[%s9 + $0x10] sm:$0xff]
      %v1619 = vld [vmem:[%s9 + $0x18] sm:$0xff]
      %v1620 = vld [vmem:[%s10] sm:$0x1]
      %v1622 = vlaneseq
      %v1623 = vshrl.u32 %v1622, 7
      %v1624 = vsub.s32 0, %v1623
      %v1625 = vrot.slane %v1620, %v1624
      %v1628 = vsel %vm499, %v1614, 0
      %v1631 = vsel %vm499, %v1615, 0
      %1633 = vmatprep.subr.mxu0 0.0
      %1634 = vmatpush1.msra.mxu0 %v1616
      %1635 = vmatprep.subr.mxu0 0.0
      %1636 = vmatpush1.msra.mxu0 %v1617
      %1637 = vmatprep.subr.mxu0 0.0
      %1638 = vmatpush1.msra.mxu0 %v1618
      %1639 = vmatprep.subr.mxu0 0.0
      %1640 = vmatpush1.msra.mxu0 %v1619
      %1641 = vmatprep.subr.mxu0 0.0
      %1642 = vmatpush1.msra.mxu0 0.0
      %1643 = vmatprep.subr.mxu0 0.0
      %1644 = vmatpush1.msra.mxu0 0.0
      %1645 = vmatprep.subr.mxu0 0.0
      %1646 = vmatpush1.msra.mxu0 0.0
      %1647 = vmatprep.subr.mxu0 0.0
      %1648 = vmatpush1.msra.mxu0 0.0
      %1649 = vmatprep.subr.mxu0 0.0
      %1650 = vmatpush1.msra.mxu0 0.0
      %1651 = vmatprep.subr.mxu0 0.0
      %1652 = vmatpush1.msra.mxu0 0.0
      %1653 = vmatprep.subr.mxu0 0.0
      %1654 = vmatpush1.msra.mxu0 0.0
      %1655 = vmatprep.subr.mxu0 0.0
      %1656 = vmatpush1.msra.mxu0 0.0
      %1657 = vmatprep.subr.mxu0 0.0
      %1658 = vmatpush1.msra.mxu0 0.0
      %1659 = vmatprep.subr.mxu0 0.0
      %1660 = vmatpush1.msra.mxu0 0.0
      %1661 = vmatprep.subr.mxu0 0.0
      %1662 = vmatpush1.msra.mxu0 0.0
      %1663 = vmatprep.subr.mxu0 0.0
      %1664 = vmatpush1.msra.mxu0 0.0
      %1665 = vmatprep.subr.mxu0 0.0
      %1666 = vmatpush1.msra.mxu0 0.0
      %1667 = vmatprep.subr.mxu0 0.0
      %1668 = vmatpush1.msra.mxu0 0.0
      %1669 = vmatprep.subr.mxu0 0.0
      %1670 = vmatpush1.msra.mxu0 0.0
      %1671 = vmatprep.subr.mxu0 0.0
      %1672 = vmatpush1.msra.mxu0 0.0
      %1673 = vmatprep.subr.mxu0 0.0
      %1674 = vmatpush1.msra.mxu0 0.0
      %1675 = vmatprep.subr.mxu0 0.0
      %1676 = vmatpush1.msra.mxu0 0.0
      %1677 = vmatprep.subr.mxu0 0.0
      %1678 = vmatpush1.msra.mxu0 0.0
      %1679 = vmatprep.subr.mxu0 0.0
      %1680 = vmatpush1.msra.mxu0 0.0
      %1681 = vmatprep.subr.mxu0 0.0
      %1682 = vmatpush1.msra.mxu0 0.0
      %1683 = vmatprep.subr.mxu0 0.0
      %1684 = vmatpush1.msra.mxu0 0.0
      %1685 = vmatprep.subr.mxu0 0.0
      %1686 = vmatpush1.msra.mxu0 0.0
      %1687 = vmatprep.subr.mxu0 0.0
      %1688 = vmatpush1.msra.mxu0 0.0
      %1689 = vmatprep.subr.mxu0 0.0
      %1690 = vmatpush1.msra.mxu0 0.0
      %1691 = vmatprep.subr.mxu0 0.0
      %1692 = vmatpush1.msra.mxu0 0.0
      %1693 = vmatprep.subr.mxu0 0.0
      %1694 = vmatpush1.msra.mxu0 0.0
      %1695 = vmatprep.subr.mxu0 0.0
      %1696 = vmatpush1.msra.mxu0 0.0
      %1697 = vmatprep.mubr.f32.mxu0 0.0
      %1698 = vmatmul.mubr.f32.gmra.mrb[0].mxu0 %v1628
      %v1699 = vpop.f32.mrb[0].mxu0
      %v1700 = vadd.f32 %v1625, %v1699
      %v1701 = vpop.f32.mrb[0].mxu0
      %1702 = vmatprep.mubr.f32.mxu0 0.0
      %1703 = vmatmul.mubr.f32.gmra.mrb[0].mxu0 %v1631
      %v1704 = vpop.f32.mrb[0].mxu0
      %v1705 = vadd.f32 %v1625, %v1704
      %v1706 = vpop.f32.mrb[0].mxu0
      %1707 = vdwg.mxu0
      %v1708 = vmul.f32 %v1700, 0.5
      %v1709 = vmul.f32 %v1705, 0.5
      %v1710 = vmul.f32 %v1700, 0.70710677
      %v1711 = vmul.f32 %v1705, 0.70710677
      %v1712 = vand.u32 2147483647, %v1710
      %v1713 = vand.u32 2147483647, %v1711
      %v1714 = vmul.f32 %v1712, 0.3275911
      %v1715 = vmul.f32 %v1713, 0.3275911
      %v1716 = vadd.f32 %v1714, 1.0
      %v1717 = vadd.f32 %v1715, 1.0
      %v1718 = vrcp.pop %v1716
      %v1719 = vrcp.pop %v1717
      %v1720 = vmul.f32 %v1718, 1.0614054
      %v1721 = vmul.f32 %v1719, 1.0614054
      %v1722 = vadd.f32 %v1720, -1.4531521
      %v1723 = vadd.f32 %v1721, -1.4531521
      %v1724 = vmul.f32 %v1722, %v1718
      %v1725 = vmul.f32 %v1723, %v1719
      %v1726 = vadd.f32 %v1724, 1.4214138
      %v1727 = vadd.f32 %v1725, 1.4214138
      %v1728 = vmul.f32 %v1726, %v1718
      %v1729 = vmul.f32 %v1727, %v1719
      %v1730 = vadd.f32 %v1728, -0.28449672
      %v1731 = vadd.f32 %v1729, -0.28449672
      %v1732 = vmul.f32 %v1730, %v1718
      %v1733 = vmul.f32 %v1731, %v1719
      %v1734 = vadd.f32 %v1732, 0.2548296
      %v1735 = vadd.f32 %v1733, 0.2548296
      %v1736 = vmul.f32 %v1734, %v1718
      %v1737 = vmul.f32 %v1735, %v1719
      %v1738 = vsub.f32 0.0, %v1712
      %v1739 = vsub.f32 0.0, %v1713
      %v1740 = vmul.f32 %v1738, %v1712
      %v1741 = vmul.f32 %v1739, %v1713
      %v1742 = vmul.f32 %v1740, 1.442695
      %v1743 = vpow.pop %v1742
      %v1744 = vmul.f32 %v1741, 1.442695
      %v1745 = vpow.pop %v1744
      %v1746 = vmul.f32 %v1736, %v1743
      %v1747 = vmul.f32 %v1737, %v1745
      %v1748 = vsub.f32 1.0, %v1746
      %v1749 = vsub.f32 1.0, %v1747
      %vm1750 = vcmp.ge.f32.partialorder %v1710, 0.0
      %vm1751 = vcmp.ge.f32.partialorder %v1711, 0.0
      %v1752 = vsub.f32 0.0, %v1748
      %v1753 = vsub.f32 0.0, %v1749
      %v1754 = vsel %vm1750, %v1748, %v1752
      %v1755 = vsel %vm1751, %v1749, %v1753
      %v1756 = vadd.f32 %v1754, 1.0
      %v1757 = vadd.f32 %v1755, 1.0
      %v1758 = vmul.f32 %v1708, %v1756
      %v1759 = vmul.f32 %v1709, %v1757
      %v1760 = vld [vmem:[%s11] sm:$0xff]
      %v1761 = vld [vmem:[%s11 + $0x8] sm:$0xff]
      %v1762 = vld [vmem:[%s11 + $0x10] sm:$0xff]
      %v1763 = vld [vmem:[%s11 + $0x18] sm:$0xff]
      %v1764 = vld [vmem:[%s11 + $0x20] sm:$0xff]
      %v1765 = vld [vmem:[%s11 + $0x28] sm:$0xff]
      %v1766 = vld [vmem:[%s11 + $0x30] sm:$0xff]
      %v1767 = vld [vmem:[%s11 + $0x38] sm:$0xff]
      %v1768 = vld [vmem:[%s12] sm:$0x1]
      %v1770 = vlaneseq
      %v1771 = vshrl.u32 %v1770, 7
      %v1772 = vsub.s32 0, %v1771
      %v1773 = vrot.slane %v1768, %v1772
      %vm1775 = vcmask 523264
      %v1777 = vsel %vm1775, %v1758, 0
      %v1780 = vsel %vm1775, %v1759, 0
      %1782 = vmatprep.subr.mxu0 0.0
      %1783 = vmatpush1.msra.mxu0 %v1760
      %1784 = vmatprep.subr.mxu0 0.0
      %1785 = vmatpush1.msra.mxu0 %v1761
      %1786 = vmatprep.subr.mxu0 0.0
      %1787 = vmatpush1.msra.mxu0 %v1762
      %1788 = vmatprep.subr.mxu0 0.0
      %1789 = vmatpush1.msra.mxu0 %v1763
      %1790 = vmatprep.subr.mxu0 0.0
      %1791 = vmatpush1.msra.mxu0 %v1764
      %1792 = vmatprep.subr.mxu0 0.0
      %1793 = vmatpush1.msra.mxu0 %v1765
      %1794 = vmatprep.subr.mxu0 0.0
      %1795 = vmatpush1.msra.mxu0 %v1766
      %1796 = vmatprep.subr.mxu0 0.0
      %1797 = vmatpush1.msra.mxu0 %v1767
      %1798 = vmatprep.subr.mxu0 0.0
      %1799 = vmatpush1.msra.mxu0 0.0
      %1800 = vmatprep.subr.mxu0 0.0
      %1801 = vmatpush1.msra.mxu0 0.0
      %1802 = vmatprep.subr.mxu0 0.0
      %1803 = vmatpush1.msra.mxu0 0.0
      %1804 = vmatprep.subr.mxu0 0.0
      %1805 = vmatpush1.msra.mxu0 0.0
      %1806 = vmatprep.subr.mxu0 0.0
      %1807 = vmatpush1.msra.mxu0 0.0
      %1808 = vmatprep.subr.mxu0 0.0
      %1809 = vmatpush1.msra.mxu0 0.0
      %1810 = vmatprep.subr.mxu0 0.0
      %1811 = vmatpush1.msra.mxu0 0.0
      %1812 = vmatprep.subr.mxu0 0.0
      %1813 = vmatpush1.msra.mxu0 0.0
      %1814 = vmatprep.subr.mxu0 0.0
      %1815 = vmatpush1.msra.mxu0 0.0
      %1816 = vmatprep.subr.mxu0 0.0
      %1817 = vmatpush1.msra.mxu0 0.0
      %1818 = vmatprep.subr.mxu0 0.0
      %1819 = vmatpush1.msra.mxu0 0.0
      %1820 = vmatprep.subr.mxu0 0.0
      %1821 = vmatpush1.msra.mxu0 0.0
      %1822 = vmatprep.subr.mxu0 0.0
      %1823 = vmatpush1.msra.mxu0 0.0
      %1824 = vmatprep.subr.mxu0 0.0
      %1825 = vmatpush1.msra.mxu0 0.0
      %1826 = vmatprep.subr.mxu0 0.0
      %1827 = vmatpush1.msra.mxu0 0.0
      %1828 = vmatprep.subr.mxu0 0.0
      %1829 = vmatpush1.msra.mxu0 0.0
      %1830 = vmatprep.subr.mxu0 0.0
      %1831 = vmatpush1.msra.mxu0 0.0
      %1832 = vmatprep.subr.mxu0 0.0
      %1833 = vmatpush1.msra.mxu0 0.0
      %1834 = vmatprep.subr.mxu0 0.0
      %1835 = vmatpush1.msra.mxu0 0.0
      %1836 = vmatprep.subr.mxu0 0.0
      %1837 = vmatpush1.msra.mxu0 0.0
      %1838 = vmatprep.subr.mxu0 0.0
      %1839 = vmatpush1.msra.mxu0 0.0
      %1840 = vmatprep.subr.mxu0 0.0
      %1841 = vmatpush1.msra.mxu0 0.0
      %1842 = vmatprep.subr.mxu0 0.0
      %1843 = vmatpush1.msra.mxu0 0.0
      %1844 = vmatprep.subr.mxu0 0.0
      %1845 = vmatpush1.msra.mxu0 0.0
      %1846 = vmatprep.mubr.f32.mxu0 0.0
      %1847 = vmatmul.mubr.f32.gmra.mrb[0].mxu0 %v1777
      %v1848 = vpop.f32.mrb[0].mxu0
      %v1849 = vadd.f32 %v1773, %v1848
      %v1850 = vpop.f32.mrb[0].mxu0
      %1851 = vmatprep.mubr.f32.mxu0 0.0
      %1852 = vmatmul.mubr.f32.gmra.mrb[0].mxu0 %v1780
      %v1853 = vpop.f32.mrb[0].mxu0
      %v1854 = vadd.f32 %v1773, %v1853
      %v1855 = vpop.f32.mrb[0].mxu0
      %1856 = vdwg.mxu0
      %v1857 = vadd.f32 %v1849, %v1614
      %v1858 = vadd.f32 %v1854, %v1615
      %v1859 = vld [vmem:[%s13] sm:$0x1]
      %v1860 = vld [vmem:[%s14] sm:$0x1]
      %v1861 = vsel %vm499, %v1857, 0.0
      %1862 = vadd.xlane.f32.xlu0 %v1861
      %v1863 = vpop.xlane.xlu0 %1862
      %v1864 = vsel %vm503, %v1858, 0.0
      %1865 = vadd.xlane.f32.xlu0 %v1864
      %v1866 = vpop.xlane.xlu0 %1865
      %v1867 = vmul.f32 %v1863, %v507
      %v1868 = vmul.f32 %v1866, %v507
      %v1869 = vsub.f32 %v1857, %v1867
      %v1870 = vsub.f32 %v1858, %v1868
      %v1871 = vmul.f32 %v1869, %v1869
      %v1872 = vmul.f32 %v1870, %v1870
      %v1873 = vsel %vm499, %v1871, 0.0
      %1874 = vadd.xlane.f32.xlu0 %v1873
      %v1875 = vpop.xlane.xlu0 %1874
      %v1876 = vsel %vm503, %v1872, 0.0
      %1877 = vadd.xlane.f32.xlu0 %v1876
      %v1878 = vpop.xlane.xlu0 %1877
      %v1879 = vmul.f32 %v1875, %v507
      %v1880 = vmul.f32 %v1878, %v507
      %v1881 = vadd.f32 %v1879, 1e-12
      %v1882 = vadd.f32 %v1880, 1e-12
      %v1883 = vrsqrt.pop %v1881
      %v1884 = vrsqrt.pop %v1882
      %v1885 = vmul.f32 %v1869, %v1883
      %v1886 = vmul.f32 %v1870, %v1884
      %v1888 = vlaneseq
      %v1889 = vshrl.u32 %v1888, 7
      %v1890 = vsub.s32 0, %v1889
      %v1891 = vrot.slane %v1859, %v1890
      %v1893 = vmul.f32 %v1885, %v1891
      %v1894 = vmul.f32 %v1886, %v1891
      %v1896 = vlaneseq
      %v1897 = vshrl.u32 %v1896, 7
      %v1898 = vsub.s32 0, %v1897
      %v1899 = vrot.slane %v1860, %v1898
      %v1901 = vadd.f32 %v1893, %v1899
      %v1902 = vadd.f32 %v1894, %v1899
      %s1903 = scalar_lea.vmem %s3, 32
      %v1904 = vld [vmem:[%s1903] sm:$0xff]
      %v1905 = vld [vmem:[%s1903 + $0x8] sm:$0xff]
      %v1906 = vld [vmem:[%s1903 + $0x10] sm:$0xff]
      %v1907 = vld [vmem:[%s1903 + $0x18] sm:$0xff]
      %s1908 = scalar_lea.vmem %s4, 1
      %v1909 = vld [vmem:[%s1908] sm:$0x1]
      %v1911 = vlaneseq
      %v1912 = vshrl.u32 %v1911, 7
      %v1913 = vsub.s32 0, %v1912
      %v1914 = vrot.slane %v1909, %v1913
      %v1917 = vsel %vm499, %v1901, 0
      %v1920 = vsel %vm499, %v1902, 0
      %1922 = vmatprep.subr.mxu0 0.0
      %1923 = vmatpush1.msra.mxu0 %v1904
      %1924 = vmatprep.subr.mxu0 0.0
      %1925 = vmatpush1.msra.mxu0 %v1905
      %1926 = vmatprep.subr.mxu0 0.0
      %1927 = vmatpush1.msra.mxu0 %v1906
      %1928 = vmatprep.subr.mxu0 0.0
      %1929 = vmatpush1.msra.mxu0 %v1907
      %1930 = vmatprep.subr.mxu0 0.0
      %1931 = vmatpush1.msra.mxu0 0.0
      %1932 = vmatprep.subr.mxu0 0.0
      %1933 = vmatpush1.msra.mxu0 0.0
      %1934 = vmatprep.subr.mxu0 0.0
      %1935 = vmatpush1.msra.mxu0 0.0
      %1936 = vmatprep.subr.mxu0 0.0
      %1937 = vmatpush1.msra.mxu0 0.0
      %1938 = vmatprep.subr.mxu0 0.0
      %1939 = vmatpush1.msra.mxu0 0.0
      %1940 = vmatprep.subr.mxu0 0.0
      %1941 = vmatpush1.msra.mxu0 0.0
      %1942 = vmatprep.subr.mxu0 0.0
      %1943 = vmatpush1.msra.mxu0 0.0
      %1944 = vmatprep.subr.mxu0 0.0
      %1945 = vmatpush1.msra.mxu0 0.0
      %1946 = vmatprep.subr.mxu0 0.0
      %1947 = vmatpush1.msra.mxu0 0.0
      %1948 = vmatprep.subr.mxu0 0.0
      %1949 = vmatpush1.msra.mxu0 0.0
      %1950 = vmatprep.subr.mxu0 0.0
      %1951 = vmatpush1.msra.mxu0 0.0
      %1952 = vmatprep.subr.mxu0 0.0
      %1953 = vmatpush1.msra.mxu0 0.0
      %1954 = vmatprep.subr.mxu0 0.0
      %1955 = vmatpush1.msra.mxu0 0.0
      %1956 = vmatprep.subr.mxu0 0.0
      %1957 = vmatpush1.msra.mxu0 0.0
      %1958 = vmatprep.subr.mxu0 0.0
      %1959 = vmatpush1.msra.mxu0 0.0
      %1960 = vmatprep.subr.mxu0 0.0
      %1961 = vmatpush1.msra.mxu0 0.0
      %1962 = vmatprep.subr.mxu0 0.0
      %1963 = vmatpush1.msra.mxu0 0.0
      %1964 = vmatprep.subr.mxu0 0.0
      %1965 = vmatpush1.msra.mxu0 0.0
      %1966 = vmatprep.subr.mxu0 0.0
      %1967 = vmatpush1.msra.mxu0 0.0
      %1968 = vmatprep.subr.mxu0 0.0
      %1969 = vmatpush1.msra.mxu0 0.0
      %1970 = vmatprep.subr.mxu0 0.0
      %1971 = vmatpush1.msra.mxu0 0.0
      %1972 = vmatprep.subr.mxu0 0.0
      %1973 = vmatpush1.msra.mxu0 0.0
      %1974 = vmatprep.subr.mxu0 0.0
      %1975 = vmatpush1.msra.mxu0 0.0
      %1976 = vmatprep.subr.mxu0 0.0
      %1977 = vmatpush1.msra.mxu0 0.0
      %1978 = vmatprep.subr.mxu0 0.0
      %1979 = vmatpush1.msra.mxu0 0.0
      %1980 = vmatprep.subr.mxu0 0.0
      %1981 = vmatpush1.msra.mxu0 0.0
      %1982 = vmatprep.subr.mxu0 0.0
      %1983 = vmatpush1.msra.mxu0 0.0
      %1984 = vmatprep.subr.mxu0 0.0
      %1985 = vmatpush1.msra.mxu0 0.0
      %1986 = vmatprep.mubr.f32.mxu0 0.0
      %1987 = vmatmul.mubr.f32.gmra.mrb[0].mxu0 %v1917
      %v1988 = vpop.f32.mrb[0].mxu0
      %v1989 = vadd.f32 %v1914, %v1988
      %v1990 = vpop.f32.mrb[0].mxu0
      %1991 = vmatprep.mubr.f32.mxu0 0.0
      %1992 = vmatmul.mubr.f32.gmra.mrb[0].mxu0 %v1920
      %v1993 = vpop.f32.mrb[0].mxu0
      %v1994 = vadd.f32 %v1914, %v1993
      %v1995 = vpop.f32.mrb[0].mxu0
      %1996 = vdwg.mxu0
      %v1997 = vmul.f32 %v1989, 0.35355338
      %v1998 = vmul.f32 %v1994, 0.35355338
      %2001 = vrot.lane.b32.xlu0 %v1989, 96
      %v2002 = vpop.permute.xlu0 %2001
      %2003 = vrot.lane.b32.xlu0 %v1994, 96
      %v2004 = vpop.permute.xlu0 %2003
      %v2006 = vsel %vm644, %v1997, 0
      %v2009 = vsel %vm644, %v1998, 0
      %v2011 = vsel %vm644, %v2002, 0
      %v2013 = vsel %vm644, %v2004, 0
      %2015 = vmatprep.subr.mxu0 0.0
      %2016 = vmatpush1.xpose.msra.mxu0 %v2011
      %2017 = vmatprep.subr.mxu0 0.0
      %2018 = vmatpush1.xpose.msra.mxu0 %v2013
      %2019 = vmatprep.subr.mxu0 0.0
      %2020 = vmatpush1.xpose.msra.mxu0 0.0
      %2021 = vmatprep.subr.mxu0 0.0
      %2022 = vmatpush1.xpose.msra.mxu0 0.0
      %2023 = vmatprep.subr.mxu0 0.0
      %2024 = vmatpush1.xpose.msra.mxu0 0.0
      %2025 = vmatprep.subr.mxu0 0.0
      %2026 = vmatpush1.xpose.msra.mxu0 0.0
      %2027 = vmatprep.subr.mxu0 0.0
      %2028 = vmatpush1.xpose.msra.mxu0 0.0
      %2029 = vmatprep.subr.mxu0 0.0
      %2030 = vmatpush1.xpose.msra.mxu0 0.0
      %2031 = vmatprep.subr.mxu0 0.0
      %2032 = vmatpush1.xpose.msra.mxu0 0.0
      %2033 = vmatprep.subr.mxu0 0.0
      %2034 = vmatpush1.xpose.msra.mxu0 0.0
      %2035 = vmatprep.subr.mxu0 0.0
      %2036 = vmatpush1.xpose.msra.mxu0 0.0
      %2037 = vmatprep.subr.mxu0 0.0
      %2038 = vmatpush1.xpose.msra.mxu0 0.0
      %2039 = vmatprep.subr.mxu0 0.0
      %2040 = vmatpush1.xpose.msra.mxu0 0.0
      %2041 = vmatprep.subr.mxu0 0.0
      %2042 = vmatpush1.xpose.msra.mxu0 0.0
      %2043 = vmatprep.subr.mxu0 0.0
      %2044 = vmatpush1.xpose.msra.mxu0 0.0
      %2045 = vmatprep.subr.mxu0 0.0
      %2046 = vmatpush1.xpose.msra.mxu0 0.0
      %2047 = vmatprep.subr.mxu0 0.0
      %2048 = vmatpush1.xpose.msra.mxu0 0.0
      %2049 = vmatprep.subr.mxu0 0.0
      %2050 = vmatpush1.xpose.msra.mxu0 0.0
      %2051 = vmatprep.subr.mxu0 0.0
      %2052 = vmatpush1.xpose.msra.mxu0 0.0
      %2053 = vmatprep.subr.mxu0 0.0
      %2054 = vmatpush1.xpose.msra.mxu0 0.0
      %2055 = vmatprep.subr.mxu0 0.0
      %2056 = vmatpush1.xpose.msra.mxu0 0.0
      %2057 = vmatprep.subr.mxu0 0.0
      %2058 = vmatpush1.xpose.msra.mxu0 0.0
      %2059 = vmatprep.subr.mxu0 0.0
      %2060 = vmatpush1.xpose.msra.mxu0 0.0
      %2061 = vmatprep.subr.mxu0 0.0
      %2062 = vmatpush1.xpose.msra.mxu0 0.0
      %2063 = vmatprep.subr.mxu0 0.0
      %2064 = vmatpush1.xpose.msra.mxu0 0.0
      %2065 = vmatprep.subr.mxu0 0.0
      %2066 = vmatpush1.xpose.msra.mxu0 0.0
      %2067 = vmatprep.subr.mxu0 0.0
      %2068 = vmatpush1.xpose.msra.mxu0 0.0
      %2069 = vmatprep.subr.mxu0 0.0
      %2070 = vmatpush1.xpose.msra.mxu0 0.0
      %2071 = vmatprep.subr.mxu0 0.0
      %2072 = vmatpush1.xpose.msra.mxu0 0.0
      %2073 = vmatprep.subr.mxu0 0.0
      %2074 = vmatpush1.xpose.msra.mxu0 0.0
      %2075 = vmatprep.subr.mxu0 0.0
      %2076 = vmatpush1.xpose.msra.mxu0 0.0
      %2077 = vmatprep.subr.mxu0 0.0
      %2078 = vmatpush1.xpose.msra.mxu0 0.0
      %2079 = vmatprep.mubr.f32.mxu0 0.0
      %2080 = vmatmul.mubr.f32.gmra.mrb[0].mxu0 %v2006
      %v2081 = vpop.f32.mrb[0].mxu0
      %v2082 = vadd.f32 0.0, %v2081
      %v2083 = vpop.f32.mrb[0].mxu0
      %2084 = vmatprep.mubr.f32.mxu0 0.0
      %2085 = vmatmul.mubr.f32.gmra.mrb[0].mxu0 %v2009
      %v2086 = vpop.f32.mrb[0].mxu0
      %v2087 = vadd.f32 0.0, %v2086
      %v2088 = vpop.f32.mrb[0].mxu0
      %2089 = vdwg.mxu0
      %v2090 = vsel %vm730, %v2082, -inf
      %2091 = vmax.xlane.f32.xlu0 %v2090
      %v2092 = vpop.xlane.xlu0 %2091
      %v2093 = vsel %vm734, %v2087, -inf
      %2094 = vmax.xlane.f32.xlu0 %v2093
      %v2095 = vpop.xlane.xlu0 %2094
      %v2096 = vsub.f32 %v2082, %v2092
      %v2097 = vsub.f32 %v2087, %v2095
      %v2098 = vmul.f32 %v2096, 1.442695
      %v2099 = vpow.pop %v2098
      %v2100 = vmul.f32 %v2097, 1.442695
      %v2101 = vpow.pop %v2100
      %v2102 = vsel %vm730, %v2099, 0.0
      %2103 = vadd.xlane.f32.xlu0 %v2102
      %v2104 = vpop.xlane.xlu0 %2103
      %v2105 = vsel %vm734, %v2101, 0.0
      %2106 = vadd.xlane.f32.xlu0 %v2105
      %v2107 = vpop.xlane.xlu0 %2106
      %v2108 = vrcp.pop %v2104
      %v2109 = vrcp.pop %v2107
      %2110 = vrot.lane.b32.xlu0 %v1989, 64
      %v2111 = vpop.permute.xlu0 %2110
      %2112 = vrot.lane.b32.xlu0 %v1994, 64
      %v2113 = vpop.permute.xlu0 %2112
      %v2116 = vsel %vm730, %v2099, 0
      %v2119 = vsel %vm730, %v2101, 0
      %v2121 = vsel %vm763, %v2113, 0
      %2123 = vmatprep.subr.mxu0 0.0
      %2124 = vmatpush1.msra.mxu0 %v2111
      %2125 = vmatprep.subr.mxu0 0.0
      %2126 = vmatpush1.msra.mxu0 %v2121
      %2127 = vmatprep.subr.mxu0 0.0
      %2128 = vmatpush1.msra.mxu0 0.0
      %2129 = vmatprep.subr.mxu0 0.0
      %2130 = vmatpush1.msra.mxu0 0.0
      %2131 = vmatprep.subr.mxu0 0.0
      %2132 = vmatpush1.msra.mxu0 0.0
      %2133 = vmatprep.subr.mxu0 0.0
      %2134 = vmatpush1.msra.mxu0 0.0
      %2135 = vmatprep.subr.mxu0 0.0
      %2136 = vmatpush1.msra.mxu0 0.0
      %2137 = vmatprep.subr.mxu0 0.0
      %2138 = vmatpush1.msra.mxu0 0.0
      %2139 = vmatprep.subr.mxu0 0.0
      %2140 = vmatpush1.msra.mxu0 0.0
      %2141 = vmatprep.subr.mxu0 0.0
      %2142 = vmatpush1.msra.mxu0 0.0
      %2143 = vmatprep.subr.mxu0 0.0
      %2144 = vmatpush1.msra.mxu0 0.0
      %2145 = vmatprep.subr.mxu0 0.0
      %2146 = vmatpush1.msra.mxu0 0.0
      %2147 = vmatprep.subr.mxu0 0.0
      %2148 = vmatpush1.msra.mxu0 0.0
      %2149 = vmatprep.subr.mxu0 0.0
      %2150 = vmatpush1.msra.mxu0 0.0
      %2151 = vmatprep.subr.mxu0 0.0
      %2152 = vmatpush1.msra.mxu0 0.0
      %2153 = vmatprep.subr.mxu0 0.0
      %2154 = vmatpush1.msra.mxu0 0.0
      %2155 = vmatprep.subr.mxu0 0.0
      %2156 = vmatpush1.msra.mxu0 0.0
      %2157 = vmatprep.subr.mxu0 0.0
      %2158 = vmatpush1.msra.mxu0 0.0
      %2159 = vmatprep.subr.mxu0 0.0
      %2160 = vmatpush1.msra.mxu0 0.0
      %2161 = vmatprep.subr.mxu0 0.0
      %2162 = vmatpush1.msra.mxu0 0.0
      %2163 = vmatprep.subr.mxu0 0.0
      %2164 = vmatpush1.msra.mxu0 0.0
      %2165 = vmatprep.subr.mxu0 0.0
      %2166 = vmatpush1.msra.mxu0 0.0
      %2167 = vmatprep.subr.mxu0 0.0
      %2168 = vmatpush1.msra.mxu0 0.0
      %2169 = vmatprep.subr.mxu0 0.0
      %2170 = vmatpush1.msra.mxu0 0.0
      %2171 = vmatprep.subr.mxu0 0.0
      %2172 = vmatpush1.msra.mxu0 0.0
      %2173 = vmatprep.subr.mxu0 0.0
      %2174 = vmatpush1.msra.mxu0 0.0
      %2175 = vmatprep.subr.mxu0 0.0
      %2176 = vmatpush1.msra.mxu0 0.0
      %2177 = vmatprep.subr.mxu0 0.0
      %2178 = vmatpush1.msra.mxu0 0.0
      %2179 = vmatprep.subr.mxu0 0.0
      %2180 = vmatpush1.msra.mxu0 0.0
      %2181 = vmatprep.subr.mxu0 0.0
      %2182 = vmatpush1.msra.mxu0 0.0
      %2183 = vmatprep.subr.mxu0 0.0
      %2184 = vmatpush1.msra.mxu0 0.0
      %2185 = vmatprep.subr.mxu0 0.0
      %2186 = vmatpush1.msra.mxu0 0.0
      %2187 = vmatprep.mubr.f32.mxu0 0.0
      %2188 = vmatmul.mubr.f32.gmra.mrb[0].mxu0 %v2116
      %v2189 = vpop.f32.mrb[0].mxu0
      %v2190 = vadd.f32 0.0, %v2189
      %v2191 = vpop.f32.mrb[0].mxu0
      %2192 = vmatprep.mubr.f32.mxu0 0.0
      %2193 = vmatmul.mubr.f32.gmra.mrb[0].mxu0 %v2119
      %v2194 = vpop.f32.mrb[0].mxu0
      %v2195 = vadd.f32 0.0, %v2194
      %v2196 = vpop.f32.mrb[0].mxu0
      %2197 = vdwg.mxu0
      %v2198 = vmul.f32 %v2190, %v2108
      %v2199 = vmul.f32 %v2195, %v2109
      %2200 = vrot.lane.b32.xlu0 %v1997, 120
      %v2201 = vpop.permute.xlu0 %2200
      %2202 = vrot.lane.b32.xlu0 %v1998, 120
      %v2203 = vpop.permute.xlu0 %2202
      %2204 = vrot.lane.b32.xlu0 %v1989, 88
      %v2205 = vpop.permute.xlu0 %2204
      %2206 = vrot.lane.b32.xlu0 %v1994, 88
      %v2207 = vpop.permute.xlu0 %2206
      %v2208 = vsel %vm644, %v2201, 0
      %v2210 = vsel %vm644, %v2203, 0
      %v2212 = vsel %vm644, %v2205, 0
      %v2214 = vsel %vm644, %v2207, 0
      %2216 = vmatprep.subr.mxu0 0.0
      %2217 = vmatpush1.xpose.msra.mxu0 %v2212
      %2218 = vmatprep.subr.mxu0 0.0
      %2219 = vmatpush1.xpose.msra.mxu0 %v2214
      %2220 = vmatprep.subr.mxu0 0.0
      %2221 = vmatpush1.xpose.msra.mxu0 0.0
      %2222 = vmatprep.subr.mxu0 0.0
      %2223 = vmatpush1.xpose.msra.mxu0 0.0
      %2224 = vmatprep.subr.mxu0 0.0
      %2225 = vmatpush1.xpose.msra.mxu0 0.0
      %2226 = vmatprep.subr.mxu0 0.0
      %2227 = vmatpush1.xpose.msra.mxu0 0.0
      %2228 = vmatprep.subr.mxu0 0.0
      %2229 = vmatpush1.xpose.msra.mxu0 0.0
      %2230 = vmatprep.subr.mxu0 0.0
      %2231 = vmatpush1.xpose.msra.mxu0 0.0
      %2232 = vmatprep.subr.mxu0 0.0
      %2233 = vmatpush1.xpose.msra.mxu0 0.0
      %2234 = vmatprep.subr.mxu0 0.0
      %2235 = vmatpush1.xpose.msra.mxu0 0.0
      %2236 = vmatprep.subr.mxu0 0.0
      %2237 = vmatpush1.xpose.msra.mxu0 0.0
      %2238 = vmatprep.subr.mxu0 0.0
      %2239 = vmatpush1.xpose.msra.mxu0 0.0
      %2240 = vmatprep.subr.mxu0 0.0
      %2241 = vmatpush1.xpose.msra.mxu0 0.0
      %2242 = vmatprep.subr.mxu0 0.0
      %2243 = vmatpush1.xpose.msra.mxu0 0.0
      %2244 = vmatprep.subr.mxu0 0.0
      %2245 = vmatpush1.xpose.msra.mxu0 0.0
      %2246 = vmatprep.subr.mxu0 0.0
      %2247 = vmatpush1.xpose.msra.mxu0 0.0
      %2248 = vmatprep.subr.mxu0 0.0
      %2249 = vmatpush1.xpose.msra.mxu0 0.0
      %2250 = vmatprep.subr.mxu0 0.0
      %2251 = vmatpush1.xpose.msra.mxu0 0.0
      %2252 = vmatprep.subr.mxu0 0.0
      %2253 = vmatpush1.xpose.msra.mxu0 0.0
      %2254 = vmatprep.subr.mxu0 0.0
      %2255 = vmatpush1.xpose.msra.mxu0 0.0
      %2256 = vmatprep.subr.mxu0 0.0
      %2257 = vmatpush1.xpose.msra.mxu0 0.0
      %2258 = vmatprep.subr.mxu0 0.0
      %2259 = vmatpush1.xpose.msra.mxu0 0.0
      %2260 = vmatprep.subr.mxu0 0.0
      %2261 = vmatpush1.xpose.msra.mxu0 0.0
      %2262 = vmatprep.subr.mxu0 0.0
      %2263 = vmatpush1.xpose.msra.mxu0 0.0
      %2264 = vmatprep.subr.mxu0 0.0
      %2265 = vmatpush1.xpose.msra.mxu0 0.0
      %2266 = vmatprep.subr.mxu0 0.0
      %2267 = vmatpush1.xpose.msra.mxu0 0.0
      %2268 = vmatprep.subr.mxu0 0.0
      %2269 = vmatpush1.xpose.msra.mxu0 0.0
      %2270 = vmatprep.subr.mxu0 0.0
      %2271 = vmatpush1.xpose.msra.mxu0 0.0
      %2272 = vmatprep.subr.mxu0 0.0
      %2273 = vmatpush1.xpose.msra.mxu0 0.0
      %2274 = vmatprep.subr.mxu0 0.0
      %2275 = vmatpush1.xpose.msra.mxu0 0.0
      %2276 = vmatprep.subr.mxu0 0.0
      %2277 = vmatpush1.xpose.msra.mxu0 0.0
      %2278 = vmatprep.subr.mxu0 0.0
      %2279 = vmatpush1.xpose.msra.mxu0 0.0
      %2280 = vmatprep.mubr.f32.mxu0 0.0
      %2281 = vmatmul.mubr.f32.gmra.mrb[0].mxu0 %v2208
      %v2282 = vpop.f32.mrb[0].mxu0
      %v2283 = vadd.f32 0.0, %v2282
      %v2284 = vpop.f32.mrb[0].mxu0
      %2285 = vmatprep.mubr.f32.mxu0 0.0
      %2286 = vmatmul.mubr.f32.gmra.mrb[0].mxu0 %v2210
      %v2287 = vpop.f32.mrb[0].mxu0
      %v2288 = vadd.f32 0.0, %v2287
      %v2289 = vpop.f32.mrb[0].mxu0
      %2290 = vdwg.mxu0
      %v2291 = vsel %vm730, %v2283, -inf
      %2292 = vmax.xlane.f32.xlu0 %v2291
      %v2293 = vpop.xlane.xlu0 %2292
      %v2294 = vsel %vm734, %v2288, -inf
      %2295 = vmax.xlane.f32.xlu0 %v2294
      %v2296 = vpop.xlane.xlu0 %2295
      %v2297 = vsub.f32 %v2283, %v2293
      %v2298 = vsub.f32 %v2288, %v2296
      %v2299 = vmul.f32 %v2297, 1.442695
      %v2300 = vpow.pop %v2299
      %v2301 = vmul.f32 %v2298, 1.442695
      %v2302 = vpow.pop %v2301
      %v2303 = vsel %vm730, %v2300, 0.0
      %2304 = vadd.xlane.f32.xlu0 %v2303
      %v2305 = vpop.xlane.xlu0 %2304
      %v2306 = vsel %vm734, %v2302, 0.0
      %2307 = vadd.xlane.f32.xlu0 %v2306
      %v2308 = vpop.xlane.xlu0 %2307
      %v2309 = vrcp.pop %v2305
      %v2310 = vrcp.pop %v2308
      %2311 = vrot.lane.b32.xlu0 %v1989, 56
      %v2312 = vpop.permute.xlu0 %2311
      %2313 = vrot.lane.b32.xlu0 %v1994, 56
      %v2314 = vpop.permute.xlu0 %2313
      %v2317 = vsel %vm730, %v2300, 0
      %v2320 = vsel %vm730, %v2302, 0
      %v2322 = vsel %vm763, %v2314, 0
      %2324 = vmatprep.subr.mxu0 0.0
      %2325 = vmatpush1.msra.mxu0 %v2312
      %2326 = vmatprep.subr.mxu0 0.0
      %2327 = vmatpush1.msra.mxu0 %v2322
      %2328 = vmatprep.subr.mxu0 0.0
      %2329 = vmatpush1.msra.mxu0 0.0
      %2330 = vmatprep.subr.mxu0 0.0
      %2331 = vmatpush1.msra.mxu0 0.0
      %2332 = vmatprep.subr.mxu0 0.0
      %2333 = vmatpush1.msra.mxu0 0.0
      %2334 = vmatprep.subr.mxu0 0.0
      %2335 = vmatpush1.msra.mxu0 0.0
      %2336 = vmatprep.subr.mxu0 0.0
      %2337 = vmatpush1.msra.mxu0 0.0
      %2338 = vmatprep.subr.mxu0 0.0
      %2339 = vmatpush1.msra.mxu0 0.0
      %2340 = vmatprep.subr.mxu0 0.0
      %2341 = vmatpush1.msra.mxu0 0.0
      %2342 = vmatprep.subr.mxu0 0.0
      %2343 = vmatpush1.msra.mxu0 0.0
      %2344 = vmatprep.subr.mxu0 0.0
      %2345 = vmatpush1.msra.mxu0 0.0
      %2346 = vmatprep.subr.mxu0 0.0
      %2347 = vmatpush1.msra.mxu0 0.0
      %2348 = vmatprep.subr.mxu0 0.0
      %2349 = vmatpush1.msra.mxu0 0.0
      %2350 = vmatprep.subr.mxu0 0.0
      %2351 = vmatpush1.msra.mxu0 0.0
      %2352 = vmatprep.subr.mxu0 0.0
      %2353 = vmatpush1.msra.mxu0 0.0
      %2354 = vmatprep.subr.mxu0 0.0
      %2355 = vmatpush1.msra.mxu0 0.0
      %2356 = vmatprep.subr.mxu0 0.0
      %2357 = vmatpush1.msra.mxu0 0.0
      %2358 = vmatprep.subr.mxu0 0.0
      %2359 = vmatpush1.msra.mxu0 0.0
      %2360 = vmatprep.subr.mxu0 0.0
      %2361 = vmatpush1.msra.mxu0 0.0
      %2362 = vmatprep.subr.mxu0 0.0
      %2363 = vmatpush1.msra.mxu0 0.0
      %2364 = vmatprep.subr.mxu0 0.0
      %2365 = vmatpush1.msra.mxu0 0.0
      %2366 = vmatprep.subr.mxu0 0.0
      %2367 = vmatpush1.msra.mxu0 0.0
      %2368 = vmatprep.subr.mxu0 0.0
      %2369 = vmatpush1.msra.mxu0 0.0
      %2370 = vmatprep.subr.mxu0 0.0
      %2371 = vmatpush1.msra.mxu0 0.0
      %2372 = vmatprep.subr.mxu0 0.0
      %2373 = vmatpush1.msra.mxu0 0.0
      %2374 = vmatprep.subr.mxu0 0.0
      %2375 = vmatpush1.msra.mxu0 0.0
      %2376 = vmatprep.subr.mxu0 0.0
      %2377 = vmatpush1.msra.mxu0 0.0
      %2378 = vmatprep.subr.mxu0 0.0
      %2379 = vmatpush1.msra.mxu0 0.0
      %2380 = vmatprep.subr.mxu0 0.0
      %2381 = vmatpush1.msra.mxu0 0.0
      %2382 = vmatprep.subr.mxu0 0.0
      %2383 = vmatpush1.msra.mxu0 0.0
      %2384 = vmatprep.subr.mxu0 0.0
      %2385 = vmatpush1.msra.mxu0 0.0
      %2386 = vmatprep.subr.mxu0 0.0
      %2387 = vmatpush1.msra.mxu0 0.0
      %2388 = vmatprep.mubr.f32.mxu0 0.0
      %2389 = vmatmul.mubr.f32.gmra.mrb[0].mxu0 %v2317
      %v2390 = vpop.f32.mrb[0].mxu0
      %v2391 = vadd.f32 0.0, %v2390
      %v2392 = vpop.f32.mrb[0].mxu0
      %2393 = vmatprep.mubr.f32.mxu0 0.0
      %2394 = vmatmul.mubr.f32.gmra.mrb[0].mxu0 %v2320
      %v2395 = vpop.f32.mrb[0].mxu0
      %v2396 = vadd.f32 0.0, %v2395
      %v2397 = vpop.f32.mrb[0].mxu0
      %2398 = vdwg.mxu0
      %v2399 = vmul.f32 %v2391, %v2309
      %v2400 = vmul.f32 %v2396, %v2310
      %2401 = vrot.lane.b32.xlu0 %v1997, 112
      %v2402 = vpop.permute.xlu0 %2401
      %2403 = vrot.lane.b32.xlu0 %v1998, 112
      %v2404 = vpop.permute.xlu0 %2403
      %2405 = vrot.lane.b32.xlu0 %v1989, 80
      %v2406 = vpop.permute.xlu0 %2405
      %2407 = vrot.lane.b32.xlu0 %v1994, 80
      %v2408 = vpop.permute.xlu0 %2407
      %v2409 = vsel %vm644, %v2402, 0
      %v2411 = vsel %vm644, %v2404, 0
      %v2413 = vsel %vm644, %v2406, 0
      %v2415 = vsel %vm644, %v2408, 0
      %2417 = vmatprep.subr.mxu0 0.0
      %2418 = vmatpush1.xpose.msra.mxu0 %v2413
      %2419 = vmatprep.subr.mxu0 0.0
      %2420 = vmatpush1.xpose.msra.mxu0 %v2415
      %2421 = vmatprep.subr.mxu0 0.0
      %2422 = vmatpush1.xpose.msra.mxu0 0.0
      %2423 = vmatprep.subr.mxu0 0.0
      %2424 = vmatpush1.xpose.msra.mxu0 0.0
      %2425 = vmatprep.subr.mxu0 0.0
      %2426 = vmatpush1.xpose.msra.mxu0 0.0
      %2427 = vmatprep.subr.mxu0 0.0
      %2428 = vmatpush1.xpose.msra.mxu0 0.0
      %2429 = vmatprep.subr.mxu0 0.0
      %2430 = vmatpush1.xpose.msra.mxu0 0.0
      %2431 = vmatprep.subr.mxu0 0.0
      %2432 = vmatpush1.xpose.msra.mxu0 0.0
      %2433 = vmatprep.subr.mxu0 0.0
      %2434 = vmatpush1.xpose.msra.mxu0 0.0
      %2435 = vmatprep.subr.mxu0 0.0
      %2436 = vmatpush1.xpose.msra.mxu0 0.0
      %2437 = vmatprep.subr.mxu0 0.0
      %2438 = vmatpush1.xpose.msra.mxu0 0.0
      %2439 = vmatprep.subr.mxu0 0.0
      %2440 = vmatpush1.xpose.msra.mxu0 0.0
      %2441 = vmatprep.subr.mxu0 0.0
      %2442 = vmatpush1.xpose.msra.mxu0 0.0
      %2443 = vmatprep.subr.mxu0 0.0
      %2444 = vmatpush1.xpose.msra.mxu0 0.0
      %2445 = vmatprep.subr.mxu0 0.0
      %2446 = vmatpush1.xpose.msra.mxu0 0.0
      %2447 = vmatprep.subr.mxu0 0.0
      %2448 = vmatpush1.xpose.msra.mxu0 0.0
      %2449 = vmatprep.subr.mxu0 0.0
      %2450 = vmatpush1.xpose.msra.mxu0 0.0
      %2451 = vmatprep.subr.mxu0 0.0
      %2452 = vmatpush1.xpose.msra.mxu0 0.0
      %2453 = vmatprep.subr.mxu0 0.0
      %2454 = vmatpush1.xpose.msra.mxu0 0.0
      %2455 = vmatprep.subr.mxu0 0.0
      %2456 = vmatpush1.xpose.msra.mxu0 0.0
      %2457 = vmatprep.subr.mxu0 0.0
      %2458 = vmatpush1.xpose.msra.mxu0 0.0
      %2459 = vmatprep.subr.mxu0 0.0
      %2460 = vmatpush1.xpose.msra.mxu0 0.0
      %2461 = vmatprep.subr.mxu0 0.0
      %2462 = vmatpush1.xpose.msra.mxu0 0.0
      %2463 = vmatprep.subr.mxu0 0.0
      %2464 = vmatpush1.xpose.msra.mxu0 0.0
      %2465 = vmatprep.subr.mxu0 0.0
      %2466 = vmatpush1.xpose.msra.mxu0 0.0
      %2467 = vmatprep.subr.mxu0 0.0
      %2468 = vmatpush1.xpose.msra.mxu0 0.0
      %2469 = vmatprep.subr.mxu0 0.0
      %2470 = vmatpush1.xpose.msra.mxu0 0.0
      %2471 = vmatprep.subr.mxu0 0.0
      %2472 = vmatpush1.xpose.msra.mxu0 0.0
      %2473 = vmatprep.subr.mxu0 0.0
      %2474 = vmatpush1.xpose.msra.mxu0 0.0
      %2475 = vmatprep.subr.mxu0 0.0
      %2476 = vmatpush1.xpose.msra.mxu0 0.0
      %2477 = vmatprep.subr.mxu0 0.0
      %2478 = vmatpush1.xpose.msra.mxu0 0.0
      %2479 = vmatprep.subr.mxu0 0.0
      %2480 = vmatpush1.xpose.msra.mxu0 0.0
      %2481 = vmatprep.mubr.f32.mxu0 0.0
      %2482 = vmatmul.mubr.f32.gmra.mrb[0].mxu0 %v2409
      %v2483 = vpop.f32.mrb[0].mxu0
      %v2484 = vadd.f32 0.0, %v2483
      %v2485 = vpop.f32.mrb[0].mxu0
      %2486 = vmatprep.mubr.f32.mxu0 0.0
      %2487 = vmatmul.mubr.f32.gmra.mrb[0].mxu0 %v2411
      %v2488 = vpop.f32.mrb[0].mxu0
      %v2489 = vadd.f32 0.0, %v2488
      %v2490 = vpop.f32.mrb[0].mxu0
      %2491 = vdwg.mxu0
      %v2492 = vsel %vm730, %v2484, -inf
      %2493 = vmax.xlane.f32.xlu0 %v2492
      %v2494 = vpop.xlane.xlu0 %2493
      %v2495 = vsel %vm734, %v2489, -inf
      %2496 = vmax.xlane.f32.xlu0 %v2495
      %v2497 = vpop.xlane.xlu0 %2496
      %v2498 = vsub.f32 %v2484, %v2494
      %v2499 = vsub.f32 %v2489, %v2497
      %v2500 = vmul.f32 %v2498, 1.442695
      %v2501 = vpow.pop %v2500
      %v2502 = vmul.f32 %v2499, 1.442695
      %v2503 = vpow.pop %v2502
      %v2504 = vsel %vm730, %v2501, 0.0
      %2505 = vadd.xlane.f32.xlu0 %v2504
      %v2506 = vpop.xlane.xlu0 %2505
      %v2507 = vsel %vm734, %v2503, 0.0
      %2508 = vadd.xlane.f32.xlu0 %v2507
      %v2509 = vpop.xlane.xlu0 %2508
      %v2510 = vrcp.pop %v2506
      %v2511 = vrcp.pop %v2509
      %2512 = vrot.lane.b32.xlu0 %v1989, 48
      %v2513 = vpop.permute.xlu0 %2512
      %2514 = vrot.lane.b32.xlu0 %v1994, 48
      %v2515 = vpop.permute.xlu0 %2514
      %v2518 = vsel %vm730, %v2501, 0
      %v2521 = vsel %vm730, %v2503, 0
      %v2523 = vsel %vm763, %v2515, 0
      %2525 = vmatprep.subr.mxu0 0.0
      %2526 = vmatpush1.msra.mxu0 %v2513
      %2527 = vmatprep.subr.mxu0 0.0
      %2528 = vmatpush1.msra.mxu0 %v2523
      %2529 = vmatprep.subr.mxu0 0.0
      %2530 = vmatpush1.msra.mxu0 0.0
      %2531 = vmatprep.subr.mxu0 0.0
      %2532 = vmatpush1.msra.mxu0 0.0
      %2533 = vmatprep.subr.mxu0 0.0
      %2534 = vmatpush1.msra.mxu0 0.0
      %2535 = vmatprep.subr.mxu0 0.0
      %2536 = vmatpush1.msra.mxu0 0.0
      %2537 = vmatprep.subr.mxu0 0.0
      %2538 = vmatpush1.msra.mxu0 0.0
      %2539 = vmatprep.subr.mxu0 0.0
      %2540 = vmatpush1.msra.mxu0 0.0
      %2541 = vmatprep.subr.mxu0 0.0
      %2542 = vmatpush1.msra.mxu0 0.0
      %2543 = vmatprep.subr.mxu0 0.0
      %2544 = vmatpush1.msra.mxu0 0.0
      %2545 = vmatprep.subr.mxu0 0.0
      %2546 = vmatpush1.msra.mxu0 0.0
      %2547 = vmatprep.subr.mxu0 0.0
      %2548 = vmatpush1.msra.mxu0 0.0
      %2549 = vmatprep.subr.mxu0 0.0
      %2550 = vmatpush1.msra.mxu0 0.0
      %2551 = vmatprep.subr.mxu0 0.0
      %2552 = vmatpush1.msra.mxu0 0.0
      %2553 = vmatprep.subr.mxu0 0.0
      %2554 = vmatpush1.msra.mxu0 0.0
      %2555 = vmatprep.subr.mxu0 0.0
      %2556 = vmatpush1.msra.mxu0 0.0
      %2557 = vmatprep.subr.mxu0 0.0
      %2558 = vmatpush1.msra.mxu0 0.0
      %2559 = vmatprep.subr.mxu0 0.0
      %2560 = vmatpush1.msra.mxu0 0.0
      %2561 = vmatprep.subr.mxu0 0.0
      %2562 = vmatpush1.msra.mxu0 0.0
      %2563 = vmatprep.subr.mxu0 0.0
      %2564 = vmatpush1.msra.mxu0 0.0
      %2565 = vmatprep.subr.mxu0 0.0
      %2566 = vmatpush1.msra.mxu0 0.0
      %2567 = vmatprep.subr.mxu0 0.0
      %2568 = vmatpush1.msra.mxu0 0.0
      %2569 = vmatprep.subr.mxu0 0.0
      %2570 = vmatpush1.msra.mxu0 0.0
      %2571 = vmatprep.subr.mxu0 0.0
      %2572 = vmatpush1.msra.mxu0 0.0
      %2573 = vmatprep.subr.mxu0 0.0
      %2574 = vmatpush1.msra.mxu0 0.0
      %2575 = vmatprep.subr.mxu0 0.0
      %2576 = vmatpush1.msra.mxu0 0.0
      %2577 = vmatprep.subr.mxu0 0.0
      %2578 = vmatpush1.msra.mxu0 0.0
      %2579 = vmatprep.subr.mxu0 0.0
      %2580 = vmatpush1.msra.mxu0 0.0
      %2581 = vmatprep.subr.mxu0 0.0
      %2582 = vmatpush1.msra.mxu0 0.0
      %2583 = vmatprep.subr.mxu0 0.0
      %2584 = vmatpush1.msra.mxu0 0.0
      %2585 = vmatprep.subr.mxu0 0.0
      %2586 = vmatpush1.msra.mxu0 0.0
      %2587 = vmatprep.subr.mxu0 0.0
      %2588 = vmatpush1.msra.mxu0 0.0
      %2589 = vmatprep.mubr.f32.mxu0 0.0
      %2590 = vmatmul.mubr.f32.gmra.mrb[0].mxu0 %v2518
      %v2591 = vpop.f32.mrb[0].mxu0
      %v2592 = vadd.f32 0.0, %v2591
      %v2593 = vpop.f32.mrb[0].mxu0
      %2594 = vmatprep.mubr.f32.mxu0 0.0
      %2595 = vmatmul.mubr.f32.gmra.mrb[0].mxu0 %v2521
      %v2596 = vpop.f32.mrb[0].mxu0
      %v2597 = vadd.f32 0.0, %v2596
      %v2598 = vpop.f32.mrb[0].mxu0
      %2599 = vdwg.mxu0
      %v2600 = vmul.f32 %v2592, %v2510
      %v2601 = vmul.f32 %v2597, %v2511
      %2602 = vrot.lane.b32.xlu0 %v1997, 104
      %v2603 = vpop.permute.xlu0 %2602
      %2604 = vrot.lane.b32.xlu0 %v1998, 104
      %v2605 = vpop.permute.xlu0 %2604
      %2606 = vrot.lane.b32.xlu0 %v1989, 72
      %v2607 = vpop.permute.xlu0 %2606
      %2608 = vrot.lane.b32.xlu0 %v1994, 72
      %v2609 = vpop.permute.xlu0 %2608
      %v2610 = vsel %vm644, %v2603, 0
      %v2612 = vsel %vm644, %v2605, 0
      %v2614 = vsel %vm644, %v2607, 0
      %v2616 = vsel %vm644, %v2609, 0
      %2618 = vmatprep.subr.mxu0 0.0
      %2619 = vmatpush1.xpose.msra.mxu0 %v2614
      %2620 = vmatprep.subr.mxu0 0.0
      %2621 = vmatpush1.xpose.msra.mxu0 %v2616
      %2622 = vmatprep.subr.mxu0 0.0
      %2623 = vmatpush1.xpose.msra.mxu0 0.0
      %2624 = vmatprep.subr.mxu0 0.0
      %2625 = vmatpush1.xpose.msra.mxu0 0.0
      %2626 = vmatprep.subr.mxu0 0.0
      %2627 = vmatpush1.xpose.msra.mxu0 0.0
      %2628 = vmatprep.subr.mxu0 0.0
      %2629 = vmatpush1.xpose.msra.mxu0 0.0
      %2630 = vmatprep.subr.mxu0 0.0
      %2631 = vmatpush1.xpose.msra.mxu0 0.0
      %2632 = vmatprep.subr.mxu0 0.0
      %2633 = vmatpush1.xpose.msra.mxu0 0.0
      %2634 = vmatprep.subr.mxu0 0.0
      %2635 = vmatpush1.xpose.msra.mxu0 0.0
      %2636 = vmatprep.subr.mxu0 0.0
      %2637 = vmatpush1.xpose.msra.mxu0 0.0
      %2638 = vmatprep.subr.mxu0 0.0
      %2639 = vmatpush1.xpose.msra.mxu0 0.0
      %2640 = vmatprep.subr.mxu0 0.0
      %2641 = vmatpush1.xpose.msra.mxu0 0.0
      %2642 = vmatprep.subr.mxu0 0.0
      %2643 = vmatpush1.xpose.msra.mxu0 0.0
      %2644 = vmatprep.subr.mxu0 0.0
      %2645 = vmatpush1.xpose.msra.mxu0 0.0
      %2646 = vmatprep.subr.mxu0 0.0
      %2647 = vmatpush1.xpose.msra.mxu0 0.0
      %2648 = vmatprep.subr.mxu0 0.0
      %2649 = vmatpush1.xpose.msra.mxu0 0.0
      %2650 = vmatprep.subr.mxu0 0.0
      %2651 = vmatpush1.xpose.msra.mxu0 0.0
      %2652 = vmatprep.subr.mxu0 0.0
      %2653 = vmatpush1.xpose.msra.mxu0 0.0
      %2654 = vmatprep.subr.mxu0 0.0
      %2655 = vmatpush1.xpose.msra.mxu0 0.0
      %2656 = vmatprep.subr.mxu0 0.0
      %2657 = vmatpush1.xpose.msra.mxu0 0.0
      %2658 = vmatprep.subr.mxu0 0.0
      %2659 = vmatpush1.xpose.msra.mxu0 0.0
      %2660 = vmatprep.subr.mxu0 0.0
      %2661 = vmatpush1.xpose.msra.mxu0 0.0
      %2662 = vmatprep.subr.mxu0 0.0
      %2663 = vmatpush1.xpose.msra.mxu0 0.0
      %2664 = vmatprep.subr.mxu0 0.0
      %2665 = vmatpush1.xpose.msra.mxu0 0.0
      %2666 = vmatprep.subr.mxu0 0.0
      %2667 = vmatpush1.xpose.msra.mxu0 0.0
      %2668 = vmatprep.subr.mxu0 0.0
      %2669 = vmatpush1.xpose.msra.mxu0 0.0
      %2670 = vmatprep.subr.mxu0 0.0
      %2671 = vmatpush1.xpose.msra.mxu0 0.0
      %2672 = vmatprep.subr.mxu0 0.0
      %2673 = vmatpush1.xpose.msra.mxu0 0.0
      %2674 = vmatprep.subr.mxu0 0.0
      %2675 = vmatpush1.xpose.msra.mxu0 0.0
      %2676 = vmatprep.subr.mxu0 0.0
      %2677 = vmatpush1.xpose.msra.mxu0 0.0
      %2678 = vmatprep.subr.mxu0 0.0
      %2679 = vmatpush1.xpose.msra.mxu0 0.0
      %2680 = vmatprep.subr.mxu0 0.0
      %2681 = vmatpush1.xpose.msra.mxu0 0.0
      %2682 = vmatprep.mubr.f32.mxu0 0.0
      %2683 = vmatmul.mubr.f32.gmra.mrb[0].mxu0 %v2610
      %v2684 = vpop.f32.mrb[0].mxu0
      %v2685 = vadd.f32 0.0, %v2684
      %v2686 = vpop.f32.mrb[0].mxu0
      %2687 = vmatprep.mubr.f32.mxu0 0.0
      %2688 = vmatmul.mubr.f32.gmra.mrb[0].mxu0 %v2612
      %v2689 = vpop.f32.mrb[0].mxu0
      %v2690 = vadd.f32 0.0, %v2689
      %v2691 = vpop.f32.mrb[0].mxu0
      %2692 = vdwg.mxu0
      %v2693 = vsel %vm730, %v2685, -inf
      %2694 = vmax.xlane.f32.xlu0 %v2693
      %v2695 = vpop.xlane.xlu0 %2694
      %v2696 = vsel %vm734, %v2690, -inf
      %2697 = vmax.xlane.f32.xlu0 %v2696
      %v2698 = vpop.xlane.xlu0 %2697
      %v2699 = vsub.f32 %v2685, %v2695
      %v2700 = vsub.f32 %v2690, %v2698
      %v2701 = vmul.f32 %v2699, 1.442695
      %v2702 = vpow.pop %v2701
      %v2703 = vmul.f32 %v2700, 1.442695
      %v2704 = vpow.pop %v2703
      %v2705 = vsel %vm730, %v2702, 0.0
      %2706 = vadd.xlane.f32.xlu0 %v2705
      %v2707 = vpop.xlane.xlu0 %2706
      %v2708 = vsel %vm734, %v2704, 0.0
      %2709 = vadd.xlane.f32.xlu0 %v2708
      %v2710 = vpop.xlane.xlu0 %2709
      %v2711 = vrcp.pop %v2707
      %v2712 = vrcp.pop %v2710
      %2713 = vrot.lane.b32.xlu0 %v1989, 40
      %v2714 = vpop.permute.xlu0 %2713
      %2715 = vrot.lane.b32.xlu0 %v1994, 40
      %v2716 = vpop.permute.xlu0 %2715
      %v2719 = vsel %vm730, %v2702, 0
      %v2722 = vsel %vm730, %v2704, 0
      %v2724 = vsel %vm763, %v2716, 0
      %2726 = vmatprep.subr.mxu0 0.0
      %2727 = vmatpush1.msra.mxu0 %v2714
      %2728 = vmatprep.subr.mxu0 0.0
      %2729 = vmatpush1.msra.mxu0 %v2724
      %2730 = vmatprep.subr.mxu0 0.0
      %2731 = vmatpush1.msra.mxu0 0.0
      %2732 = vmatprep.subr.mxu0 0.0
      %2733 = vmatpush1.msra.mxu0 0.0
      %2734 = vmatprep.subr.mxu0 0.0
      %2735 = vmatpush1.msra.mxu0 0.0
      %2736 = vmatprep.subr.mxu0 0.0
      %2737 = vmatpush1.msra.mxu0 0.0
      %2738 = vmatprep.subr.mxu0 0.0
      %2739 = vmatpush1.msra.mxu0 0.0
      %2740 = vmatprep.subr.mxu0 0.0
      %2741 = vmatpush1.msra.mxu0 0.0
      %2742 = vmatprep.subr.mxu0 0.0
      %2743 = vmatpush1.msra.mxu0 0.0
      %2744 = vmatprep.subr.mxu0 0.0
      %2745 = vmatpush1.msra.mxu0 0.0
      %2746 = vmatprep.subr.mxu0 0.0
      %2747 = vmatpush1.msra.mxu0 0.0
      %2748 = vmatprep.subr.mxu0 0.0
      %2749 = vmatpush1.msra.mxu0 0.0
      %2750 = vmatprep.subr.mxu0 0.0
      %2751 = vmatpush1.msra.mxu0 0.0
      %2752 = vmatprep.subr.mxu0 0.0
      %2753 = vmatpush1.msra.mxu0 0.0
      %2754 = vmatprep.subr.mxu0 0.0
      %2755 = vmatpush1.msra.mxu0 0.0
      %2756 = vmatprep.subr.mxu0 0.0
      %2757 = vmatpush1.msra.mxu0 0.0
      %2758 = vmatprep.subr.mxu0 0.0
      %2759 = vmatpush1.msra.mxu0 0.0
      %2760 = vmatprep.subr.mxu0 0.0
      %2761 = vmatpush1.msra.mxu0 0.0
      %2762 = vmatprep.subr.mxu0 0.0
      %2763 = vmatpush1.msra.mxu0 0.0
      %2764 = vmatprep.subr.mxu0 0.0
      %2765 = vmatpush1.msra.mxu0 0.0
      %2766 = vmatprep.subr.mxu0 0.0
      %2767 = vmatpush1.msra.mxu0 0.0
      %2768 = vmatprep.subr.mxu0 0.0
      %2769 = vmatpush1.msra.mxu0 0.0
      %2770 = vmatprep.subr.mxu0 0.0
      %2771 = vmatpush1.msra.mxu0 0.0
      %2772 = vmatprep.subr.mxu0 0.0
      %2773 = vmatpush1.msra.mxu0 0.0
      %2774 = vmatprep.subr.mxu0 0.0
      %2775 = vmatpush1.msra.mxu0 0.0
      %2776 = vmatprep.subr.mxu0 0.0
      %2777 = vmatpush1.msra.mxu0 0.0
      %2778 = vmatprep.subr.mxu0 0.0
      %2779 = vmatpush1.msra.mxu0 0.0
      %2780 = vmatprep.subr.mxu0 0.0
      %2781 = vmatpush1.msra.mxu0 0.0
      %2782 = vmatprep.subr.mxu0 0.0
      %2783 = vmatpush1.msra.mxu0 0.0
      %2784 = vmatprep.subr.mxu0 0.0
      %2785 = vmatpush1.msra.mxu0 0.0
      %2786 = vmatprep.subr.mxu0 0.0
      %2787 = vmatpush1.msra.mxu0 0.0
      %2788 = vmatprep.subr.mxu0 0.0
      %2789 = vmatpush1.msra.mxu0 0.0
      %2790 = vmatprep.mubr.f32.mxu0 0.0
      %2791 = vmatmul.mubr.f32.gmra.mrb[0].mxu0 %v2719
      %v2792 = vpop.f32.mrb[0].mxu0
      %v2793 = vadd.f32 0.0, %v2792
      %v2794 = vpop.f32.mrb[0].mxu0
      %2795 = vmatprep.mubr.f32.mxu0 0.0
      %2796 = vmatmul.mubr.f32.gmra.mrb[0].mxu0 %v2722
      %v2797 = vpop.f32.mrb[0].mxu0
      %v2798 = vadd.f32 0.0, %v2797
      %v2799 = vpop.f32.mrb[0].mxu0
      %2800 = vdwg.mxu0
      %v2801 = vmul.f32 %v2793, %v2711
      %v2802 = vmul.f32 %v2798, %v2712
      %2805 = vrot.lane.b32.xlu0 %v2399, 8
      %v2806 = vpop.permute.xlu0 %2805
      %2807 = vrot.lane.b32.xlu0 %v2400, 8
      %v2808 = vpop.permute.xlu0 %2807
      %2813 = vrot.lane.b32.xlu0 %v2600, 16
      %v2814 = vpop.permute.xlu0 %2813
      %2815 = vrot.lane.b32.xlu0 %v2601, 16
      %v2816 = vpop.permute.xlu0 %2815
      %2821 = vrot.lane.b32.xlu0 %v2801, 24
      %v2822 = vpop.permute.xlu0 %2821
      %2823 = vrot.lane.b32.xlu0 %v2802, 24
      %v2824 = vpop.permute.xlu0 %2823
      %v2827 = vsel %vm644, %v2198, %v2806
      %v2828 = vsel %vm644, %v2199, %v2808
      %v2829 = vsel %vm1472, %v2827, %v2814
      %v2830 = vsel %vm1472, %v2828, %v2816
      %v2831 = vsel %vm1475, %v2829, %v2822
      %v2832 = vsel %vm1475, %v2830, %v2824
      %s2833 = scalar_lea.vmem %s5, 32
      %v2834 = vld [vmem:[%s2833] sm:$0xff]
      %v2835 = vld [vmem:[%s2833 + $0x8] sm:$0xff]
      %v2836 = vld [vmem:[%s2833 + $0x10] sm:$0xff]
      %v2837 = vld [vmem:[%s2833 + $0x18] sm:$0xff]
      %s2838 = scalar_lea.vmem %s6, 1
      %v2839 = vld [vmem:[%s2838] sm:$0x1]
      %v2841 = vlaneseq
      %v2842 = vshrl.u32 %v2841, 7
      %v2843 = vsub.s32 0, %v2842
      %v2844 = vrot.slane %v2839, %v2843
      %v2847 = vsel %vm499, %v2831, 0
      %v2850 = vsel %vm499, %v2832, 0
      %2852 = vmatprep.subr.mxu0 0.0
      %2853 = vmatpush1.msra.mxu0 %v2834
      %2854 = vmatprep.subr.mxu0 0.0
      %2855 = vmatpush1.msra.mxu0 %v2835
      %2856 = vmatprep.subr.mxu0 0.0
      %2857 = vmatpush1.msra.mxu0 %v2836
      %2858 = vmatprep.subr.mxu0 0.0
      %2859 = vmatpush1.msra.mxu0 %v2837
      %2860 = vmatprep.subr.mxu0 0.0
      %2861 = vmatpush1.msra.mxu0 0.0
      %2862 = vmatprep.subr.mxu0 0.0
      %2863 = vmatpush1.msra.mxu0 0.0
      %2864 = vmatprep.subr.mxu0 0.0
      %2865 = vmatpush1.msra.mxu0 0.0
      %2866 = vmatprep.subr.mxu0 0.0
      %2867 = vmatpush1.msra.mxu0 0.0
      %2868 = vmatprep.subr.mxu0 0.0
      %2869 = vmatpush1.msra.mxu0 0.0
      %2870 = vmatprep.subr.mxu0 0.0
      %2871 = vmatpush1.msra.mxu0 0.0
      %2872 = vmatprep.subr.mxu0 0.0
      %2873 = vmatpush1.msra.mxu0 0.0
      %2874 = vmatprep.subr.mxu0 0.0
      %2875 = vmatpush1.msra.mxu0 0.0
      %2876 = vmatprep.subr.mxu0 0.0
      %2877 = vmatpush1.msra.mxu0 0.0
      %2878 = vmatprep.subr.mxu0 0.0
      %2879 = vmatpush1.msra.mxu0 0.0
      %2880 = vmatprep.subr.mxu0 0.0
      %2881 = vmatpush1.msra.mxu0 0.0
      %2882 = vmatprep.subr.mxu0 0.0
      %2883 = vmatpush1.msra.mxu0 0.0
      %2884 = vmatprep.subr.mxu0 0.0
      %2885 = vmatpush1.msra.mxu0 0.0
      %2886 = vmatprep.subr.mxu0 0.0
      %2887 = vmatpush1.msra.mxu0 0.0
      %2888 = vmatprep.subr.mxu0 0.0
      %2889 = vmatpush1.msra.mxu0 0.0
      %2890 = vmatprep.subr.mxu0 0.0
      %2891 = vmatpush1.msra.mxu0 0.0
      %2892 = vmatprep.subr.mxu0 0.0
      %2893 = vmatpush1.msra.mxu0 0.0
      %2894 = vmatprep.subr.mxu0 0.0
      %2895 = vmatpush1.msra.mxu0 0.0
      %2896 = vmatprep.subr.mxu0 0.0
      %2897 = vmatpush1.msra.mxu0 0.0
      %2898 = vmatprep.subr.mxu0 0.0
      %2899 = vmatpush1.msra.mxu0 0.0
      %2900 = vmatprep.subr.mxu0 0.0
      %2901 = vmatpush1.msra.mxu0 0.0
      %2902 = vmatprep.subr.mxu0 0.0
      %2903 = vmatpush1.msra.mxu0 0.0
      %2904 = vmatprep.subr.mxu0 0.0
      %2905 = vmatpush1.msra.mxu0 0.0
      %2906 = vmatprep.subr.mxu0 0.0
      %2907 = vmatpush1.msra.mxu0 0.0
      %2908 = vmatprep.subr.mxu0 0.0
      %2909 = vmatpush1.msra.mxu0 0.0
      %2910 = vmatprep.subr.mxu0 0.0
      %2911 = vmatpush1.msra.mxu0 0.0
      %2912 = vmatprep.subr.mxu0 0.0
      %2913 = vmatpush1.msra.mxu0 0.0
      %2914 = vmatprep.subr.mxu0 0.0
      %2915 = vmatpush1.msra.mxu0 0.0
      %2916 = vmatprep.mubr.f32.mxu0 0.0
      %2917 = vmatmul.mubr.f32.gmra.mrb[0].mxu0 %v2847
      %v2918 = vpop.f32.mrb[0].mxu0
      %v2919 = vadd.f32 %v2844, %v2918
      %v2920 = vpop.f32.mrb[0].mxu0
      %2921 = vmatprep.mubr.f32.mxu0 0.0
      %2922 = vmatmul.mubr.f32.gmra.mrb[0].mxu0 %v2850
      %v2923 = vpop.f32.mrb[0].mxu0
      %v2924 = vadd.f32 %v2844, %v2923
      %v2925 = vpop.f32.mrb[0].mxu0
      %2926 = vdwg.mxu0
      %v2927 = vadd.f32 %v2919, %v1901
      %v2928 = vadd.f32 %v2924, %v1902
      %s2929 = scalar_lea.vmem %s7, 1
      %v2930 = vld [vmem:[%s2929] sm:$0x1]
      %s2931 = scalar_lea.vmem %s8, 1
      %v2932 = vld [vmem:[%s2931] sm:$0x1]
      %v2933 = vsel %vm499, %v2927, 0.0
      %2934 = vadd.xlane.f32.xlu0 %v2933
      %v2935 = vpop.xlane.xlu0 %2934
      %v2936 = vsel %vm503, %v2928, 0.0
      %2937 = vadd.xlane.f32.xlu0 %v2936
      %v2938 = vpop.xlane.xlu0 %2937
      %v2939 = vmul.f32 %v2935, %v507
      %v2940 = vmul.f32 %v2938, %v507
      %v2941 = vsub.f32 %v2927, %v2939
      %v2942 = vsub.f32 %v2928, %v2940
      %v2943 = vmul.f32 %v2941, %v2941
      %v2944 = vmul.f32 %v2942, %v2942
      %v2945 = vsel %vm499, %v2943, 0.0
      %2946 = vadd.xlane.f32.xlu0 %v2945
      %v2947 = vpop.xlane.xlu0 %2946
      %v2948 = vsel %vm503, %v2944, 0.0
      %2949 = vadd.xlane.f32.xlu0 %v2948
      %v2950 = vpop.xlane.xlu0 %2949
      %v2951 = vmul.f32 %v2947, %v507
      %v2952 = vmul.f32 %v2950, %v507
      %v2953 = vadd.f32 %v2951, 1e-12
      %v2954 = vadd.f32 %v2952, 1e-12
      %v2955 = vrsqrt.pop %v2953
      %v2956 = vrsqrt.pop %v2954
      %v2957 = vmul.f32 %v2941, %v2955
      %v2958 = vmul.f32 %v2942, %v2956
      %v2960 = vlaneseq
      %v2961 = vshrl.u32 %v2960, 7
      %v2962 = vsub.s32 0, %v2961
      %v2963 = vrot.slane %v2930, %v2962
      %v2965 = vmul.f32 %v2957, %v2963
      %v2966 = vmul.f32 %v2958, %v2963
      %v2968 = vlaneseq
      %v2969 = vshrl.u32 %v2968, 7
      %v2970 = vsub.s32 0, %v2969
      %v2971 = vrot.slane %v2932, %v2970
      %v2973 = vadd.f32 %v2965, %v2971
      %v2974 = vadd.f32 %v2966, %v2971
      %s2975 = scalar_lea.vmem %s9, 32
      %v2976 = vld [vmem:[%s2975] sm:$0xff]
      %v2977 = vld [vmem:[%s2975 + $0x8] sm:$0xff]
      %v2978 = vld [vmem:[%s2975 + $0x10] sm:$0xff]
      %v2979 = vld [vmem:[%s2975 + $0x18] sm:$0xff]
      %s2980 = scalar_lea.vmem %s10, 1
      %v2981 = vld [vmem:[%s2980] sm:$0x1]
      %v2983 = vlaneseq
      %v2984 = vshrl.u32 %v2983, 7
      %v2985 = vsub.s32 0, %v2984
      %v2986 = vrot.slane %v2981, %v2985
      %v2989 = vsel %vm499, %v2973, 0
      %v2992 = vsel %vm499, %v2974, 0
      %2994 = vmatprep.subr.mxu0 0.0
      %2995 = vmatpush1.msra.mxu0 %v2976
      %2996 = vmatprep.subr.mxu0 0.0
      %2997 = vmatpush1.msra.mxu0 %v2977
      %2998 = vmatprep.subr.mxu0 0.0
      %2999 = vmatpush1.msra.mxu0 %v2978
      %3000 = vmatprep.subr.mxu0 0.0
      %3001 = vmatpush1.msra.mxu0 %v2979
      %3002 = vmatprep.subr.mxu0 0.0
      %3003 = vmatpush1.msra.mxu0 0.0
      %3004 = vmatprep.subr.mxu0 0.0
      %3005 = vmatpush1.msra.mxu0 0.0
      %3006 = vmatprep.subr.mxu0 0.0
      %3007 = vmatpush1.msra.mxu0 0.0
      %3008 = vmatprep.subr.mxu0 0.0
      %3009 = vmatpush1.msra.mxu0 0.0
      %3010 = vmatprep.subr.mxu0 0.0
      %3011 = vmatpush1.msra.mxu0 0.0
      %3012 = vmatprep.subr.mxu0 0.0
      %3013 = vmatpush1.msra.mxu0 0.0
      %3014 = vmatprep.subr.mxu0 0.0
      %3015 = vmatpush1.msra.mxu0 0.0
      %3016 = vmatprep.subr.mxu0 0.0
      %3017 = vmatpush1.msra.mxu0 0.0
      %3018 = vmatprep.subr.mxu0 0.0
      %3019 = vmatpush1.msra.mxu0 0.0
      %3020 = vmatprep.subr.mxu0 0.0
      %3021 = vmatpush1.msra.mxu0 0.0
      %3022 = vmatprep.subr.mxu0 0.0
      %3023 = vmatpush1.msra.mxu0 0.0
      %3024 = vmatprep.subr.mxu0 0.0
      %3025 = vmatpush1.msra.mxu0 0.0
      %3026 = vmatprep.subr.mxu0 0.0
      %3027 = vmatpush1.msra.mxu0 0.0
      %3028 = vmatprep.subr.mxu0 0.0
      %3029 = vmatpush1.msra.mxu0 0.0
      %3030 = vmatprep.subr.mxu0 0.0
      %3031 = vmatpush1.msra.mxu0 0.0
      %3032 = vmatprep.subr.mxu0 0.0
      %3033 = vmatpush1.msra.mxu0 0.0
      %3034 = vmatprep.subr.mxu0 0.0
      %3035 = vmatpush1.msra.mxu0 0.0
      %3036 = vmatprep.subr.mxu0 0.0
      %3037 = vmatpush1.msra.mxu0 0.0
      %3038 = vmatprep.subr.mxu0 0.0
      %3039 = vmatpush1.msra.mxu0 0.0
      %3040 = vmatprep.subr.mxu0 0.0
      %3041 = vmatpush1.msra.mxu0 0.0
      %3042 = vmatprep.subr.mxu0 0.0
      %3043 = vmatpush1.msra.mxu0 0.0
      %3044 = vmatprep.subr.mxu0 0.0
      %3045 = vmatpush1.msra.mxu0 0.0
      %3046 = vmatprep.subr.mxu0 0.0
      %3047 = vmatpush1.msra.mxu0 0.0
      %3048 = vmatprep.subr.mxu0 0.0
      %3049 = vmatpush1.msra.mxu0 0.0
      %3050 = vmatprep.subr.mxu0 0.0
      %3051 = vmatpush1.msra.mxu0 0.0
      %3052 = vmatprep.subr.mxu0 0.0
      %3053 = vmatpush1.msra.mxu0 0.0
      %3054 = vmatprep.subr.mxu0 0.0
      %3055 = vmatpush1.msra.mxu0 0.0
      %3056 = vmatprep.subr.mxu0 0.0
      %3057 = vmatpush1.msra.mxu0 0.0
      %3058 = vmatprep.mubr.f32.mxu0 0.0
      %3059 = vmatmul.mubr.f32.gmra.mrb[0].mxu0 %v2989
      %v3060 = vpop.f32.mrb[0].mxu0
      %v3061 = vadd.f32 %v2986, %v3060
      %v3062 = vpop.f32.mrb[0].mxu0
      %3063 = vmatprep.mubr.f32.mxu0 0.0
      %3064 = vmatmul.mubr.f32.gmra.mrb[0].mxu0 %v2992
      %v3065 = vpop.f32.mrb[0].mxu0
      %v3066 = vadd.f32 %v2986, %v3065
      %v3067 = vpop.f32.mrb[0].mxu0
      %3068 = vdwg.mxu0
      %v3069 = vmul.f32 %v3061, 0.5
      %v3070 = vmul.f32 %v3066, 0.5
      %v3071 = vmul.f32 %v3061, 0.70710677
      %v3072 = vmul.f32 %v3066, 0.70710677
      %v3073 = vand.u32 2147483647, %v3071
      %v3074 = vand.u32 2147483647, %v3072
      %v3075 = vmul.f32 %v3073, 0.3275911
      %v3076 = vmul.f32 %v3074, 0.3275911
      %v3077 = vadd.f32 %v3075, 1.0
      %v3078 = vadd.f32 %v3076, 1.0
      %v3079 = vrcp.pop %v3077
      %v3080 = vrcp.pop %v3078
      %v3081 = vmul.f32 %v3079, 1.0614054
      %v3082 = vmul.f32 %v3080, 1.0614054
      %v3083 = vadd.f32 %v3081, -1.4531521
      %v3084 = vadd.f32 %v3082, -1.4531521
      %v3085 = vmul.f32 %v3083, %v3079
      %v3086 = vmul.f32 %v3084, %v3080
      %v3087 = vadd.f32 %v3085, 1.4214138
      %v3088 = vadd.f32 %v3086, 1.4214138
      %v3089 = vmul.f32 %v3087, %v3079
      %v3090 = vmul.f32 %v3088, %v3080
      %v3091 = vadd.f32 %v3089, -0.28449672
      %v3092 = vadd.f32 %v3090, -0.28449672
      %v3093 = vmul.f32 %v3091, %v3079
      %v3094 = vmul.f32 %v3092, %v3080
      %v3095 = vadd.f32 %v3093, 0.2548296
      %v3096 = vadd.f32 %v3094, 0.2548296
      %v3097 = vmul.f32 %v3095, %v3079
      %v3098 = vmul.f32 %v3096, %v3080
      %v3099 = vsub.f32 0.0, %v3073
      %v3100 = vsub.f32 0.0, %v3074
      %v3101 = vmul.f32 %v3099, %v3073
      %v3102 = vmul.f32 %v3100, %v3074
      %v3103 = vmul.f32 %v3101, 1.442695
      %v3104 = vpow.pop %v3103
      %v3105 = vmul.f32 %v3102, 1.442695
      %v3106 = vpow.pop %v3105
      %v3107 = vmul.f32 %v3097, %v3104
      %v3108 = vmul.f32 %v3098, %v3106
      %v3109 = vsub.f32 1.0, %v3107
      %v3110 = vsub.f32 1.0, %v3108
      %vm3111 = vcmp.ge.f32.partialorder %v3071, 0.0
      %vm3112 = vcmp.ge.f32.partialorder %v3072, 0.0
      %v3113 = vsub.f32 0.0, %v3109
      %v3114 = vsub.f32 0.0, %v3110
      %v3115 = vsel %vm3111, %v3109, %v3113
      %v3116 = vsel %vm3112, %v3110, %v3114
      %v3117 = vadd.f32 %v3115, 1.0
      %v3118 = vadd.f32 %v3116, 1.0
      %v3119 = vmul.f32 %v3069, %v3117
      %v3120 = vmul.f32 %v3070, %v3118
      %s3121 = scalar_lea.vmem %s11, 64
      %v3122 = vld [vmem:[%s3121] sm:$0xff]
      %v3123 = vld [vmem:[%s3121 + $0x8] sm:$0xff]
      %v3124 = vld [vmem:[%s3121 + $0x10] sm:$0xff]
      %v3125 = vld [vmem:[%s3121 + $0x18] sm:$0xff]
      %v3126 = vld [vmem:[%s3121 + $0x20] sm:$0xff]
      %v3127 = vld [vmem:[%s3121 + $0x28] sm:$0xff]
      %v3128 = vld [vmem:[%s3121 + $0x30] sm:$0xff]
      %v3129 = vld [vmem:[%s3121 + $0x38] sm:$0xff]
      %s3130 = scalar_lea.vmem %s12, 1
      %v3131 = vld [vmem:[%s3130] sm:$0x1]
      %v3133 = vlaneseq
      %v3134 = vshrl.u32 %v3133, 7
      %v3135 = vsub.s32 0, %v3134
      %v3136 = vrot.slane %v3131, %v3135
      %v3139 = vsel %vm1775, %v3119, 0
      %v3142 = vsel %vm1775, %v3120, 0
      %3144 = vmatprep.subr.mxu0 0.0
      %3145 = vmatpush1.msra.mxu0 %v3122
      %3146 = vmatprep.subr.mxu0 0.0
      %3147 = vmatpush1.msra.mxu0 %v3123
      %3148 = vmatprep.subr.mxu0 0.0
      %3149 = vmatpush1.msra.mxu0 %v3124
      %3150 = vmatprep.subr.mxu0 0.0
      %3151 = vmatpush1.msra.mxu0 %v3125
      %3152 = vmatprep.subr.mxu0 0.0
      %3153 = vmatpush1.msra.mxu0 %v3126
      %3154 = vmatprep.subr.mxu0 0.0
      %3155 = vmatpush1.msra.mxu0 %v3127
      %3156 = vmatprep.subr.mxu0 0.0
      %3157 = vmatpush1.msra.mxu0 %v3128
      %3158 = vmatprep.subr.mxu0 0.0
      %3159 = vmatpush1.msra.mxu0 %v3129
      %3160 = vmatprep.subr.mxu0 0.0
      %3161 = vmatpush1.msra.mxu0 0.0
      %3162 = vmatprep.subr.mxu0 0.0
      %3163 = vmatpush1.msra.mxu0 0.0
      %3164 = vmatprep.subr.mxu0 0.0
      %3165 = vmatpush1.msra.mxu0 0.0
      %3166 = vmatprep.subr.mxu0 0.0
      %3167 = vmatpush1.msra.mxu0 0.0
      %3168 = vmatprep.subr.mxu0 0.0
      %3169 = vmatpush1.msra.mxu0 0.0
      %3170 = vmatprep.subr.mxu0 0.0
      %3171 = vmatpush1.msra.mxu0 0.0
      %3172 = vmatprep.subr.mxu0 0.0
      %3173 = vmatpush1.msra.mxu0 0.0
      %3174 = vmatprep.subr.mxu0 0.0
      %3175 = vmatpush1.msra.mxu0 0.0
      %3176 = vmatprep.subr.mxu0 0.0
      %3177 = vmatpush1.msra.mxu0 0.0
      %3178 = vmatprep.subr.mxu0 0.0
      %3179 = vmatpush1.msra.mxu0 0.0
      %3180 = vmatprep.subr.mxu0 0.0
      %3181 = vmatpush1.msra.mxu0 0.0
      %3182 = vmatprep.subr.mxu0 0.0
      %3183 = vmatpush1.msra.mxu0 0.0
      %3184 = vmatprep.subr.mxu0 0.0
      %3185 = vmatpush1.msra.mxu0 0.0
      %3186 = vmatprep.subr.mxu0 0.0
      %3187 = vmatpush1.msra.mxu0 0.0
      %3188 = vmatprep.subr.mxu0 0.0
      %3189 = vmatpush1.msra.mxu0 0.0
      %3190 = vmatprep.subr.mxu0 0.0
      %3191 = vmatpush1.msra.mxu0 0.0
      %3192 = vmatprep.subr.mxu0 0.0
      %3193 = vmatpush1.msra.mxu0 0.0
      %3194 = vmatprep.subr.mxu0 0.0
      %3195 = vmatpush1.msra.mxu0 0.0
      %3196 = vmatprep.subr.mxu0 0.0
      %3197 = vmatpush1.msra.mxu0 0.0
      %3198 = vmatprep.subr.mxu0 0.0
      %3199 = vmatpush1.msra.mxu0 0.0
      %3200 = vmatprep.subr.mxu0 0.0
      %3201 = vmatpush1.msra.mxu0 0.0
      %3202 = vmatprep.subr.mxu0 0.0
      %3203 = vmatpush1.msra.mxu0 0.0
      %3204 = vmatprep.subr.mxu0 0.0
      %3205 = vmatpush1.msra.mxu0 0.0
      %3206 = vmatprep.subr.mxu0 0.0
      %3207 = vmatpush1.msra.mxu0 0.0
      %3208 = vmatprep.mubr.f32.mxu0 0.0
      %3209 = vmatmul.mubr.f32.gmra.mrb[0].mxu0 %v3139
      %v3210 = vpop.f32.mrb[0].mxu0
      %v3211 = vadd.f32 %v3136, %v3210
      %v3212 = vpop.f32.mrb[0].mxu0
      %3213 = vmatprep.mubr.f32.mxu0 0.0
      %3214 = vmatmul.mubr.f32.gmra.mrb[0].mxu0 %v3142
      %v3215 = vpop.f32.mrb[0].mxu0
      %v3216 = vadd.f32 %v3136, %v3215
      %v3217 = vpop.f32.mrb[0].mxu0
      %3218 = vdwg.mxu0
      %v3219 = vadd.f32 %v3211, %v2973
      %v3220 = vadd.f32 %v3216, %v2974
      %s3221 = scalar_lea.vmem %s13, 1
      %v3222 = vld [vmem:[%s3221] sm:$0x1]
      %s3223 = scalar_lea.vmem %s14, 1
      %v3224 = vld [vmem:[%s3223] sm:$0x1]
      %v3225 = vsel %vm499, %v3219, 0.0
      %3226 = vadd.xlane.f32.xlu0 %v3225
      %v3227 = vpop.xlane.xlu0 %3226
      %v3228 = vsel %vm503, %v3220, 0.0
      %3229 = vadd.xlane.f32.xlu0 %v3228
      %v3230 = vpop.xlane.xlu0 %3229
      %v3231 = vmul.f32 %v3227, %v507
      %v3232 = vmul.f32 %v3230, %v507
      %v3233 = vsub.f32 %v3219, %v3231
      %v3234 = vsub.f32 %v3220, %v3232
      %v3235 = vmul.f32 %v3233, %v3233
      %v3236 = vmul.f32 %v3234, %v3234
      %v3237 = vsel %vm499, %v3235, 0.0
      %3238 = vadd.xlane.f32.xlu0 %v3237
      %v3239 = vpop.xlane.xlu0 %3238
      %v3240 = vsel %vm503, %v3236, 0.0
      %3241 = vadd.xlane.f32.xlu0 %v3240
      %v3242 = vpop.xlane.xlu0 %3241
      %v3243 = vmul.f32 %v3239, %v507
      %v3244 = vmul.f32 %v3242, %v507
      %v3245 = vadd.f32 %v3243, 1e-12
      %v3246 = vadd.f32 %v3244, 1e-12
      %v3247 = vrsqrt.pop %v3245
      %v3248 = vrsqrt.pop %v3246
      %v3249 = vmul.f32 %v3233, %v3247
      %v3250 = vmul.f32 %v3234, %v3248
      %v3252 = vlaneseq
      %v3253 = vshrl.u32 %v3252, 7
      %v3254 = vsub.s32 0, %v3253
      %v3255 = vrot.slane %v3222, %v3254
      %v3257 = vmul.f32 %v3249, %v3255
      %v3258 = vmul.f32 %v3250, %v3255
      %v3260 = vlaneseq
      %v3261 = vshrl.u32 %v3260, 7
      %v3262 = vsub.s32 0, %v3261
      %v3263 = vrot.slane %v3224, %v3262
      %v3265 = vadd.f32 %v3257, %v3263
      %v3266 = vadd.f32 %v3258, %v3263
      %3267 = vst.msk [vmem:[%s494] sm:$0xff] %vm499, %v3265
      %3268 = vst.msk [vmem:[%s494 + $0x8] sm:$0x1] %vm503, %v3266
      %p3269 = scmp.lt.s32.totalorder %s26, 1
      %s3270 = scalar_select %p3269, %s26, 1
      %s3271 = smul.addr %s3270, 2
      %s3272 = smul.addr %s3271, 8
      %s3273 = scalar_lea.vmem %s15, %s3272
      // Predicated region
      $region81: #{bert_forward.1} parent=79 // pred_check
        %p3274 = pneg %p364
      $region82: #{bert_forward.1} parent=79 // pred_check_branch
        %3276 = sbr.rel (%p3274) target = $region84
      $region83: #{bert_forward.1} parent=79 // pred_region
        _
      $region84: #{bert_forward.1} parent=79 // pred_fallthru
        _
    $region80: #{bert_forward.1} parent=5 // pred_fallthru
      _
    %p3277 = scmp.le.s32.totalorder 2, %s21
    // Predicated region
    $region85: #{bert_forward.1} parent=5 // pred_check
      %p3278 = pneg %p3277
    $region86: #{bert_forward.1} parent=5 // pred_check_branch
      %3280 = sbr.rel (%p3278) target = $region88
    $region87: #{bert_forward.1} parent=5 // pred_region
      %s3281 = ssub.s32 %s21, 2
      // Predicated region
      $region89: #{bert_forward.1} parent=87 // pred_check
        %p3282 = pneg %p370
      $region90: #{bert_forward.1} parent=87 // pred_check_branch
        %3284 = sbr.rel (%p3282) target = $region92
      $region91: #{bert_forward.1} parent=87 // pred_region
        %p3285 = scmp.lt.s32.totalorder %s27, 1
        %s3286 = scalar_select %p3285, %s27, 1
        %s3287 = smul.addr %s3286, 2
        %s3288 = smul.addr %s3287, 8
        %s3289 = scalar_lea.vmem %s15, %s3288
      $region92: #{bert_forward.1} parent=87 // pred_fallthru
        _
    $region88: #{bert_forward.1} parent=5 // pred_fallthru
      _
  $region6: #{bert_forward.1} parent=0 // loop_footer
    %s25 = sadd.s32 1, %s21
  $region7: #{bert_forward.1} parent=0 // loop_footer_branch
    %20 = sbr.rel target = $region3
  $region8: #{bert_forward.1} parent=0 // loop_exit
    _

</llo_original>
